<compile_context>
chip_gen: v6e
topology: v6e:2x2x1
jax: 0.10.0
libtpu: 0.0.40
codegen_flags: <defaults>
</compile_context>

<pallas_src>
import functools

import numpy as np
import jax
import jax.numpy as jnp
from jax.experimental import pallas as pl
from jax.experimental.pallas import tpu as pltpu


def _round_up(x, m):
    return ((x + m - 1) // m) * m


def _pick_tile(dim, align, max_tile):
    """Pad `dim` to a multiple of `align`, return largest tile <= max_tile dividing it."""
    padded = _round_up(dim, align)
    t = min(max_tile, padded)
    t -= t % align
    t = max(t, align)
    while padded % t:
        t -= align
    return t, padded


# Per-generation VMEM budget (v5e/v6e: 128 MiB physical; v7x: 64 MiB).
try:
    _VMEM_PHYSICAL = int(pltpu.get_tpu_info().vmem_capacity_bytes)
except Exception:
    _VMEM_PHYSICAL = 64 * 1024 * 1024          # conservative (v7x-sized) fallback
_VMEM_LIMIT = min(64 * 1024 * 1024, _VMEM_PHYSICAL // 2)
_MM_TILE_BUDGET = _VMEM_LIMIT // 2             # leave pipelining headroom


# -----------------------------------------------------------------------------
# Pallas kernels
# -----------------------------------------------------------------------------
def _mm_bn_kernel(a_ref, b_ref, scale_ref, shift_ref, o_ref, acc_ref, *, relu):
    # bf16 MXU matmul, f32 accumulation across the K grid axis, then per-column affine
    # (folded BN / bias) and optional ReLU on the final K step; bf16 (or f32) writeback.
    @pl.when(pl.program_id(2) == 0)
    def _():
        acc_ref[...] = jnp.zeros_like(acc_ref)

    acc_ref[...] += jnp.dot(a_ref[...], b_ref[...],
                            preferred_element_type=jnp.float32)

    @pl.when(pl.program_id(2) == pl.num_programs(2) - 1)
    def _():
        y = acc_ref[...] * scale_ref[...] + shift_ref[...]
        if relu:
            y = jnp.maximum(y, 0.0)
        o_ref[...] = y.astype(o_ref.dtype)


def _aspp_proj_kernel(b0, b1, b2, b3, b4, w0, w1, w2, w3, w4,
                      scale_ref, shift_ref, o_ref, *, relu):
    # Fused ASPP projection: out = relu(sum_i branch_i @ W_i * scale + shift)
    # without ever materializing the 5-branch channel concat in HBM.
    acc = jnp.dot(b0[...], w0[...], preferred_element_type=jnp.float32)
    for br, wr in ((b1, w1), (b2, w2), (b3, w3), (b4, w4)):
        acc = acc + jnp.dot(br[...], wr[...], preferred_element_type=jnp.float32)
    y = acc * scale_ref[...] + shift_ref[...]
    if relu:
        y = jnp.maximum(y, 0.0)
    o_ref[...] = y.astype(o_ref.dtype)


def _max_pool_kernel(*refs):
    # running max over kernel*kernel shifted-window inputs (VPU, lane-dense bf16 tiles)
    o_ref = refs[-1]
    m = refs[0][...]
    for r in refs[1:-1]:
        m = jnp.maximum(m, r[...])
    o_ref[...] = m


def _gap_kernel(x_ref, o_ref, acc_ref, *, inv_count):
    # streaming global average pool: f32 running sum over spatial chunks, divide at end
    @pl.when(pl.program_id(0) == 0)
    def _():
        acc_ref[...] = jnp.zeros_like(acc_ref)

    acc_ref[...] += jnp.sum(x_ref[...].astype(jnp.float32), axis=1, keepdims=True)

    @pl.when(pl.program_id(0) == pl.num_programs(0) - 1)
    def _():
        o_ref[...] = (acc_ref[...] * inv_count).astype(o_ref.dtype)


def _resize_h_kernel(i0_ref, i1_ref, x0_ref, x1_ref, fh_ref, o_ref):
    # 2-tap bilinear lerp along H: the two source rows are gathered via the
    # scalar-prefetched i0/i1 tables in the BlockSpec index maps; frac comes from SMEM.
    f = fh_ref[pl.program_id(1)]
    r0 = x0_ref[...]
    r1 = x1_ref[...]
    o_ref[...] = (r0 + (r1 - r0) * f).astype(o_ref.dtype)


# -----------------------------------------------------------------------------
# Tiled fused conv matmul
# -----------------------------------------------------------------------------
def _choose_tiles(M, K, N, o_bytes):
    """VMEM-budget-aware tile selection.  tn is grown toward the full padded N so the big
    im2col A operand is DMA'd only once; shrink tn -> tk -> tm if over budget.  Finally,
    guarantee >=2 blocks on a parallel axis when possible (v7x has 2 TensorCores)."""
    tm, Mp = _pick_tile(M, 16, 512)
    tk, Kp = _pick_tile(K, 128, 1024)
    tn, Np = _pick_tile(N, 128, 1 << 30)       # ideally a single N block

    def vmem_use(tm_, tk_, tn_):
        return (2 * tm_ * tk_ * 2              # A (bf16) double-buffered
                + 2 * tk_ * tn_ * 2            # B (bf16) double-buffered
                + 2 * tm_ * tn_ * o_bytes      # out double-buffered
                + tm_ * tn_ * 4                # f32 accumulator scratch
                + 2 * 2 * tn_ * 4)             # scale/shift

    while vmem_use(tm, tk, tn) > _MM_TILE_BUDGET and tn > 128:
        tn, Np = _pick_tile(N, 128, tn - 128)
    while vmem_use(tm, tk, tn) > _MM_TILE_BUDGET and tk > 128:
        tk, Kp = _pick_tile(K, 128, tk - 128)
    while vmem_use(tm, tk, tn) > _MM_TILE_BUDGET and tm > 16:
        tm, Mp = _pick_tile(M, 16, tm - 16)

    if Mp // tm == 1 and Np // tn == 1 and Mp >= 32:
        tm, Mp = _pick_tile(M, 16, max(16, tm // 2))
    return tm, tk, tn, Mp, Kp, Np


def _tiled_matmul(a, b, scale, shift, relu=False, out_dtype=jnp.bfloat16):
    """out = opt_relu((a @ b) * scale + shift), bf16 MXU operands, f32 accumulate."""
    M, K = a.shape
    K2, N = b.shape
    assert K == K2
    o_bytes = jnp.dtype(out_dtype).itemsize
    tm, tk, tn, Mp, Kp, Np = _choose_tiles(M, K, N, o_bytes)

    if a.dtype != jnp.bfloat16:
        a = a.astype(jnp.bfloat16)
    if b.dtype != jnp.bfloat16:
        b = b.astype(jnp.bfloat16)
    if (Mp, Kp) != (M, K):
        a = jnp.pad(a, ((0, Mp - M), (0, Kp - K)))
    if (Kp, Np) != (K, N):
        b = jnp.pad(b, ((0, Kp - K), (0, Np - N)))
    scale_p = scale.reshape(1, N).astype(jnp.float32)
    shift_p = shift.reshape(1, N).astype(jnp.float32)
    if Np != N:
        scale_p = jnp.pad(scale_p, ((0, 0), (0, Np - N)))
        shift_p = jnp.pad(shift_p, ((0, 0), (0, Np - N)))

    grid = (Mp // tm, Np // tn, Kp // tk)

    cost = pl.CostEstimate(
        flops=2 * Mp * Np * Kp,
        transcendentals=0,
        bytes_accessed=(Mp * Kp * 2 * (Np // tn)      # A refetched per N block
                        + Kp * Np * 2 * (Mp // tm)    # B refetched per M block
                        + Mp * Np * o_bytes
                        + 2 * Np * 4 * (Mp // tm)),
    )

    out_p = pl.pallas_call(
        functools.partial(_mm_bn_kernel, relu=relu),
        out_shape=jax.ShapeDtypeStruct((Mp, Np), out_dtype),
        grid_spec=pltpu.PrefetchScalarGridSpec(
            num_scalar_prefetch=0,
            grid=grid,
            in_specs=[pl.BlockSpec((tm, tk), lambda i, j, k: (i, k)),
                      pl.BlockSpec((tk, tn), lambda i, j, k: (k, j)),
                      pl.BlockSpec((1, tn), lambda i, j, k: (0, j)),
                      pl.BlockSpec((1, tn), lambda i, j, k: (0, j))],
            out_specs=pl.BlockSpec((tm, tn), lambda i, j, k: (i, j)),
            scratch_shapes=[pltpu.VMEM((tm, tn), jnp.float32)],
        ),
        compiler_params=pltpu.CompilerParams(
            dimension_semantics=("parallel", "parallel", "arbitrary"),
            vmem_limit_bytes=_VMEM_LIMIT,
        ),
        cost_estimate=cost,
    )(a, b, scale_p, shift_p)

    if (Mp, Np) != (M, N):
        out_p = out_p[:M, :N]
    return out_p


# -----------------------------------------------------------------------------
# Conv / pool / resize building blocks (glue = im2col / padding / reshapes)
# -----------------------------------------------------------------------------
def im2col(x, kh, kw, stride, padding, dilation=1):
    """x: NHWC (bf16) -> patches (N, H_out, W_out, kh*kw*C) in (i, j, c) order."""
    # TODO(synk): make this implicit (fold taps into the K grid axis with in-kernel shifted
    #             windows) to remove the kh*kw HBM blow-up at real resolutions.
    N, H, W, C = x.shape
    H_out = (H + 2 * padding - dilation * (kh - 1) - 1) // stride + 1
    W_out = (W + 2 * padding - dilation * (kw - 1) - 1) // stride + 1
    xp = jnp.pad(x, ((0, 0), (padding, padding), (padding, padding), (0, 0)))
    patches = []
    for i in range(kh):
        for j in range(kw):
            hi, wj = i * dilation, j * dilation
            patch = xp[:, hi:hi + (H_out - 1) * stride + 1:stride,
                          wj:wj + (W_out - 1) * stride + 1:stride, :]
            patches.append(patch)
    cols = jnp.concatenate(patches, axis=-1)
    return cols, H_out, W_out


def conv2d(x, weight, scale, shift, *, stride=1, padding=0, dilation=1, relu=False,
           out_dtype=jnp.bfloat16):
    """x: NHWC bf16, weight: (C_out, C_in, kh, kw) (PyTorch layout). Fused BN/bias + ReLU."""
    C_out, C_in, kh, kw = weight.shape
    cols, H_out, W_out = im2col(x, kh, kw, stride, padding, dilation)
    N = x.shape[0]
    a = cols.reshape(N * H_out * W_out, kh * kw * C_in)
    b = jnp.transpose(weight, (2, 3, 1, 0)).reshape(kh * kw * C_in, C_out)
    out = _tiled_matmul(a, b, scale, shift, relu=relu, out_dtype=out_dtype)
    return out.reshape(N, H_out, W_out, C_out)


def max_pool2d(x, kernel=3, stride=2, padding=1):
    """PyTorch-style max pool (pads with -inf). bf16, lane-dense (rows,128) kernel layout."""
    N, H, W, C = x.shape
    H_out = (H + 2 * padding - kernel) // stride + 1
    W_out = (W + 2 * padding - kernel) // stride + 1
    xp = jnp.pad(x, ((0, 0), (padding, padding), (padding, padding), (0, 0)),
                 constant_values=-jnp.inf)
    M = N * H_out * W_out
    total = M * C
    LANES = 128
    rows = pl.cdiv(total, LANES)
    tr, rows_p = _pick_tile(rows, 16, 512)
    pad_elems = rows_p * LANES - total

    slices = []
    for i in range(kernel):
        for j in range(kernel):
            s = xp[:, i:i + (H_out - 1) * stride + 1:stride,
                      j:j + (W_out - 1) * stride + 1:stride, :]
            s = s.reshape(-1)
            if pad_elems:
                s = jnp.pad(s, (0, pad_elems))   # pad region is sliced off afterwards
            slices.append(s.reshape(rows_p, LANES))

    out = pl.pallas_call(
        _max_pool_kernel,
        out_shape=jax.ShapeDtypeStruct((rows_p, LANES), x.dtype),
        grid=(rows_p // tr,),
        in_specs=[pl.BlockSpec((tr, LANES), lambda i: (i, 0))] * (kernel * kernel),
        out_specs=pl.BlockSpec((tr, LANES), lambda i: (i, 0)),
        compiler_params=pltpu.CompilerParams(dimension_semantics=("parallel",)),
    )(*slices)
    return out.reshape(-1)[:total].reshape(N, H_out, W_out, C)


def global_avg_pool(x):
    """AdaptiveAvgPool2d(1). x: NHWC bf16 -> (N, 1, 1, C). Streaming tiled reduction."""
    N, H, W, C = x.shape
    HW = H * W
    ts, HWp = _pick_tile(HW, 16, 512)
    xr = x.reshape(N, HW, C)
    if HWp != HW:
        xr = jnp.pad(xr, ((0, 0), (0, HWp - HW), (0, 0)))   # zero pad: sum unaffected

    out = pl.pallas_call(
        functools.partial(_gap_kernel, inv_count=1.0 / float(HW)),
        out_shape=jax.ShapeDtypeStruct((N, 1, C), x.dtype),
        grid=(HWp // ts,),
        in_specs=[pl.BlockSpec((N, ts, C), lambda s: (0, s, 0))],
        out_specs=pl.BlockSpec((N, 1, C), lambda s: (0, 0, 0)),
        scratch_shapes=[pltpu.VMEM((N, 1, C), jnp.float32)],
        compiler_params=pltpu.CompilerParams(dimension_semantics=("arbitrary",)),
    )(xr)
    return out.reshape(N, 1, 1, C)


def aspp_project(branches, weight, scale, shift, relu=True, out_dtype=jnp.bfloat16):
    """Fused 1x1 projection over 5 ASPP branches (no HBM concat).  weight: (Cout, 5*Cb, 1, 1)."""
    N, h, w, Cb = branches[0].shape
    C_out = weight.shape[0]
    M = N * h * w
    tm, Mp = _pick_tile(M, 16, 256)
    tn, Np = _pick_tile(C_out, 128, 512)

    w_full = jnp.transpose(weight, (2, 3, 1, 0)).reshape(5 * Cb, C_out).astype(jnp.bfloat16)
    if Np != C_out:
        w_full = jnp.pad(w_full, ((0, 0), (0, Np - C_out)))
    w_parts = [w_full[i * Cb:(i + 1) * Cb, :] for i in range(5)]

    b_flat = []
    for br in branches:
        f = br.reshape(M, Cb)
        if f.dtype != jnp.bfloat16:
            f = f.astype(jnp.bfloat16)
        if Mp != M:
            f = jnp.pad(f, ((0, Mp - M), (0, 0)))
        b_flat.append(f)

    scale_p = scale.reshape(1, C_out).astype(jnp.float32)
    shift_p = shift.reshape(1, C_out).astype(jnp.float32)
    if Np != C_out:
        scale_p = jnp.pad(scale_p, ((0, 0), (0, Np - C_out)))
        shift_p = jnp.pad(shift_p, ((0, 0), (0, Np - C_out)))

    b_spec = pl.BlockSpec((tm, Cb), lambda i, j: (i, 0))
    w_spec = pl.BlockSpec((Cb, tn), lambda i, j: (0, j))
    s_spec = pl.BlockSpec((1, tn), lambda i, j: (0, j))

    out = pl.pallas_call(
        functools.partial(_aspp_proj_kernel, relu=relu),
        out_shape=jax.ShapeDtypeStruct((Mp, Np), out_dtype),
        grid=(Mp // tm, Np // tn),
        in_specs=[b_spec] * 5 + [w_spec] * 5 + [s_spec, s_spec],
        out_specs=pl.BlockSpec((tm, tn), lambda i, j: (i, j)),
        compiler_params=pltpu.CompilerParams(
            dimension_semantics=("parallel", "parallel"),
            vmem_limit_bytes=_VMEM_LIMIT,
        ),
    )(*b_flat, *w_parts, scale_p, shift_p)

    return out[:M, :C_out].reshape(N, h, w, C_out)


def _interp_coeffs(out_size, in_size):
    """Static taps/weights matching F.interpolate(mode='bilinear', align_corners=False)."""
    o = np.arange(out_size, dtype=np.float64)
    src = np.clip((o + 0.5) * (in_size / out_size) - 0.5, 0.0, in_size - 1)
    i0 = np.floor(src).astype(np.int32)
    i1 = np.minimum(i0 + 1, in_size - 1).astype(np.int32)
    frac = (src - i0).astype(np.float32)
    return i0, i1, frac


def bilinear_resize(x, out_h, out_w):
    """Bilinear (align_corners=False) resize.  W axis is interpolated on the small
    pre-upsample tensor; the H axis is a streaming Pallas 2-tap row-gather + lerp."""
    N, H, W, C = x.shape
    if H == out_h and W == out_w:
        return x
    if H == 1 and W == 1:       # ASPP pooling branch: resize of 1x1 is a broadcast
        return jnp.broadcast_to(x, (N, out_h, out_w, C))

    j0, j1, fw = _interp_coeffs(out_w, W)
    wc = fw[None, None, :, None]
    xw = (x[:, :, j0, :].astype(jnp.float32) * (1.0 - wc)
          + x[:, :, j1, :].astype(jnp.float32) * wc)             # (N, H, out_w, C) f32
    WC = out_w * C
    xw = xw.reshape(N, H, 1, WC)                                 # lane-dense rows

    i0, i1, fh = _interp_coeffs(out_h, H)
    row_spec0 = pl.BlockSpec((1, 1, 1, WC), lambda n, oh, i0r, i1r: (n, i0r[oh], 0, 0))
    row_spec1 = pl.BlockSpec((1, 1, 1, WC), lambda n, oh, i0r, i1r: (n, i1r[oh], 0, 0))

    # TODO(synk): block multiple output rows per grid step to amortize per-step overhead
    #             at full input resolutions.
    out = pl.pallas_call(
        _resize_h_kernel,
        out_shape=jax.ShapeDtypeStruct((N, out_h, 1, WC), jnp.float32),
        grid_spec=pltpu.PrefetchScalarGridSpec(
            num_scalar_prefetch=2,
            grid=(N, out_h),
            in_specs=[row_spec0, row_spec1,
                      pl.BlockSpec(memory_space=pltpu.MemorySpace.SMEM)],
            out_specs=pl.BlockSpec((1, 1, 1, WC), lambda n, oh, i0r, i1r: (n, oh, 0, 0)),
        ),
        compiler_params=pltpu.CompilerParams(
            dimension_semantics=("parallel", "parallel")),
    )(jnp.asarray(i0, jnp.int32), jnp.asarray(i1, jnp.int32),
      xw, xw, jnp.asarray(fh, jnp.float32))
    return out.reshape(N, out_h, out_w, C)


# -----------------------------------------------------------------------------
# Parameters (deterministic init) and forward pass
# -----------------------------------------------------------------------------
C_STEM = 16      # stands in for 64  (backbone conv1 out channels)
C_L1 = 32        # reduced mid-stage width
C_BACKBONE = 64  # stands in for 2048 (backbone "out" features)
C_ASPP = 32      # stands in for 256  (ASPP / head channels)
ASPP_DILATIONS = (12, 24, 36)


def init_params(key, num_input_channels, num_classes):
    keys = iter(jax.random.split(key, 64))

    def conv_w(cout, cin, kh, kw):
        return 0.1 * jax.random.normal(next(keys), (cout, cin, kh, kw), jnp.float32)

    def bn_fold(c):
        gamma = 1.0 + 0.1 * jax.random.normal(next(keys), (c,), jnp.float32)
        beta = 0.1 * jax.random.normal(next(keys), (c,), jnp.float32)
        mean = 0.1 * jax.random.normal(next(keys), (c,), jnp.float32)
        var = 1.0 + 0.1 * jnp.abs(jax.random.normal(next(keys), (c,), jnp.float32))
        scale = gamma / jnp.sqrt(var + 1e-5)
        shift = beta - mean * scale
        return (scale.astype(jnp.float32), shift.astype(jnp.float32))

    p = {}
    # backbone stem: custom conv1 (num_input_channels -> C_STEM, 7x7, s=2, p=3, no bias)
    p['conv1_w'] = conv_w(C_STEM, num_input_channels, 7, 7)
    p['bn1'] = bn_fold(C_STEM)
    # reduced ResNet body  # TODO(synk): full bottleneck stack depth not replicated
    p['layerA_w'] = conv_w(C_L1, C_STEM, 3, 3)
    p['bnA'] = bn_fold(C_L1)
    p['layerB_w'] = conv_w(C_BACKBONE, C_L1, 3, 3)
    p['bnB'] = bn_fold(C_BACKBONE)
    # ASPP
    p['aspp0_w'] = conv_w(C_ASPP, C_BACKBONE, 1, 1)
    p['aspp0_bn'] = bn_fold(C_ASPP)
    for i in range(1, 4):
        p[f'aspp{i}_w'] = conv_w(C_ASPP, C_BACKBONE, 3, 3)
        p[f'aspp{i}_bn'] = bn_fold(C_ASPP)
    p['aspp_pool_w'] = conv_w(C_ASPP, C_BACKBONE, 1, 1)
    p['aspp_pool_bn'] = bn_fold(C_ASPP)
    p['aspp_proj_w'] = conv_w(C_ASPP, 5 * C_ASPP, 1, 1)
    p['aspp_proj_bn'] = bn_fold(C_ASPP)
    # DeepLabHead tail
    p['head_w'] = conv_w(C_ASPP, C_ASPP, 3, 3)
    p['head_bn'] = bn_fold(C_ASPP)
    # replaced final classifier: 1x1 conv (with bias) -> num_classes
    p['cls_w'] = conv_w(num_classes, C_ASPP, 1, 1)
    p['cls_b'] = 0.1 * jax.random.normal(next(keys), (num_classes,), jnp.float32)
    return p


def deeplabv3_forward(params, x_nchw):
    # layout: input NCHW (PyTorch); converted once to NHWC bf16 (producer-side cast).
    x = jnp.transpose(x_nchw, (0, 2, 3, 1)).astype(jnp.bfloat16)
    N, H_in, W_in, _ = x.shape

    # --- backbone stem ---
    x = conv2d(x, params['conv1_w'], *params['bn1'], stride=2, padding=3, relu=True)
    x = max_pool2d(x, kernel=3, stride=2, padding=1)
    # --- reduced backbone body (output stride 8) ---
    x = conv2d(x, params['layerA_w'], *params['bnA'], stride=1, padding=1, relu=True)
    x = conv2d(x, params['layerB_w'], *params['bnB'], stride=2, padding=1, relu=True)
    feat = x
    h, w = feat.shape[1], feat.shape[2]

    # --- ASPP ---
    branches = [conv2d(feat, params['aspp0_w'], *params['aspp0_bn'], relu=True)]
    for idx, d in enumerate(ASPP_DILATIONS):
        branches.append(conv2d(feat, params[f'aspp{idx + 1}_w'],
                               *params[f'aspp{idx + 1}_bn'],
                               padding=d, dilation=d, relu=True))
    pooled = global_avg_pool(feat)
    pooled = conv2d(pooled, params['aspp_pool_w'], *params['aspp_pool_bn'], relu=True)
    pooled = jnp.broadcast_to(pooled, (N, h, w, pooled.shape[-1]))
    branches.append(pooled)
    x = aspp_project(branches, params['aspp_proj_w'], *params['aspp_proj_bn'], relu=True)
    # Dropout(0.5) -> identity in eval mode

    # --- head tail + replaced classifier ---
    x = conv2d(x, params['head_w'], *params['head_bn'], padding=1, relu=True)
    cls_scale = jnp.ones((params['cls_w'].shape[0],), jnp.float32)
    x = conv2d(x, params['cls_w'], cls_scale, params['cls_b'], relu=False,
               out_dtype=jnp.float32)

    # --- bilinear upsample back to input resolution (align_corners=False) ---
    out = bilinear_resize(x, H_in, W_in)
    out_nchw = jnp.transpose(out, (0, 3, 1, 2)).astype(jnp.float32)
    return {'out': out_nchw}  # torchvision returns an OrderedDict with key 'out'


if __name__ == "__main__":
    num_input_channels = 4
    num_classes = 3
    key = jax.random.PRNGKey(0)
    pkey, xkey = jax.random.split(key)
    params = init_params(pkey, num_input_channels, num_classes)
    x = jax.random.normal(xkey, (2, num_input_channels, 16, 16), jnp.float32)

    fwd = jax.jit(deeplabv3_forward)
    result = fwd(params, x)
    jax.block_until_ready(result)

    out = result['out']
    assert out.shape == (2, num_classes, 16, 16), out.shape
    assert out.dtype == jnp.float32
    assert bool(jnp.all(jnp.isfinite(out)))
    print("KERNEL_OK")
</pallas_src>

<mosaic_0001>
module attributes {stable_mosaic.version = 11 : i64} {
  func.func @_mm_bn_kernel(%arg0: i32, %arg1: i32, %arg2: i32, %arg3: memref<64x256xbf16, #tpu.memory_space<vmem>>, %arg4: memref<256x128xbf16, #tpu.memory_space<vmem>>, %arg5: memref<1x128xf32, #tpu.memory_space<vmem>>, %arg6: memref<1x128xf32, #tpu.memory_space<vmem>>, %arg7: memref<64x128xbf16, #tpu.memory_space<vmem>>, %arg8: memref<64x128xf32, #tpu.memory_space<vmem>>) attributes {dimension_semantics = [#tpu.dimension_semantics<parallel>, #tpu.dimension_semantics<parallel>, #tpu.dimension_semantics<arbitrary>], iteration_bounds = array<i64: 2, 1, 1>, scalar_prefetch = 0 : i64, scratch_operands = 1 : i64, tpu.core_type = #tpu.core_type<tc>, window_params = [{transform_indices = @transform_0, window_bounds = array<i64: 64, 256>}, {transform_indices = @transform_1, window_bounds = array<i64: 256, 128>}, {transform_indices = @transform_2, window_bounds = array<i64: 1, 128>}, {transform_indices = @transform_3, window_bounds = array<i64: 1, 128>}, {transform_indices = @transform_4, window_bounds = array<i64: 64, 128>}]} {
    %c0_i32 = arith.constant 0 : i32
    %0 = arith.cmpi eq, %arg2, %c0_i32 : i32
    %1 = arith.extui %0 : i1 to i32
    %c0_i32_0 = arith.constant 0 : i32
    %2 = arith.cmpi ne, %1, %c0_i32_0 : i32
    scf.if %2 {
      %cst_10 = arith.constant 0.000000e+00 : f32
      %12 = vector.broadcast %cst_10 : f32 to vector<64x128xf32>
      %c0_11 = arith.constant 0 : index
      %c0_12 = arith.constant 0 : index
      %13 = vector.load %arg8[%c0_11, %c0_12] : memref<64x128xf32, #tpu.memory_space<vmem>>, vector<64x128xf32>
      tpu.vector_store %arg8[%c0_11, %c0_12], %12 {strides = array<i32>} : memref<64x128xf32, #tpu.memory_space<vmem>>, vector<64x128xf32>,
    } else {
    }
    %c0 = arith.constant 0 : index
    %c0_1 = arith.constant 0 : index
    %3 = vector.load %arg8[%c0, %c0_1] : memref<64x128xf32, #tpu.memory_space<vmem>>, vector<64x128xf32>
    %c0_2 = arith.constant 0 : index
    %c0_3 = arith.constant 0 : index
    %4 = vector.load %arg3[%c0_2, %c0_3] : memref<64x256xbf16, #tpu.memory_space<vmem>>, vector<64x256xbf16>
    %c0_4 = arith.constant 0 : index
    %c0_5 = arith.constant 0 : index
    %5 = vector.load %arg4[%c0_4, %c0_5] : memref<256x128xbf16, #tpu.memory_space<vmem>>, vector<256x128xbf16>
    %cst = arith.constant dense<0.000000e+00> : vector<64x128xf32>
    %6 = tpu.matmul %4, %5, %cst {dimension_numbers = #tpu.dot_dimension_numbers<[1], [0], [0], [1], [0, 0, 1, 1], [], []>} : vector<64x256xbf16>, vector<256x128xbf16>, vector<64x128xf32> -> vector<64x128xf32>
    %7 = arith.addf %3, %6 : vector<64x128xf32>
    %c0_6 = arith.constant 0 : index
    %c0_7 = arith.constant 0 : index
    %8 = vector.load %arg8[%c0_6, %c0_7] : memref<64x128xf32, #tpu.memory_space<vmem>>, vector<64x128xf32>
    tpu.vector_store %arg8[%c0_6, %c0_7], %7 {strides = array<i32>} : memref<64x128xf32, #tpu.memory_space<vmem>>, vector<64x128xf32>,
    %c0_i32_8 = arith.constant 0 : i32
    %9 = arith.cmpi eq, %arg2, %c0_i32_8 : i32
    %10 = arith.extui %9 : i1 to i32
    %c0_i32_9 = arith.constant 0 : i32
    %11 = arith.cmpi ne, %10, %c0_i32_9 : i32
    scf.if %11 {
      %c0_10 = arith.constant 0 : index
      %c0_11 = arith.constant 0 : index
      %12 = vector.load %arg8[%c0_10, %c0_11] : memref<64x128xf32, #tpu.memory_space<vmem>>, vector<64x128xf32>
      %c0_12 = arith.constant 0 : index
      %c0_13 = arith.constant 0 : index
      %13 = vector.load %arg5[%c0_12, %c0_13] : memref<1x128xf32, #tpu.memory_space<vmem>>, vector<1x128xf32>
      %14 = vector.broadcast %13 : vector<1x128xf32> to vector<64x128xf32>
      %15 = arith.mulf %12, %14 : vector<64x128xf32>
      %c0_14 = arith.constant 0 : index
      %c0_15 = arith.constant 0 : index
      %16 = vector.load %arg6[%c0_14, %c0_15] : memref<1x128xf32, #tpu.memory_space<vmem>>, vector<1x128xf32>
      %17 = vector.broadcast %16 : vector<1x128xf32> to vector<64x128xf32>
      %18 = arith.addf %15, %17 : vector<64x128xf32>
      %cst_16 = arith.constant 0.000000e+00 : f32
      %19 = vector.broadcast %cst_16 : f32 to vector<64x128xf32>
      %20 = arith.maximumf %18, %19 : vector<64x128xf32>
      %21 = arith.truncf %20 : vector<64x128xf32> to vector<64x128xbf16>
      %c0_17 = arith.constant 0 : index
      %c0_18 = arith.constant 0 : index
      %22 = vector.load %arg7[%c0_17, %c0_18] : memref<64x128xbf16, #tpu.memory_space<vmem>>, vector<64x128xbf16>
      tpu.vector_store %arg7[%c0_17, %c0_18], %21 {strides = array<i32>} : memref<64x128xbf16, #tpu.memory_space<vmem>>, vector<64x128xbf16>,
    } else {
    }
    return
  }
  func.func @transform_0(%arg0: i32, %arg1: i32, %arg2: i32) -> (i32, i32) {
    %c0_i32 = arith.constant 0 : i32
    return %arg0, %arg2 : i32, i32
  }
  func.func @transform_1(%arg0: i32, %arg1: i32, %arg2: i32) -> (i32, i32) {
    %c0_i32 = arith.constant 0 : i32
    return %arg2, %arg1 : i32, i32
  }
  func.func @transform_2(%arg0: i32, %arg1: i32, %arg2: i32) -> (i32, i32) {
    %c0_i32 = arith.constant 0 : i32
    %c0_i32_0 = arith.constant 0 : i32
    return %c0_i32, %arg1 : i32, i32
  }
  func.func @transform_3(%arg0: i32, %arg1: i32, %arg2: i32) -> (i32, i32) {
    %c0_i32 = arith.constant 0 : i32
    %c0_i32_0 = arith.constant 0 : i32
    return %c0_i32, %arg1 : i32, i32
  }
  func.func @transform_4(%arg0: i32, %arg1: i32, %arg2: i32) -> (i32, i32) {
    %c0_i32 = arith.constant 0 : i32
    return %arg0, %arg1 : i32, i32
  }
}

module attributes {stable_mosaic.version = 11 : i64} {
  func.func @_max_pool_kernel(%arg0: i32, %arg1: memref<16x128xbf16, #tpu.memory_space<vmem>>, %arg2: memref<16x128xbf16, #tpu.memory_space<vmem>>, %arg3: memref<16x128xbf16, #tpu.memory_space<vmem>>, %arg4: memref<16x128xbf16, #tpu.memory_space<vmem>>, %arg5: memref<16x128xbf16, #tpu.memory_space<vmem>>, %arg6: memref<16x128xbf16, #tpu.memory_space<vmem>>, %arg7: memref<16x128xbf16, #tpu.memory_space<vmem>>, %arg8: memref<16x128xbf16, #tpu.memory_space<vmem>>, %arg9: memref<16x128xbf16, #tpu.memory_space<vmem>>, %arg10: memref<16x128xbf16, #tpu.memory_space<vmem>>) attributes {dimension_semantics = [#tpu.dimension_semantics<parallel>], iteration_bounds = array<i64: 1>, scalar_prefetch = 0 : i64, scratch_operands = 0 : i64, tpu.core_type = #tpu.core_type<tc>, window_params = [{transform_indices = @transform_0, window_bounds = array<i64: 16, 128>}, {transform_indices = @transform_1, window_bounds = array<i64: 16, 128>}, {transform_indices = @transform_2, window_bounds = array<i64: 16, 128>}, {transform_indices = @transform_3, window_bounds = array<i64: 16, 128>}, {transform_indices = @transform_4, window_bounds = array<i64: 16, 128>}, {transform_indices = @transform_5, window_bounds = array<i64: 16, 128>}, {transform_indices = @transform_6, window_bounds = array<i64: 16, 128>}, {transform_indices = @transform_7, window_bounds = array<i64: 16, 128>}, {transform_indices = @transform_8, window_bounds = array<i64: 16, 128>}, {transform_indices = @transform_9, window_bounds = array<i64: 16, 128>}]} {
    %c0 = arith.constant 0 : index
    %c0_0 = arith.constant 0 : index
    %0 = vector.load %arg1[%c0, %c0_0] : memref<16x128xbf16, #tpu.memory_space<vmem>>, vector<16x128xbf16>
    %c0_1 = arith.constant 0 : index
    %c0_2 = arith.constant 0 : index
    %1 = vector.load %arg2[%c0_1, %c0_2] : memref<16x128xbf16, #tpu.memory_space<vmem>>, vector<16x128xbf16>
    %2 = arith.maximumf %0, %1 : vector<16x128xbf16>
    %c0_3 = arith.constant 0 : index
    %c0_4 = arith.constant 0 : index
    %3 = vector.load %arg3[%c0_3, %c0_4] : memref<16x128xbf16, #tpu.memory_space<vmem>>, vector<16x128xbf16>
    %4 = arith.maximumf %2, %3 : vector<16x128xbf16>
    %c0_5 = arith.constant 0 : index
    %c0_6 = arith.constant 0 : index
    %5 = vector.load %arg4[%c0_5, %c0_6] : memref<16x128xbf16, #tpu.memory_space<vmem>>, vector<16x128xbf16>
    %6 = arith.maximumf %4, %5 : vector<16x128xbf16>
    %c0_7 = arith.constant 0 : index
    %c0_8 = arith.constant 0 : index
    %7 = vector.load %arg5[%c0_7, %c0_8] : memref<16x128xbf16, #tpu.memory_space<vmem>>, vector<16x128xbf16>
    %8 = arith.maximumf %6, %7 : vector<16x128xbf16>
    %c0_9 = arith.constant 0 : index
    %c0_10 = arith.constant 0 : index
    %9 = vector.load %arg6[%c0_9, %c0_10] : memref<16x128xbf16, #tpu.memory_space<vmem>>, vector<16x128xbf16>
    %10 = arith.maximumf %8, %9 : vector<16x128xbf16>
    %c0_11 = arith.constant 0 : index
    %c0_12 = arith.constant 0 : index
    %11 = vector.load %arg7[%c0_11, %c0_12] : memref<16x128xbf16, #tpu.memory_space<vmem>>, vector<16x128xbf16>
    %12 = arith.maximumf %10, %11 : vector<16x128xbf16>
    %c0_13 = arith.constant 0 : index
    %c0_14 = arith.constant 0 : index
    %13 = vector.load %arg8[%c0_13, %c0_14] : memref<16x128xbf16, #tpu.memory_space<vmem>>, vector<16x128xbf16>
    %14 = arith.maximumf %12, %13 : vector<16x128xbf16>
    %c0_15 = arith.constant 0 : index
    %c0_16 = arith.constant 0 : index
    %15 = vector.load %arg9[%c0_15, %c0_16] : memref<16x128xbf16, #tpu.memory_space<vmem>>, vector<16x128xbf16>
    %16 = arith.maximumf %14, %15 : vector<16x128xbf16>
    %c0_17 = arith.constant 0 : index
    %c0_18 = arith.constant 0 : index
    %17 = vector.load %arg10[%c0_17, %c0_18] : memref<16x128xbf16, #tpu.memory_space<vmem>>, vector<16x128xbf16>
    tpu.vector_store %arg10[%c0_17, %c0_18], %16 {strides = array<i32>} : memref<16x128xbf16, #tpu.memory_space<vmem>>, vector<16x128xbf16>,
    return
  }
  func.func @transform_0(%arg0: i32) -> (i32, i32) {
    %c0_i32 = arith.constant 0 : i32
    %c0_i32_0 = arith.constant 0 : i32
    return %arg0, %c0_i32 : i32, i32
  }
  func.func @transform_1(%arg0: i32) -> (i32, i32) {
    %c0_i32 = arith.constant 0 : i32
    %c0_i32_0 = arith.constant 0 : i32
    return %arg0, %c0_i32 : i32, i32
  }
  func.func @transform_2(%arg0: i32) -> (i32, i32) {
    %c0_i32 = arith.constant 0 : i32
    %c0_i32_0 = arith.constant 0 : i32
    return %arg0, %c0_i32 : i32, i32
  }
  func.func @transform_3(%arg0: i32) -> (i32, i32) {
    %c0_i32 = arith.constant 0 : i32
    %c0_i32_0 = arith.constant 0 : i32
    return %arg0, %c0_i32 : i32, i32
  }
  func.func @transform_4(%arg0: i32) -> (i32, i32) {
    %c0_i32 = arith.constant 0 : i32
    %c0_i32_0 = arith.constant 0 : i32
    return %arg0, %c0_i32 : i32, i32
  }
  func.func @transform_5(%arg0: i32) -> (i32, i32) {
    %c0_i32 = arith.constant 0 : i32
    %c0_i32_0 = arith.constant 0 : i32
    return %arg0, %c0_i32 : i32, i32
  }
  func.func @transform_6(%arg0: i32) -> (i32, i32) {
    %c0_i32 = arith.constant 0 : i32
    %c0_i32_0 = arith.constant 0 : i32
    return %arg0, %c0_i32 : i32, i32
  }
  func.func @transform_7(%arg0: i32) -> (i32, i32) {
    %c0_i32 = arith.constant 0 : i32
    %c0_i32_0 = arith.constant 0 : i32
    return %arg0, %c0_i32 : i32, i32
  }
  func.func @transform_8(%arg0: i32) -> (i32, i32) {
    %c0_i32 = arith.constant 0 : i32
    %c0_i32_0 = arith.constant 0 : i32
    return %arg0, %c0_i32 : i32, i32
  }
  func.func @transform_9(%arg0: i32) -> (i32, i32) {
    %c0_i32 = arith.constant 0 : i32
    %c0_i32_0 = arith.constant 0 : i32
    return %arg0, %c0_i32 : i32, i32
  }
}

module attributes {stable_mosaic.version = 11 : i64} {
  func.func @_mm_bn_kernel(%arg0: i32, %arg1: i32, %arg2: i32, %arg3: memref<16x256xbf16, #tpu.memory_space<vmem>>, %arg4: memref<256x128xbf16, #tpu.memory_space<vmem>>, %arg5: memref<1x128xf32, #tpu.memory_space<vmem>>, %arg6: memref<1x128xf32, #tpu.memory_space<vmem>>, %arg7: memref<16x128xbf16, #tpu.memory_space<vmem>>, %arg8: memref<16x128xf32, #tpu.memory_space<vmem>>) attributes {dimension_semantics = [#tpu.dimension_semantics<parallel>, #tpu.dimension_semantics<parallel>, #tpu.dimension_semantics<arbitrary>], iteration_bounds = array<i64: 2, 1, 1>, scalar_prefetch = 0 : i64, scratch_operands = 1 : i64, tpu.core_type = #tpu.core_type<tc>, window_params = [{transform_indices = @transform_0, window_bounds = array<i64: 16, 256>}, {transform_indices = @transform_1, window_bounds = array<i64: 256, 128>}, {transform_indices = @transform_2, window_bounds = array<i64: 1, 128>}, {transform_indices = @transform_3, window_bounds = array<i64: 1, 128>}, {transform_indices = @transform_4, window_bounds = array<i64: 16, 128>}]} {
    %c0_i32 = arith.constant 0 : i32
    %0 = arith.cmpi eq, %arg2, %c0_i32 : i32
    %1 = arith.extui %0 : i1 to i32
    %c0_i32_0 = arith.constant 0 : i32
    %2 = arith.cmpi ne, %1, %c0_i32_0 : i32
    scf.if %2 {
      %cst_10 = arith.constant 0.000000e+00 : f32
      %12 = vector.broadcast %cst_10 : f32 to vector<16x128xf32>
      %c0_11 = arith.constant 0 : index
      %c0_12 = arith.constant 0 : index
      %13 = vector.load %arg8[%c0_11, %c0_12] : memref<16x128xf32, #tpu.memory_space<vmem>>, vector<16x128xf32>
      tpu.vector_store %arg8[%c0_11, %c0_12], %12 {strides = array<i32>} : memref<16x128xf32, #tpu.memory_space<vmem>>, vector<16x128xf32>,
    } else {
    }
    %c0 = arith.constant 0 : index
    %c0_1 = arith.constant 0 : index
    %3 = vector.load %arg8[%c0, %c0_1] : memref<16x128xf32, #tpu.memory_space<vmem>>, vector<16x128xf32>
    %c0_2 = arith.constant 0 : index
    %c0_3 = arith.constant 0 : index
    %4 = vector.load %arg3[%c0_2, %c0_3] : memref<16x256xbf16, #tpu.memory_space<vmem>>, vector<16x256xbf16>
    %c0_4 = arith.constant 0 : index
    %c0_5 = arith.constant 0 : index
    %5 = vector.load %arg4[%c0_4, %c0_5] : memref<256x128xbf16, #tpu.memory_space<vmem>>, vector<256x128xbf16>
    %cst = arith.constant dense<0.000000e+00> : vector<16x128xf32>
    %6 = tpu.matmul %4, %5, %cst {dimension_numbers = #tpu.dot_dimension_numbers<[1], [0], [0], [1], [0, 0, 1, 1], [], []>} : vector<16x256xbf16>, vector<256x128xbf16>, vector<16x128xf32> -> vector<16x128xf32>
    %7 = arith.addf %3, %6 : vector<16x128xf32>
    %c0_6 = arith.constant 0 : index
    %c0_7 = arith.constant 0 : index
    %8 = vector.load %arg8[%c0_6, %c0_7] : memref<16x128xf32, #tpu.memory_space<vmem>>, vector<16x128xf32>
    tpu.vector_store %arg8[%c0_6, %c0_7], %7 {strides = array<i32>} : memref<16x128xf32, #tpu.memory_space<vmem>>, vector<16x128xf32>,
    %c0_i32_8 = arith.constant 0 : i32
    %9 = arith.cmpi eq, %arg2, %c0_i32_8 : i32
    %10 = arith.extui %9 : i1 to i32
    %c0_i32_9 = arith.constant 0 : i32
    %11 = arith.cmpi ne, %10, %c0_i32_9 : i32
    scf.if %11 {
      %c0_10 = arith.constant 0 : index
      %c0_11 = arith.constant 0 : index
      %12 = vector.load %arg8[%c0_10, %c0_11] : memref<16x128xf32, #tpu.memory_space<vmem>>, vector<16x128xf32>
      %c0_12 = arith.constant 0 : index
      %c0_13 = arith.constant 0 : index
      %13 = vector.load %arg5[%c0_12, %c0_13] : memref<1x128xf32, #tpu.memory_space<vmem>>, vector<1x128xf32>
      %14 = vector.broadcast %13 : vector<1x128xf32> to vector<16x128xf32>
      %15 = arith.mulf %12, %14 : vector<16x128xf32>
      %c0_14 = arith.constant 0 : index
      %c0_15 = arith.constant 0 : index
      %16 = vector.load %arg6[%c0_14, %c0_15] : memref<1x128xf32, #tpu.memory_space<vmem>>, vector<1x128xf32>
      %17 = vector.broadcast %16 : vector<1x128xf32> to vector<16x128xf32>
      %18 = arith.addf %15, %17 : vector<16x128xf32>
      %cst_16 = arith.constant 0.000000e+00 : f32
      %19 = vector.broadcast %cst_16 : f32 to vector<16x128xf32>
      %20 = arith.maximumf %18, %19 : vector<16x128xf32>
      %21 = arith.truncf %20 : vector<16x128xf32> to vector<16x128xbf16>
      %c0_17 = arith.constant 0 : index
      %c0_18 = arith.constant 0 : index
      %22 = vector.load %arg7[%c0_17, %c0_18] : memref<16x128xbf16, #tpu.memory_space<vmem>>, vector<16x128xbf16>
      tpu.vector_store %arg7[%c0_17, %c0_18], %21 {strides = array<i32>} : memref<16x128xbf16, #tpu.memory_space<vmem>>, vector<16x128xbf16>,
    } else {
    }
    return
  }
  func.func @transform_0(%arg0: i32, %arg1: i32, %arg2: i32) -> (i32, i32) {
    %c0_i32 = arith.constant 0 : i32
    return %arg0, %arg2 : i32, i32
  }
  func.func @transform_1(%arg0: i32, %arg1: i32, %arg2: i32) -> (i32, i32) {
    %c0_i32 = arith.constant 0 : i32
    return %arg2, %arg1 : i32, i32
  }
  func.func @transform_2(%arg0: i32, %arg1: i32, %arg2: i32) -> (i32, i32) {
    %c0_i32 = arith.constant 0 : i32
    %c0_i32_0 = arith.constant 0 : i32
    return %c0_i32, %arg1 : i32, i32
  }
  func.func @transform_3(%arg0: i32, %arg1: i32, %arg2: i32) -> (i32, i32) {
    %c0_i32 = arith.constant 0 : i32
    %c0_i32_0 = arith.constant 0 : i32
    return %c0_i32, %arg1 : i32, i32
  }
  func.func @transform_4(%arg0: i32, %arg1: i32, %arg2: i32) -> (i32, i32) {
    %c0_i32 = arith.constant 0 : i32
    return %arg0, %arg1 : i32, i32
  }
}

module attributes {stable_mosaic.version = 11 : i64} {
  func.func @_mm_bn_kernel(%arg0: i32, %arg1: i32, %arg2: i32, %arg3: memref<16x384xbf16, #tpu.memory_space<vmem>>, %arg4: memref<384x128xbf16, #tpu.memory_space<vmem>>, %arg5: memref<1x128xf32, #tpu.memory_space<vmem>>, %arg6: memref<1x128xf32, #tpu.memory_space<vmem>>, %arg7: memref<16x128xbf16, #tpu.memory_space<vmem>>, %arg8: memref<16x128xf32, #tpu.memory_space<vmem>>) attributes {dimension_semantics = [#tpu.dimension_semantics<parallel>, #tpu.dimension_semantics<parallel>, #tpu.dimension_semantics<arbitrary>], iteration_bounds = array<i64: 1, 1, 1>, scalar_prefetch = 0 : i64, scratch_operands = 1 : i64, tpu.core_type = #tpu.core_type<tc>, window_params = [{transform_indices = @transform_0, window_bounds = array<i64: 16, 384>}, {transform_indices = @transform_1, window_bounds = array<i64: 384, 128>}, {transform_indices = @transform_2, window_bounds = array<i64: 1, 128>}, {transform_indices = @transform_3, window_bounds = array<i64: 1, 128>}, {transform_indices = @transform_4, window_bounds = array<i64: 16, 128>}]} {
    %c0_i32 = arith.constant 0 : i32
    %0 = arith.cmpi eq, %arg2, %c0_i32 : i32
    %1 = arith.extui %0 : i1 to i32
    %c0_i32_0 = arith.constant 0 : i32
    %2 = arith.cmpi ne, %1, %c0_i32_0 : i32
    scf.if %2 {
      %cst_10 = arith.constant 0.000000e+00 : f32
      %12 = vector.broadcast %cst_10 : f32 to vector<16x128xf32>
      %c0_11 = arith.constant 0 : index
      %c0_12 = arith.constant 0 : index
      %13 = vector.load %arg8[%c0_11, %c0_12] : memref<16x128xf32, #tpu.memory_space<vmem>>, vector<16x128xf32>
      tpu.vector_store %arg8[%c0_11, %c0_12], %12 {strides = array<i32>} : memref<16x128xf32, #tpu.memory_space<vmem>>, vector<16x128xf32>,
    } else {
    }
    %c0 = arith.constant 0 : index
    %c0_1 = arith.constant 0 : index
    %3 = vector.load %arg8[%c0, %c0_1] : memref<16x128xf32, #tpu.memory_space<vmem>>, vector<16x128xf32>
    %c0_2 = arith.constant 0 : index
    %c0_3 = arith.constant 0 : index
    %4 = vector.load %arg3[%c0_2, %c0_3] : memref<16x384xbf16, #tpu.memory_space<vmem>>, vector<16x384xbf16>
    %c0_4 = arith.constant 0 : index
    %c0_5 = arith.constant 0 : index
    %5 = vector.load %arg4[%c0_4, %c0_5] : memref<384x128xbf16, #tpu.memory_space<vmem>>, vector<384x128xbf16>
    %cst = arith.constant dense<0.000000e+00> : vector<16x128xf32>
    %6 = tpu.matmul %4, %5, %cst {dimension_numbers = #tpu.dot_dimension_numbers<[1], [0], [0], [1], [0, 0, 1, 1], [], []>} : vector<16x384xbf16>, vector<384x128xbf16>, vector<16x128xf32> -> vector<16x128xf32>
    %7 = arith.addf %3, %6 : vector<16x128xf32>
    %c0_6 = arith.constant 0 : index
    %c0_7 = arith.constant 0 : index
    %8 = vector.load %arg8[%c0_6, %c0_7] : memref<16x128xf32, #tpu.memory_space<vmem>>, vector<16x128xf32>
    tpu.vector_store %arg8[%c0_6, %c0_7], %7 {strides = array<i32>} : memref<16x128xf32, #tpu.memory_space<vmem>>, vector<16x128xf32>,
    %c0_i32_8 = arith.constant 0 : i32
    %9 = arith.cmpi eq, %arg2, %c0_i32_8 : i32
    %10 = arith.extui %9 : i1 to i32
    %c0_i32_9 = arith.constant 0 : i32
    %11 = arith.cmpi ne, %10, %c0_i32_9 : i32
    scf.if %11 {
      %c0_10 = arith.constant 0 : index
      %c0_11 = arith.constant 0 : index
      %12 = vector.load %arg8[%c0_10, %c0_11] : memref<16x128xf32, #tpu.memory_space<vmem>>, vector<16x128xf32>
      %c0_12 = arith.constant 0 : index
      %c0_13 = arith.constant 0 : index
      %13 = vector.load %arg5[%c0_12, %c0_13] : memref<1x128xf32, #tpu.memory_space<vmem>>, vector<1x128xf32>
      %14 = vector.broadcast %13 : vector<1x128xf32> to vector<16x128xf32>
      %15 = arith.mulf %12, %14 : vector<16x128xf32>
      %c0_14 = arith.constant 0 : index
      %c0_15 = arith.constant 0 : index
      %16 = vector.load %arg6[%c0_14, %c0_15] : memref<1x128xf32, #tpu.memory_space<vmem>>, vector<1x128xf32>
      %17 = vector.broadcast %16 : vector<1x128xf32> to vector<16x128xf32>
      %18 = arith.addf %15, %17 : vector<16x128xf32>
      %cst_16 = arith.constant 0.000000e+00 : f32
      %19 = vector.broadcast %cst_16 : f32 to vector<16x128xf32>
      %20 = arith.maximumf %18, %19 : vector<16x128xf32>
      %21 = arith.truncf %20 : vector<16x128xf32> to vector<16x128xbf16>
      %c0_17 = arith.constant 0 : index
      %c0_18 = arith.constant 0 : index
      %22 = vector.load %arg7[%c0_17, %c0_18] : memref<16x128xbf16, #tpu.memory_space<vmem>>, vector<16x128xbf16>
      tpu.vector_store %arg7[%c0_17, %c0_18], %21 {strides = array<i32>} : memref<16x128xbf16, #tpu.memory_space<vmem>>, vector<16x128xbf16>,
    } else {
    }
    return
  }
  func.func @transform_0(%arg0: i32, %arg1: i32, %arg2: i32) -> (i32, i32) {
    %c0_i32 = arith.constant 0 : i32
    return %arg0, %arg2 : i32, i32
  }
  func.func @transform_1(%arg0: i32, %arg1: i32, %arg2: i32) -> (i32, i32) {
    %c0_i32 = arith.constant 0 : i32
    return %arg2, %arg1 : i32, i32
  }
  func.func @transform_2(%arg0: i32, %arg1: i32, %arg2: i32) -> (i32, i32) {
    %c0_i32 = arith.constant 0 : i32
    %c0_i32_0 = arith.constant 0 : i32
    return %c0_i32, %arg1 : i32, i32
  }
  func.func @transform_3(%arg0: i32, %arg1: i32, %arg2: i32) -> (i32, i32) {
    %c0_i32 = arith.constant 0 : i32
    %c0_i32_0 = arith.constant 0 : i32
    return %c0_i32, %arg1 : i32, i32
  }
  func.func @transform_4(%arg0: i32, %arg1: i32, %arg2: i32) -> (i32, i32) {
    %c0_i32 = arith.constant 0 : i32
    return %arg0, %arg1 : i32, i32
  }
}

module attributes {stable_mosaic.version = 11 : i64} {
  func.func @_gap_kernel(%arg0: i32, %arg1: memref<2x16x64xbf16, #tpu.memory_space<vmem>>, %arg2: memref<2x1x64xbf16, #tpu.memory_space<vmem>>, %arg3: memref<2x1x64xf32, #tpu.memory_space<vmem>>) attributes {dimension_semantics = [#tpu.dimension_semantics<arbitrary>], iteration_bounds = array<i64: 1>, scalar_prefetch = 0 : i64, scratch_operands = 1 : i64, tpu.core_type = #tpu.core_type<tc>, window_params = [{transform_indices = @transform_0, window_bounds = array<i64: 2, 16, 64>}, {pipeline_mode = #tpu.pipeline_mode<synchronous>, transform_indices = @transform_1, window_bounds = array<i64: 2, 1, 64>}]} {
    %c0_i32 = arith.constant 0 : i32
    %0 = arith.cmpi eq, %arg0, %c0_i32 : i32
    %1 = arith.extui %0 : i1 to i32
    %c0_i32_0 = arith.constant 0 : i32
    %2 = arith.cmpi ne, %1, %c0_i32_0 : i32
    scf.if %2 {
      %cst_11 = arith.constant 0.000000e+00 : f32
      %13 = vector.broadcast %cst_11 : f32 to vector<2x1x64xf32>
      %c0_12 = arith.constant 0 : index
      %c0_13 = arith.constant 0 : index
      %c0_14 = arith.constant 0 : index
      %14 = vector.load %arg3[%c0_12, %c0_13, %c0_14] : memref<2x1x64xf32, #tpu.memory_space<vmem>>, vector<2x1x64xf32>
      tpu.vector_store %arg3[%c0_12, %c0_13, %c0_14], %13 {strides = array<i32>} : memref<2x1x64xf32, #tpu.memory_space<vmem>>, vector<2x1x64xf32>,
    } else {
    }
    %c0 = arith.constant 0 : index
    %c0_1 = arith.constant 0 : index
    %c0_2 = arith.constant 0 : index
    %3 = vector.load %arg3[%c0, %c0_1, %c0_2] : memref<2x1x64xf32, #tpu.memory_space<vmem>>, vector<2x1x64xf32>
    %c0_3 = arith.constant 0 : index
    %c0_4 = arith.constant 0 : index
    %c0_5 = arith.constant 0 : index
    %4 = vector.load %arg1[%c0_3, %c0_4, %c0_5] : memref<2x16x64xbf16, #tpu.memory_space<vmem>>, vector<2x16x64xbf16>
    %5 = arith.extf %4 : vector<2x16x64xbf16> to vector<2x16x64xf32>
    %cst = arith.constant dense<0.000000e+00> : vector<2x64xf32>
    %6 = vector.multi_reduction <add>, %5, %cst [1] : vector<2x16x64xf32> to vector<2x64xf32>
    %7 = vector.shape_cast %6 : vector<2x64xf32> to vector<2x1x64xf32>
    %8 = arith.addf %3, %7 : vector<2x1x64xf32>
    %c0_6 = arith.constant 0 : index
    %c0_7 = arith.constant 0 : index
    %c0_8 = arith.constant 0 : index
    %9 = vector.load %arg3[%c0_6, %c0_7, %c0_8] : memref<2x1x64xf32, #tpu.memory_space<vmem>>, vector<2x1x64xf32>
    tpu.vector_store %arg3[%c0_6, %c0_7, %c0_8], %8 {strides = array<i32>} : memref<2x1x64xf32, #tpu.memory_space<vmem>>, vector<2x1x64xf32>,
    %c0_i32_9 = arith.constant 0 : i32
    %10 = arith.cmpi eq, %arg0, %c0_i32_9 : i32
    %11 = arith.extui %10 : i1 to i32
    %c0_i32_10 = arith.constant 0 : i32
    %12 = arith.cmpi ne, %11, %c0_i32_10 : i32
    scf.if %12 {
      %c0_11 = arith.constant 0 : index
      %c0_12 = arith.constant 0 : index
      %c0_13 = arith.constant 0 : index
      %13 = vector.load %arg3[%c0_11, %c0_12, %c0_13] : memref<2x1x64xf32, #tpu.memory_space<vmem>>, vector<2x1x64xf32>
      %cst_14 = arith.constant 2.500000e-01 : f32
      %14 = vector.broadcast %cst_14 : f32 to vector<2x1x64xf32>
      %15 = arith.mulf %13, %14 : vector<2x1x64xf32>
      %16 = arith.truncf %15 : vector<2x1x64xf32> to vector<2x1x64xbf16>
      %c0_15 = arith.constant 0 : index
      %c0_16 = arith.constant 0 : index
      %c0_17 = arith.constant 0 : index
      %17 = vector.load %arg2[%c0_15, %c0_16, %c0_17] : memref<2x1x64xbf16, #tpu.memory_space<vmem>>, vector<2x1x64xbf16>
      tpu.vector_store %arg2[%c0_15, %c0_16, %c0_17], %16 {strides = array<i32>} : memref<2x1x64xbf16, #tpu.memory_space<vmem>>, vector<2x1x64xbf16>,
    } else {
    }
    return
  }
  func.func @transform_0(%arg0: i32) -> (i32, i32, i32) {
    %c0_i32 = arith.constant 0 : i32
    %c0_i32_0 = arith.constant 0 : i32
    %c0_i32_1 = arith.constant 0 : i32
    return %c0_i32, %arg0, %c0_i32_0 : i32, i32, i32
  }
  func.func @transform_1(%arg0: i32) -> (i32, i32, i32) {
    %c0_i32 = arith.constant 0 : i32
    %c0_i32_0 = arith.constant 0 : i32
    %c0_i32_1 = arith.constant 0 : i32
    %c0_i32_2 = arith.constant 0 : i32
    return %c0_i32, %c0_i32_0, %c0_i32_1 : i32, i32, i32
  }
}

module attributes {stable_mosaic.version = 11 : i64} {
  func.func @_mm_bn_kernel(%arg0: i32, %arg1: i32, %arg2: i32, %arg3: memref<16x640xbf16, #tpu.memory_space<vmem>>, %arg4: memref<640x128xbf16, #tpu.memory_space<vmem>>, %arg5: memref<1x128xf32, #tpu.memory_space<vmem>>, %arg6: memref<1x128xf32, #tpu.memory_space<vmem>>, %arg7: memref<16x128xbf16, #tpu.memory_space<vmem>>, %arg8: memref<16x128xf32, #tpu.memory_space<vmem>>) attributes {dimension_semantics = [#tpu.dimension_semantics<parallel>, #tpu.dimension_semantics<parallel>, #tpu.dimension_semantics<arbitrary>], iteration_bounds = array<i64: 1, 1, 1>, scalar_prefetch = 0 : i64, scratch_operands = 1 : i64, tpu.core_type = #tpu.core_type<tc>, window_params = [{transform_indices = @transform_0, window_bounds = array<i64: 16, 640>}, {transform_indices = @transform_1, window_bounds = array<i64: 640, 128>}, {transform_indices = @transform_2, window_bounds = array<i64: 1, 128>}, {transform_indices = @transform_3, window_bounds = array<i64: 1, 128>}, {transform_indices = @transform_4, window_bounds = array<i64: 16, 128>}]} {
    %c0_i32 = arith.constant 0 : i32
    %0 = arith.cmpi eq, %arg2, %c0_i32 : i32
    %1 = arith.extui %0 : i1 to i32
    %c0_i32_0 = arith.constant 0 : i32
    %2 = arith.cmpi ne, %1, %c0_i32_0 : i32
    scf.if %2 {
      %cst_10 = arith.constant 0.000000e+00 : f32
      %12 = vector.broadcast %cst_10 : f32 to vector<16x128xf32>
      %c0_11 = arith.constant 0 : index
      %c0_12 = arith.constant 0 : index
      %13 = vector.load %arg8[%c0_11, %c0_12] : memref<16x128xf32, #tpu.memory_space<vmem>>, vector<16x128xf32>
      tpu.vector_store %arg8[%c0_11, %c0_12], %12 {strides = array<i32>} : memref<16x128xf32, #tpu.memory_space<vmem>>, vector<16x128xf32>,
    } else {
    }
    %c0 = arith.constant 0 : index
    %c0_1 = arith.constant 0 : index
    %3 = vector.load %arg8[%c0, %c0_1] : memref<16x128xf32, #tpu.memory_space<vmem>>, vector<16x128xf32>
    %c0_2 = arith.constant 0 : index
    %c0_3 = arith.constant 0 : index
    %4 = vector.load %arg3[%c0_2, %c0_3] : memref<16x640xbf16, #tpu.memory_space<vmem>>, vector<16x640xbf16>
    %c0_4 = arith.constant 0 : index
    %c0_5 = arith.constant 0 : index
    %5 = vector.load %arg4[%c0_4, %c0_5] : memref<640x128xbf16, #tpu.memory_space<vmem>>, vector<640x128xbf16>
    %cst = arith.constant dense<0.000000e+00> : vector<16x128xf32>
    %6 = tpu.matmul %4, %5, %cst {dimension_numbers = #tpu.dot_dimension_numbers<[1], [0], [0], [1], [0, 0, 1, 1], [], []>} : vector<16x640xbf16>, vector<640x128xbf16>, vector<16x128xf32> -> vector<16x128xf32>
    %7 = arith.addf %3, %6 : vector<16x128xf32>
    %c0_6 = arith.constant 0 : index
    %c0_7 = arith.constant 0 : index
    %8 = vector.load %arg8[%c0_6, %c0_7] : memref<16x128xf32, #tpu.memory_space<vmem>>, vector<16x128xf32>
    tpu.vector_store %arg8[%c0_6, %c0_7], %7 {strides = array<i32>} : memref<16x128xf32, #tpu.memory_space<vmem>>, vector<16x128xf32>,
    %c0_i32_8 = arith.constant 0 : i32
    %9 = arith.cmpi eq, %arg2, %c0_i32_8 : i32
    %10 = arith.extui %9 : i1 to i32
    %c0_i32_9 = arith.constant 0 : i32
    %11 = arith.cmpi ne, %10, %c0_i32_9 : i32
    scf.if %11 {
      %c0_10 = arith.constant 0 : index
      %c0_11 = arith.constant 0 : index
      %12 = vector.load %arg8[%c0_10, %c0_11] : memref<16x128xf32, #tpu.memory_space<vmem>>, vector<16x128xf32>
      %c0_12 = arith.constant 0 : index
      %c0_13 = arith.constant 0 : index
      %13 = vector.load %arg5[%c0_12, %c0_13] : memref<1x128xf32, #tpu.memory_space<vmem>>, vector<1x128xf32>
      %14 = vector.broadcast %13 : vector<1x128xf32> to vector<16x128xf32>
      %15 = arith.mulf %12, %14 : vector<16x128xf32>
      %c0_14 = arith.constant 0 : index
      %c0_15 = arith.constant 0 : index
      %16 = vector.load %arg6[%c0_14, %c0_15] : memref<1x128xf32, #tpu.memory_space<vmem>>, vector<1x128xf32>
      %17 = vector.broadcast %16 : vector<1x128xf32> to vector<16x128xf32>
      %18 = arith.addf %15, %17 : vector<16x128xf32>
      %cst_16 = arith.constant 0.000000e+00 : f32
      %19 = vector.broadcast %cst_16 : f32 to vector<16x128xf32>
      %20 = arith.maximumf %18, %19 : vector<16x128xf32>
      %21 = arith.truncf %20 : vector<16x128xf32> to vector<16x128xbf16>
      %c0_17 = arith.constant 0 : index
      %c0_18 = arith.constant 0 : index
      %22 = vector.load %arg7[%c0_17, %c0_18] : memref<16x128xbf16, #tpu.memory_space<vmem>>, vector<16x128xbf16>
      tpu.vector_store %arg7[%c0_17, %c0_18], %21 {strides = array<i32>} : memref<16x128xbf16, #tpu.memory_space<vmem>>, vector<16x128xbf16>,
    } else {
    }
    return
  }
  func.func @transform_0(%arg0: i32, %arg1: i32, %arg2: i32) -> (i32, i32) {
    %c0_i32 = arith.constant 0 : i32
    return %arg0, %arg2 : i32, i32
  }
  func.func @transform_1(%arg0: i32, %arg1: i32, %arg2: i32) -> (i32, i32) {
    %c0_i32 = arith.constant 0 : i32
    return %arg2, %arg1 : i32, i32
  }
  func.func @transform_2(%arg0: i32, %arg1: i32, %arg2: i32) -> (i32, i32) {
    %c0_i32 = arith.constant 0 : i32
    %c0_i32_0 = arith.constant 0 : i32
    return %c0_i32, %arg1 : i32, i32
  }
  func.func @transform_3(%arg0: i32, %arg1: i32, %arg2: i32) -> (i32, i32) {
    %c0_i32 = arith.constant 0 : i32
    %c0_i32_0 = arith.constant 0 : i32
    return %c0_i32, %arg1 : i32, i32
  }
  func.func @transform_4(%arg0: i32, %arg1: i32, %arg2: i32) -> (i32, i32) {
    %c0_i32 = arith.constant 0 : i32
    return %arg0, %arg1 : i32, i32
  }
}

module attributes {stable_mosaic.version = 11 : i64} {
  func.func @_mm_bn_kernel(%arg0: i32, %arg1: i32, %arg2: i32, %arg3: memref<16x128xbf16, #tpu.memory_space<vmem>>, %arg4: memref<128x128xbf16, #tpu.memory_space<vmem>>, %arg5: memref<1x128xf32, #tpu.memory_space<vmem>>, %arg6: memref<1x128xf32, #tpu.memory_space<vmem>>, %arg7: memref<16x128xbf16, #tpu.memory_space<vmem>>, %arg8: memref<16x128xf32, #tpu.memory_space<vmem>>) attributes {dimension_semantics = [#tpu.dimension_semantics<parallel>, #tpu.dimension_semantics<parallel>, #tpu.dimension_semantics<arbitrary>], iteration_bounds = array<i64: 1, 1, 1>, scalar_prefetch = 0 : i64, scratch_operands = 1 : i64, tpu.core_type = #tpu.core_type<tc>, window_params = [{transform_indices = @transform_0, window_bounds = array<i64: 16, 128>}, {transform_indices = @transform_1, window_bounds = array<i64: 128, 128>}, {transform_indices = @transform_2, window_bounds = array<i64: 1, 128>}, {transform_indices = @transform_3, window_bounds = array<i64: 1, 128>}, {transform_indices = @transform_4, window_bounds = array<i64: 16, 128>}]} {
    %c0_i32 = arith.constant 0 : i32
    %0 = arith.cmpi eq, %arg2, %c0_i32 : i32
    %1 = arith.extui %0 : i1 to i32
    %c0_i32_0 = arith.constant 0 : i32
    %2 = arith.cmpi ne, %1, %c0_i32_0 : i32
    scf.if %2 {
      %cst_10 = arith.constant 0.000000e+00 : f32
      %12 = vector.broadcast %cst_10 : f32 to vector<16x128xf32>
      %c0_11 = arith.constant 0 : index
      %c0_12 = arith.constant 0 : index
      %13 = vector.load %arg8[%c0_11, %c0_12] : memref<16x128xf32, #tpu.memory_space<vmem>>, vector<16x128xf32>
      tpu.vector_store %arg8[%c0_11, %c0_12], %12 {strides = array<i32>} : memref<16x128xf32, #tpu.memory_space<vmem>>, vector<16x128xf32>,
    } else {
    }
    %c0 = arith.constant 0 : index
    %c0_1 = arith.constant 0 : index
    %3 = vector.load %arg8[%c0, %c0_1] : memref<16x128xf32, #tpu.memory_space<vmem>>, vector<16x128xf32>
    %c0_2 = arith.constant 0 : index
    %c0_3 = arith.constant 0 : index
    %4 = vector.load %arg3[%c0_2, %c0_3] : memref<16x128xbf16, #tpu.memory_space<vmem>>, vector<16x128xbf16>
    %c0_4 = arith.constant 0 : index
    %c0_5 = arith.constant 0 : index
    %5 = vector.load %arg4[%c0_4, %c0_5] : memref<128x128xbf16, #tpu.memory_space<vmem>>, vector<128x128xbf16>
    %cst = arith.constant dense<0.000000e+00> : vector<16x128xf32>
    %6 = tpu.matmul %4, %5, %cst {dimension_numbers = #tpu.dot_dimension_numbers<[1], [0], [0], [1], [0, 0, 1, 1], [], []>} : vector<16x128xbf16>, vector<128x128xbf16>, vector<16x128xf32> -> vector<16x128xf32>
    %7 = arith.addf %3, %6 : vector<16x128xf32>
    %c0_6 = arith.constant 0 : index
    %c0_7 = arith.constant 0 : index
    %8 = vector.load %arg8[%c0_6, %c0_7] : memref<16x128xf32, #tpu.memory_space<vmem>>, vector<16x128xf32>
    tpu.vector_store %arg8[%c0_6, %c0_7], %7 {strides = array<i32>} : memref<16x128xf32, #tpu.memory_space<vmem>>, vector<16x128xf32>,
    %c0_i32_8 = arith.constant 0 : i32
    %9 = arith.cmpi eq, %arg2, %c0_i32_8 : i32
    %10 = arith.extui %9 : i1 to i32
    %c0_i32_9 = arith.constant 0 : i32
    %11 = arith.cmpi ne, %10, %c0_i32_9 : i32
    scf.if %11 {
      %c0_10 = arith.constant 0 : index
      %c0_11 = arith.constant 0 : index
      %12 = vector.load %arg8[%c0_10, %c0_11] : memref<16x128xf32, #tpu.memory_space<vmem>>, vector<16x128xf32>
      %c0_12 = arith.constant 0 : index
      %c0_13 = arith.constant 0 : index
      %13 = vector.load %arg5[%c0_12, %c0_13] : memref<1x128xf32, #tpu.memory_space<vmem>>, vector<1x128xf32>
      %14 = vector.broadcast %13 : vector<1x128xf32> to vector<16x128xf32>
      %15 = arith.mulf %12, %14 : vector<16x128xf32>
      %c0_14 = arith.constant 0 : index
      %c0_15 = arith.constant 0 : index
      %16 = vector.load %arg6[%c0_14, %c0_15] : memref<1x128xf32, #tpu.memory_space<vmem>>, vector<1x128xf32>
      %17 = vector.broadcast %16 : vector<1x128xf32> to vector<16x128xf32>
      %18 = arith.addf %15, %17 : vector<16x128xf32>
      %cst_16 = arith.constant 0.000000e+00 : f32
      %19 = vector.broadcast %cst_16 : f32 to vector<16x128xf32>
      %20 = arith.maximumf %18, %19 : vector<16x128xf32>
      %21 = arith.truncf %20 : vector<16x128xf32> to vector<16x128xbf16>
      %c0_17 = arith.constant 0 : index
      %c0_18 = arith.constant 0 : index
      %22 = vector.load %arg7[%c0_17, %c0_18] : memref<16x128xbf16, #tpu.memory_space<vmem>>, vector<16x128xbf16>
      tpu.vector_store %arg7[%c0_17, %c0_18], %21 {strides = array<i32>} : memref<16x128xbf16, #tpu.memory_space<vmem>>, vector<16x128xbf16>,
    } else {
    }
    return
  }
  func.func @transform_0(%arg0: i32, %arg1: i32, %arg2: i32) -> (i32, i32) {
    %c0_i32 = arith.constant 0 : i32
    return %arg0, %arg2 : i32, i32
  }
  func.func @transform_1(%arg0: i32, %arg1: i32, %arg2: i32) -> (i32, i32) {
    %c0_i32 = arith.constant 0 : i32
    return %arg2, %arg1 : i32, i32
  }
  func.func @transform_2(%arg0: i32, %arg1: i32, %arg2: i32) -> (i32, i32) {
    %c0_i32 = arith.constant 0 : i32
    %c0_i32_0 = arith.constant 0 : i32
    return %c0_i32, %arg1 : i32, i32
  }
  func.func @transform_3(%arg0: i32, %arg1: i32, %arg2: i32) -> (i32, i32) {
    %c0_i32 = arith.constant 0 : i32
    %c0_i32_0 = arith.constant 0 : i32
    return %c0_i32, %arg1 : i32, i32
  }
  func.func @transform_4(%arg0: i32, %arg1: i32, %arg2: i32) -> (i32, i32) {
    %c0_i32 = arith.constant 0 : i32
    return %arg0, %arg1 : i32, i32
  }
}

module attributes {stable_mosaic.version = 11 : i64} {
  func.func @_aspp_proj_kernel(%arg0: i32, %arg1: i32, %arg2: memref<16x32xbf16, #tpu.memory_space<vmem>>, %arg3: memref<16x32xbf16, #tpu.memory_space<vmem>>, %arg4: memref<16x32xbf16, #tpu.memory_space<vmem>>, %arg5: memref<16x32xbf16, #tpu.memory_space<vmem>>, %arg6: memref<16x32xbf16, #tpu.memory_space<vmem>>, %arg7: memref<32x128xbf16, #tpu.memory_space<vmem>>, %arg8: memref<32x128xbf16, #tpu.memory_space<vmem>>, %arg9: memref<32x128xbf16, #tpu.memory_space<vmem>>, %arg10: memref<32x128xbf16, #tpu.memory_space<vmem>>, %arg11: memref<32x128xbf16, #tpu.memory_space<vmem>>, %arg12: memref<1x128xf32, #tpu.memory_space<vmem>>, %arg13: memref<1x128xf32, #tpu.memory_space<vmem>>, %arg14: memref<16x128xbf16, #tpu.memory_space<vmem>>) attributes {dimension_semantics = [#tpu.dimension_semantics<parallel>, #tpu.dimension_semantics<parallel>], iteration_bounds = array<i64: 1, 1>, scalar_prefetch = 0 : i64, scratch_operands = 0 : i64, tpu.core_type = #tpu.core_type<tc>, window_params = [{transform_indices = @transform_0, window_bounds = array<i64: 16, 32>}, {transform_indices = @transform_1, window_bounds = array<i64: 16, 32>}, {transform_indices = @transform_2, window_bounds = array<i64: 16, 32>}, {transform_indices = @transform_3, window_bounds = array<i64: 16, 32>}, {transform_indices = @transform_4, window_bounds = array<i64: 16, 32>}, {transform_indices = @transform_5, window_bounds = array<i64: 32, 128>}, {transform_indices = @transform_6, window_bounds = array<i64: 32, 128>}, {transform_indices = @transform_7, window_bounds = array<i64: 32, 128>}, {transform_indices = @transform_8, window_bounds = array<i64: 32, 128>}, {transform_indices = @transform_9, window_bounds = array<i64: 32, 128>}, {transform_indices = @transform_10, window_bounds = array<i64: 1, 128>}, {transform_indices = @transform_11, window_bounds = array<i64: 1, 128>}, {transform_indices = @transform_12, window_bounds = array<i64: 16, 128>}]} {
    %c0 = arith.constant 0 : index
    %c0_0 = arith.constant 0 : index
    %0 = vector.load %arg2[%c0, %c0_0] : memref<16x32xbf16, #tpu.memory_space<vmem>>, vector<16x32xbf16>
    %c0_1 = arith.constant 0 : index
    %c0_2 = arith.constant 0 : index
    %1 = vector.load %arg7[%c0_1, %c0_2] : memref<32x128xbf16, #tpu.memory_space<vmem>>, vector<32x128xbf16>
    %cst = arith.constant dense<0.000000e+00> : vector<16x128xf32>
    %2 = tpu.matmul %0, %1, %cst {dimension_numbers = #tpu.dot_dimension_numbers<[1], [0], [0], [1], [0, 0, 1, 1], [], []>} : vector<16x32xbf16>, vector<32x128xbf16>, vector<16x128xf32> -> vector<16x128xf32>
    %c0_3 = arith.constant 0 : index
    %c0_4 = arith.constant 0 : index
    %3 = vector.load %arg3[%c0_3, %c0_4] : memref<16x32xbf16, #tpu.memory_space<vmem>>, vector<16x32xbf16>
    %c0_5 = arith.constant 0 : index
    %c0_6 = arith.constant 0 : index
    %4 = vector.load %arg8[%c0_5, %c0_6] : memref<32x128xbf16, #tpu.memory_space<vmem>>, vector<32x128xbf16>
    %cst_7 = arith.constant dense<0.000000e+00> : vector<16x128xf32>
    %5 = tpu.matmul %3, %4, %cst_7 {dimension_numbers = #tpu.dot_dimension_numbers<[1], [0], [0], [1], [0, 0, 1, 1], [], []>} : vector<16x32xbf16>, vector<32x128xbf16>, vector<16x128xf32> -> vector<16x128xf32>
    %6 = arith.addf %2, %5 : vector<16x128xf32>
    %c0_8 = arith.constant 0 : index
    %c0_9 = arith.constant 0 : index
    %7 = vector.load %arg4[%c0_8, %c0_9] : memref<16x32xbf16, #tpu.memory_space<vmem>>, vector<16x32xbf16>
    %c0_10 = arith.constant 0 : index
    %c0_11 = arith.constant 0 : index
    %8 = vector.load %arg9[%c0_10, %c0_11] : memref<32x128xbf16, #tpu.memory_space<vmem>>, vector<32x128xbf16>
    %cst_12 = arith.constant dense<0.000000e+00> : vector<16x128xf32>
    %9 = tpu.matmul %7, %8, %cst_12 {dimension_numbers = #tpu.dot_dimension_numbers<[1], [0], [0], [1], [0, 0, 1, 1], [], []>} : vector<16x32xbf16>, vector<32x128xbf16>, vector<16x128xf32> -> vector<16x128xf32>
    %10 = arith.addf %6, %9 : vector<16x128xf32>
    %c0_13 = arith.constant 0 : index
    %c0_14 = arith.constant 0 : index
    %11 = vector.load %arg5[%c0_13, %c0_14] : memref<16x32xbf16, #tpu.memory_space<vmem>>, vector<16x32xbf16>
    %c0_15 = arith.constant 0 : index
    %c0_16 = arith.constant 0 : index
    %12 = vector.load %arg10[%c0_15, %c0_16] : memref<32x128xbf16, #tpu.memory_space<vmem>>, vector<32x128xbf16>
    %cst_17 = arith.constant dense<0.000000e+00> : vector<16x128xf32>
    %13 = tpu.matmul %11, %12, %cst_17 {dimension_numbers = #tpu.dot_dimension_numbers<[1], [0], [0], [1], [0, 0, 1, 1], [], []>} : vector<16x32xbf16>, vector<32x128xbf16>, vector<16x128xf32> -> vector<16x128xf32>
    %14 = arith.addf %10, %13 : vector<16x128xf32>
    %c0_18 = arith.constant 0 : index
    %c0_19 = arith.constant 0 : index
    %15 = vector.load %arg6[%c0_18, %c0_19] : memref<16x32xbf16, #tpu.memory_space<vmem>>, vector<16x32xbf16>
    %c0_20 = arith.constant 0 : index
    %c0_21 = arith.constant 0 : index
    %16 = vector.load %arg11[%c0_20, %c0_21] : memref<32x128xbf16, #tpu.memory_space<vmem>>, vector<32x128xbf16>
    %cst_22 = arith.constant dense<0.000000e+00> : vector<16x128xf32>
    %17 = tpu.matmul %15, %16, %cst_22 {dimension_numbers = #tpu.dot_dimension_numbers<[1], [0], [0], [1], [0, 0, 1, 1], [], []>} : vector<16x32xbf16>, vector<32x128xbf16>, vector<16x128xf32> -> vector<16x128xf32>
    %18 = arith.addf %14, %17 : vector<16x128xf32>
    %c0_23 = arith.constant 0 : index
    %c0_24 = arith.constant 0 : index
    %19 = vector.load %arg12[%c0_23, %c0_24] : memref<1x128xf32, #tpu.memory_space<vmem>>, vector<1x128xf32>
    %20 = vector.broadcast %19 : vector<1x128xf32> to vector<16x128xf32>
    %21 = arith.mulf %18, %20 : vector<16x128xf32>
    %c0_25 = arith.constant 0 : index
    %c0_26 = arith.constant 0 : index
    %22 = vector.load %arg13[%c0_25, %c0_26] : memref<1x128xf32, #tpu.memory_space<vmem>>, vector<1x128xf32>
    %23 = vector.broadcast %22 : vector<1x128xf32> to vector<16x128xf32>
    %24 = arith.addf %21, %23 : vector<16x128xf32>
    %cst_27 = arith.constant 0.000000e+00 : f32
    %25 = vector.broadcast %cst_27 : f32 to vector<16x128xf32>
    %26 = arith.maximumf %24, %25 : vector<16x128xf32>
    %27 = arith.truncf %26 : vector<16x128xf32> to vector<16x128xbf16>
    %c0_28 = arith.constant 0 : index
    %c0_29 = arith.constant 0 : index
    %28 = vector.load %arg14[%c0_28, %c0_29] : memref<16x128xbf16, #tpu.memory_space<vmem>>, vector<16x128xbf16>
    tpu.vector_store %arg14[%c0_28, %c0_29], %27 {strides = array<i32>} : memref<16x128xbf16, #tpu.memory_space<vmem>>, vector<16x128xbf16>,
    return
  }
  func.func @transform_0(%arg0: i32, %arg1: i32) -> (i32, i32) {
    %c0_i32 = arith.constant 0 : i32
    %c0_i32_0 = arith.constant 0 : i32
    return %arg0, %c0_i32 : i32, i32
  }
  func.func @transform_1(%arg0: i32, %arg1: i32) -> (i32, i32) {
    %c0_i32 = arith.constant 0 : i32
    %c0_i32_0 = arith.constant 0 : i32
    return %arg0, %c0_i32 : i32, i32
  }
  func.func @transform_2(%arg0: i32, %arg1: i32) -> (i32, i32) {
    %c0_i32 = arith.constant 0 : i32
    %c0_i32_0 = arith.constant 0 : i32
    return %arg0, %c0_i32 : i32, i32
  }
  func.func @transform_3(%arg0: i32, %arg1: i32) -> (i32, i32) {
    %c0_i32 = arith.constant 0 : i32
    %c0_i32_0 = arith.constant 0 : i32
    return %arg0, %c0_i32 : i32, i32
  }
  func.func @transform_4(%arg0: i32, %arg1: i32) -> (i32, i32) {
    %c0_i32 = arith.constant 0 : i32
    %c0_i32_0 = arith.constant 0 : i32
    return %arg0, %c0_i32 : i32, i32
  }
  func.func @transform_5(%arg0: i32, %arg1: i32) -> (i32, i32) {
    %c0_i32 = arith.constant 0 : i32
    %c0_i32_0 = arith.constant 0 : i32
    return %c0_i32, %arg1 : i32, i32
  }
  func.func @transform_6(%arg0: i32, %arg1: i32) -> (i32, i32) {
    %c0_i32 = arith.constant 0 : i32
    %c0_i32_0 = arith.constant 0 : i32
    return %c0_i32, %arg1 : i32, i32
  }
  func.func @transform_7(%arg0: i32, %arg1: i32) -> (i32, i32) {
    %c0_i32 = arith.constant 0 : i32
    %c0_i32_0 = arith.constant 0 : i32
    return %c0_i32, %arg1 : i32, i32
  }
  func.func @transform_8(%arg0: i32, %arg1: i32) -> (i32, i32) {
    %c0_i32 = arith.constant 0 : i32
    %c0_i32_0 = arith.constant 0 : i32
    return %c0_i32, %arg1 : i32, i32
  }
  func.func @transform_9(%arg0: i32, %arg1: i32) -> (i32, i32) {
    %c0_i32 = arith.constant 0 : i32
    %c0_i32_0 = arith.constant 0 : i32
    return %c0_i32, %arg1 : i32, i32
  }
  func.func @transform_10(%arg0: i32, %arg1: i32) -> (i32, i32) {
    %c0_i32 = arith.constant 0 : i32
    %c0_i32_0 = arith.constant 0 : i32
    return %c0_i32, %arg1 : i32, i32
  }
  func.func @transform_11(%arg0: i32, %arg1: i32) -> (i32, i32) {
    %c0_i32 = arith.constant 0 : i32
    %c0_i32_0 = arith.constant 0 : i32
    return %c0_i32, %arg1 : i32, i32
  }
  func.func @transform_12(%arg0: i32, %arg1: i32) -> (i32, i32) {
    %c0_i32 = arith.constant 0 : i32
    return %arg0, %arg1 : i32, i32
  }
}

module attributes {stable_mosaic.version = 11 : i64} {
  func.func @_mm_bn_kernel(%arg0: i32, %arg1: i32, %arg2: i32, %arg3: memref<16x128xbf16, #tpu.memory_space<vmem>>, %arg4: memref<128x128xbf16, #tpu.memory_space<vmem>>, %arg5: memref<1x128xf32, #tpu.memory_space<vmem>>, %arg6: memref<1x128xf32, #tpu.memory_space<vmem>>, %arg7: memref<16x128xf32, #tpu.memory_space<vmem>>, %arg8: memref<16x128xf32, #tpu.memory_space<vmem>>) attributes {dimension_semantics = [#tpu.dimension_semantics<parallel>, #tpu.dimension_semantics<parallel>, #tpu.dimension_semantics<arbitrary>], iteration_bounds = array<i64: 1, 1, 1>, scalar_prefetch = 0 : i64, scratch_operands = 1 : i64, tpu.core_type = #tpu.core_type<tc>, window_params = [{transform_indices = @transform_0, window_bounds = array<i64: 16, 128>}, {transform_indices = @transform_1, window_bounds = array<i64: 128, 128>}, {transform_indices = @transform_2, window_bounds = array<i64: 1, 128>}, {transform_indices = @transform_3, window_bounds = array<i64: 1, 128>}, {transform_indices = @transform_4, window_bounds = array<i64: 16, 128>}]} {
    %c0_i32 = arith.constant 0 : i32
    %0 = arith.cmpi eq, %arg2, %c0_i32 : i32
    %1 = arith.extui %0 : i1 to i32
    %c0_i32_0 = arith.constant 0 : i32
    %2 = arith.cmpi ne, %1, %c0_i32_0 : i32
    scf.if %2 {
      %cst_10 = arith.constant 0.000000e+00 : f32
      %12 = vector.broadcast %cst_10 : f32 to vector<16x128xf32>
      %c0_11 = arith.constant 0 : index
      %c0_12 = arith.constant 0 : index
      %13 = vector.load %arg8[%c0_11, %c0_12] : memref<16x128xf32, #tpu.memory_space<vmem>>, vector<16x128xf32>
      tpu.vector_store %arg8[%c0_11, %c0_12], %12 {strides = array<i32>} : memref<16x128xf32, #tpu.memory_space<vmem>>, vector<16x128xf32>,
    } else {
    }
    %c0 = arith.constant 0 : index
    %c0_1 = arith.constant 0 : index
    %3 = vector.load %arg8[%c0, %c0_1] : memref<16x128xf32, #tpu.memory_space<vmem>>, vector<16x128xf32>
    %c0_2 = arith.constant 0 : index
    %c0_3 = arith.constant 0 : index
    %4 = vector.load %arg3[%c0_2, %c0_3] : memref<16x128xbf16, #tpu.memory_space<vmem>>, vector<16x128xbf16>
    %c0_4 = arith.constant 0 : index
    %c0_5 = arith.constant 0 : index
    %5 = vector.load %arg4[%c0_4, %c0_5] : memref<128x128xbf16, #tpu.memory_space<vmem>>, vector<128x128xbf16>
    %cst = arith.constant dense<0.000000e+00> : vector<16x128xf32>
    %6 = tpu.matmul %4, %5, %cst {dimension_numbers = #tpu.dot_dimension_numbers<[1], [0], [0], [1], [0, 0, 1, 1], [], []>} : vector<16x128xbf16>, vector<128x128xbf16>, vector<16x128xf32> -> vector<16x128xf32>
    %7 = arith.addf %3, %6 : vector<16x128xf32>
    %c0_6 = arith.constant 0 : index
    %c0_7 = arith.constant 0 : index
    %8 = vector.load %arg8[%c0_6, %c0_7] : memref<16x128xf32, #tpu.memory_space<vmem>>, vector<16x128xf32>
    tpu.vector_store %arg8[%c0_6, %c0_7], %7 {strides = array<i32>} : memref<16x128xf32, #tpu.memory_space<vmem>>, vector<16x128xf32>,
    %c0_i32_8 = arith.constant 0 : i32
    %9 = arith.cmpi eq, %arg2, %c0_i32_8 : i32
    %10 = arith.extui %9 : i1 to i32
    %c0_i32_9 = arith.constant 0 : i32
    %11 = arith.cmpi ne, %10, %c0_i32_9 : i32
    scf.if %11 {
      %c0_10 = arith.constant 0 : index
      %c0_11 = arith.constant 0 : index
      %12 = vector.load %arg8[%c0_10, %c0_11] : memref<16x128xf32, #tpu.memory_space<vmem>>, vector<16x128xf32>
      %c0_12 = arith.constant 0 : index
      %c0_13 = arith.constant 0 : index
      %13 = vector.load %arg5[%c0_12, %c0_13] : memref<1x128xf32, #tpu.memory_space<vmem>>, vector<1x128xf32>
      %14 = vector.broadcast %13 : vector<1x128xf32> to vector<16x128xf32>
      %15 = arith.mulf %12, %14 : vector<16x128xf32>
      %c0_14 = arith.constant 0 : index
      %c0_15 = arith.constant 0 : index
      %16 = vector.load %arg6[%c0_14, %c0_15] : memref<1x128xf32, #tpu.memory_space<vmem>>, vector<1x128xf32>
      %17 = vector.broadcast %16 : vector<1x128xf32> to vector<16x128xf32>
      %18 = arith.addf %15, %17 : vector<16x128xf32>
      %c0_16 = arith.constant 0 : index
      %c0_17 = arith.constant 0 : index
      %19 = vector.load %arg7[%c0_16, %c0_17] : memref<16x128xf32, #tpu.memory_space<vmem>>, vector<16x128xf32>
      tpu.vector_store %arg7[%c0_16, %c0_17], %18 {strides = array<i32>} : memref<16x128xf32, #tpu.memory_space<vmem>>, vector<16x128xf32>,
    } else {
    }
    return
  }
  func.func @transform_0(%arg0: i32, %arg1: i32, %arg2: i32) -> (i32, i32) {
    %c0_i32 = arith.constant 0 : i32
    return %arg0, %arg2 : i32, i32
  }
  func.func @transform_1(%arg0: i32, %arg1: i32, %arg2: i32) -> (i32, i32) {
    %c0_i32 = arith.constant 0 : i32
    return %arg2, %arg1 : i32, i32
  }
  func.func @transform_2(%arg0: i32, %arg1: i32, %arg2: i32) -> (i32, i32) {
    %c0_i32 = arith.constant 0 : i32
    %c0_i32_0 = arith.constant 0 : i32
    return %c0_i32, %arg1 : i32, i32
  }
  func.func @transform_3(%arg0: i32, %arg1: i32, %arg2: i32) -> (i32, i32) {
    %c0_i32 = arith.constant 0 : i32
    %c0_i32_0 = arith.constant 0 : i32
    return %c0_i32, %arg1 : i32, i32
  }
  func.func @transform_4(%arg0: i32, %arg1: i32, %arg2: i32) -> (i32, i32) {
    %c0_i32 = arith.constant 0 : i32
    return %arg0, %arg1 : i32, i32
  }
}

module attributes {stable_mosaic.version = 11 : i64} {
  func.func @_resize_h_kernel(%arg0: i32, %arg1: i32, %arg2: memref<16xi32, #tpu.memory_space<smem>>, %arg3: memref<16xi32, #tpu.memory_space<smem>>, %arg4: memref<1x1x1x48xf32, #tpu.memory_space<vmem>>, %arg5: memref<1x1x1x48xf32, #tpu.memory_space<vmem>>, %arg6: memref<16xf32, #tpu.memory_space<smem>>, %arg7: memref<1x1x1x48xf32, #tpu.memory_space<vmem>>) attributes {dimension_semantics = [#tpu.dimension_semantics<parallel>, #tpu.dimension_semantics<parallel>], iteration_bounds = array<i64: 2, 16>, scalar_prefetch = 2 : i64, scratch_operands = 0 : i64, tpu.core_type = #tpu.core_type<tc>, window_params = [{transform_indices = @transform_0, window_bounds = array<i64: 1, 1, 1, 48>}, {transform_indices = @transform_1, window_bounds = array<i64: 1, 1, 1, 48>}, {transform_indices = @transform_2, window_bounds = array<i64: 16>}, {transform_indices = @transform_3, window_bounds = array<i64: 1, 1, 1, 48>}]} {
    %0 = arith.index_cast %arg1 : i32 to index
    %1 = memref.load %arg6[%0] : memref<16xf32, #tpu.memory_space<smem>>
    %c0 = arith.constant 0 : index
    %c0_0 = arith.constant 0 : index
    %c0_1 = arith.constant 0 : index
    %c0_2 = arith.constant 0 : index
    %2 = vector.load %arg4[%c0, %c0_0, %c0_1, %c0_2] : memref<1x1x1x48xf32, #tpu.memory_space<vmem>>, vector<1x1x1x48xf32>
    %c0_3 = arith.constant 0 : index
    %c0_4 = arith.constant 0 : index
    %c0_5 = arith.constant 0 : index
    %c0_6 = arith.constant 0 : index
    %3 = vector.load %arg5[%c0_3, %c0_4, %c0_5, %c0_6] : memref<1x1x1x48xf32, #tpu.memory_space<vmem>>, vector<1x1x1x48xf32>
    %4 = arith.subf %3, %2 : vector<1x1x1x48xf32>
    %5 = vector.broadcast %1 : f32 to vector<1x1x1x48xf32>
    %6 = arith.mulf %4, %5 : vector<1x1x1x48xf32>
    %7 = arith.addf %2, %6 : vector<1x1x1x48xf32>
    %c0_7 = arith.constant 0 : index
    %c0_8 = arith.constant 0 : index
    %c0_9 = arith.constant 0 : index
    %c0_10 = arith.constant 0 : index
    %8 = vector.load %arg7[%c0_7, %c0_8, %c0_9, %c0_10] : memref<1x1x1x48xf32, #tpu.memory_space<vmem>>, vector<1x1x1x48xf32>
    tpu.vector_store %arg7[%c0_7, %c0_8, %c0_9, %c0_10], %7 {strides = array<i32>} : memref<1x1x1x48xf32, #tpu.memory_space<vmem>>, vector<1x1x1x48xf32>,
    return
  }
  func.func @transform_0(%arg0: i32, %arg1: i32, %arg2: memref<16xi32, #tpu.memory_space<smem>>, %arg3: memref<16xi32, #tpu.memory_space<smem>>) -> (i32, i32, i32, i32) {
    %0 = arith.index_cast %arg1 : i32 to index
    %1 = memref.load %arg2[%0] : memref<16xi32, #tpu.memory_space<smem>>
    %c0_i32 = arith.constant 0 : i32
    %c0_i32_0 = arith.constant 0 : i32
    %c0_i32_1 = arith.constant 0 : i32
    return %arg0, %1, %c0_i32, %c0_i32_0 : i32, i32, i32, i32
  }
  func.func @transform_1(%arg0: i32, %arg1: i32, %arg2: memref<16xi32, #tpu.memory_space<smem>>, %arg3: memref<16xi32, #tpu.memory_space<smem>>) -> (i32, i32, i32, i32) {
    %0 = arith.index_cast %arg1 : i32 to index
    %1 = memref.load %arg3[%0] : memref<16xi32, #tpu.memory_space<smem>>
    %c0_i32 = arith.constant 0 : i32
    %c0_i32_0 = arith.constant 0 : i32
    %c0_i32_1 = arith.constant 0 : i32
    return %arg0, %1, %c0_i32, %c0_i32_0 : i32, i32, i32, i32
  }
  func.func @transform_2(%arg0: i32, %arg1: i32, %arg2: memref<16xi32, #tpu.memory_space<smem>>, %arg3: memref<16xi32, #tpu.memory_space<smem>>) -> i32 {
    %c0_i32 = arith.constant 0 : i32
    %c0_i32_0 = arith.constant 0 : i32
    return %c0_i32 : i32
  }
  func.func @transform_3(%arg0: i32, %arg1: i32, %arg2: memref<16xi32, #tpu.memory_space<smem>>, %arg3: memref<16xi32, #tpu.memory_space<smem>>) -> (i32, i32, i32, i32) {
    %c0_i32 = arith.constant 0 : i32
    %c0_i32_0 = arith.constant 0 : i32
    %c0_i32_1 = arith.constant 0 : i32
    return %arg0, %arg1, %c0_i32, %c0_i32_0 : i32, i32, i32, i32
  }
}

</mosaic_0001>

<llo_original>
// kernel: deeplabv3_forward.15
$region0: #{deeplabv3_forward.15}
  #allocation0 [shape = 'u32[]', space=smem, size = 0x4, offset = 0x4, fixed_abs, tag = 'smem constant byte address 0x4 - core index']
  #allocation1 [shape = 'u32[144,128]{1,0:T(1,128)}', space=vmem, size = 0x12000, scoped, tag = 'internal scratch']
  %s0 = inlined_call_operand.vmem [shape: bf16[16,128], index: 0, kind: input, shape index: {}]
  %s1 = inlined_call_operand.vmem [shape: bf16[16,128], index: 1, kind: input, shape index: {}]
  %s2 = inlined_call_operand.vmem [shape: bf16[16,128], index: 2, kind: input, shape index: {}]
  %s3 = inlined_call_operand.vmem [shape: bf16[16,128], index: 3, kind: input, shape index: {}]
  %s4 = inlined_call_operand.vmem [shape: bf16[16,128], index: 4, kind: input, shape index: {}]
  %s5 = inlined_call_operand.vmem [shape: bf16[16,128], index: 5, kind: input, shape index: {}]
  %s6 = inlined_call_operand.vmem [shape: bf16[16,128], index: 6, kind: input, shape index: {}]
  %s7 = inlined_call_operand.vmem [shape: bf16[16,128], index: 7, kind: input, shape index: {}]
  %s8 = inlined_call_operand.vmem [shape: bf16[16,128], index: 8, kind: input, shape index: {}]
  %s9 = inlined_call_operand.vmem [shape: bf16[16,128], index: 9, kind: output, shape index: {}]
  %s10 = sld [smem:[#allocation0]]
  $region46: #{deeplabv3_forward.15} parent=0
    _
  %s12 = ssub.s32 1, %s10
  %s13 = scalar_select 0, %s12, %s10
  // Predicated region
  $region2: #{deeplabv3_forward.15} parent=0 // pred_check
    _
  $region3: #{deeplabv3_forward.15} parent=0 // pred_check_branch
    %15 = sbr.rel (0) target = $region5
  $region4: #{deeplabv3_forward.15} parent=0 // pred_region
    _
  $region5: #{deeplabv3_forward.15} parent=0 // pred_fallthru
    _
  // Predicated region
  $region6: #{deeplabv3_forward.15} parent=0 // pred_check
    _
  $region7: #{deeplabv3_forward.15} parent=0 // pred_check_branch
    %17 = sbr.rel (0) target = $region9
  $region8: #{deeplabv3_forward.15} parent=0 // pred_region
    _
  $region9: #{deeplabv3_forward.15} parent=0 // pred_fallthru
    _
  // Predicated region
  $region10: #{deeplabv3_forward.15} parent=0 // pred_check
    _
  $region11: #{deeplabv3_forward.15} parent=0 // pred_check_branch
    %19 = sbr.rel (0) target = $region13
  $region12: #{deeplabv3_forward.15} parent=0 // pred_region
    _
  $region13: #{deeplabv3_forward.15} parent=0 // pred_fallthru
    _
  // Predicated region
  $region14: #{deeplabv3_forward.15} parent=0 // pred_check
    _
  $region15: #{deeplabv3_forward.15} parent=0 // pred_check_branch
    %21 = sbr.rel (0) target = $region17
  $region16: #{deeplabv3_forward.15} parent=0 // pred_region
    _
  $region17: #{deeplabv3_forward.15} parent=0 // pred_fallthru
    _
  // Predicated region
  $region18: #{deeplabv3_forward.15} parent=0 // pred_check
    _
  $region19: #{deeplabv3_forward.15} parent=0 // pred_check_branch
    %23 = sbr.rel (0) target = $region21
  $region20: #{deeplabv3_forward.15} parent=0 // pred_region
    _
  $region21: #{deeplabv3_forward.15} parent=0 // pred_fallthru
    _
  // Predicated region
  $region22: #{deeplabv3_forward.15} parent=0 // pred_check
    _
  $region23: #{deeplabv3_forward.15} parent=0 // pred_check_branch
    %25 = sbr.rel (0) target = $region25
  $region24: #{deeplabv3_forward.15} parent=0 // pred_region
    _
  $region25: #{deeplabv3_forward.15} parent=0 // pred_fallthru
    _
  // Predicated region
  $region26: #{deeplabv3_forward.15} parent=0 // pred_check
    _
  $region27: #{deeplabv3_forward.15} parent=0 // pred_check_branch
    %27 = sbr.rel (0) target = $region29
  $region28: #{deeplabv3_forward.15} parent=0 // pred_region
    _
  $region29: #{deeplabv3_forward.15} parent=0 // pred_fallthru
    _
  // Predicated region
  $region30: #{deeplabv3_forward.15} parent=0 // pred_check
    _
  $region31: #{deeplabv3_forward.15} parent=0 // pred_check_branch
    %29 = sbr.rel (0) target = $region33
  $region32: #{deeplabv3_forward.15} parent=0 // pred_region
    _
  $region33: #{deeplabv3_forward.15} parent=0 // pred_fallthru
    _
  // Predicated region
  $region34: #{deeplabv3_forward.15} parent=0 // pred_check
    _
  $region35: #{deeplabv3_forward.15} parent=0 // pred_check_branch
    %31 = sbr.rel (0) target = $region37
  $region36: #{deeplabv3_forward.15} parent=0 // pred_region
    _
  $region37: #{deeplabv3_forward.15} parent=0 // pred_fallthru
    _
  %v32 = vld [vmem:[%s0] sm:$0xf]
  %v33 = vld [vmem:[%s0 + $0x4] sm:$0xf]
  %v34 = vld [vmem:[%s1] sm:$0xf]
  %v35 = vld [vmem:[%s1 + $0x4] sm:$0xf]
  %v36 = vmax.bf16 %v32, %v34
  %v37 = vmax.bf16 %v33, %v35
  %v38 = vld [vmem:[%s2] sm:$0xf]
  %v39 = vld [vmem:[%s2 + $0x4] sm:$0xf]
  %v40 = vmax.bf16 %v36, %v38
  %v41 = vmax.bf16 %v37, %v39
  %v42 = vld [vmem:[%s3] sm:$0xf]
  %v43 = vld [vmem:[%s3 + $0x4] sm:$0xf]
  %v44 = vmax.bf16 %v40, %v42
  %v45 = vmax.bf16 %v41, %v43
  %v46 = vld [vmem:[%s4] sm:$0xf]
  %v47 = vld [vmem:[%s4 + $0x4] sm:$0xf]
  %v48 = vmax.bf16 %v44, %v46
  %v49 = vmax.bf16 %v45, %v47
  %v50 = vld [vmem:[%s5] sm:$0xf]
  %v51 = vld [vmem:[%s5 + $0x4] sm:$0xf]
  %v52 = vmax.bf16 %v48, %v50
  %v53 = vmax.bf16 %v49, %v51
  %v54 = vld [vmem:[%s6] sm:$0xf]
  %v55 = vld [vmem:[%s6 + $0x4] sm:$0xf]
  %v56 = vmax.bf16 %v52, %v54
  %v57 = vmax.bf16 %v53, %v55
  %v58 = vld [vmem:[%s7] sm:$0xf]
  %v59 = vld [vmem:[%s7 + $0x4] sm:$0xf]
  %v60 = vmax.bf16 %v56, %v58
  %v61 = vmax.bf16 %v57, %v59
  %v62 = vld [vmem:[%s8] sm:$0xf]
  %v63 = vld [vmem:[%s8 + $0x4] sm:$0xf]
  %v64 = vmax.bf16 %v60, %v62
  %v65 = vmax.bf16 %v61, %v63
  %66 = vst [vmem:[%s9] sm:$0xf] %v64
  %67 = vst [vmem:[%s9 + $0x4] sm:$0xf] %v65
  // Predicated region
  $region38: #{deeplabv3_forward.15} parent=0 // pred_check
    _
  $region39: #{deeplabv3_forward.15} parent=0 // pred_check_branch
    %69 = sbr.rel (0) target = $region41
  $region40: #{deeplabv3_forward.15} parent=0 // pred_region
    _
  $region41: #{deeplabv3_forward.15} parent=0 // pred_fallthru
    _
  // Predicated region
  $region42: #{deeplabv3_forward.15} parent=0 // pred_check
    _
  $region43: #{deeplabv3_forward.15} parent=0 // pred_check_branch
    %71 = sbr.rel (0) target = $region45
  $region44: #{deeplabv3_forward.15} parent=0 // pred_region
    _
  $region45: #{deeplabv3_forward.15} parent=0 // pred_fallthru
    _

// kernel: deeplabv3_forward.16
$region0: #{deeplabv3_forward.16}
  #allocation0 [shape = 'u32[]', space=smem, size = 0x4, offset = 0x4, fixed_abs, tag = 'smem constant byte address 0x4 - core index']
  #allocation1 [shape = 'u32[144,128]{1,0:T(1,128)}', space=vmem, size = 0x12000, scoped, tag = 'internal scratch']
  #allocation2 [shape = 'f32[16,128]{1,0:T(8,128)}', space=vmem, size = 0x2000, scoped, tag = 'scratch operand']
  %s0 = inlined_call_operand.vmem [shape: bf16[32,256], index: 0, kind: input, shape index: {}]
  %s1 = inlined_call_operand.vmem [shape: bf16[256,128], index: 1, kind: input, shape index: {}]
  %s2 = inlined_call_operand.vmem [shape: f32[1,128], index: 2, kind: input, shape index: {}]
  %s3 = inlined_call_operand.vmem [shape: f32[1,128], index: 3, kind: input, shape index: {}]
  %s4 = inlined_call_operand.vmem [shape: bf16[32,128], index: 4, kind: output, shape index: {}]
  %s5 = sld [smem:[#allocation0]]
  $region57: #{deeplabv3_forward.16} parent=0
    _
  %s7 = ssub.s32 1, %s5
  %s8 = scalar_select 0, %s7, %s5
  loop: start=0, step=1, limit=4
  $region2: #{deeplabv3_forward.16} parent=0 // loop_pre_header
    _
  $region3: #{deeplabv3_forward.16} parent=0 // loop_header
    %s10 = sphi 0, %s14
    %p11 = scmp.ge.s32.totalorder %s10, 4
    %s17 = sphi 0, %s36
    %s18 = sphi 0, %s32
    %s19 = sphi 0, %s28
    %s20 = sphi 0, %s17
    %s21 = sphi 0, %s18
    %s22 = sphi 0, %s19
    %s23 = sphi 0, %s20
    %s24 = sphi 0, %s21
    %s25 = sphi 0, %s22
    %s41 = sphi 0, %s43
    %s44 = sphi 0, %s41
    %s45 = sphi 0, %s44
    %s61 = sphi 0, %s45
    %s69 = sphi 0, %s71
    %s72 = sphi 0, %s69
    %s73 = sphi 0, %s72
    %s89 = sphi 0, %s73
    %s95 = sphi 0, %s97
    %s98 = sphi 0, %s95
    %s99 = sphi 0, %s98
    %s115 = sphi 0, %s99
    %s121 = sphi 0, %s123
    %s124 = sphi 0, %s121
    %s125 = sphi 0, %s124
    %s141 = sphi 0, %s125
    %s149 = sphi 0, %s151
    %s152 = sphi 0, %s149
    %s153 = sphi 0, %s152
    %s169 = sphi 0, %s153
  $region4: #{deeplabv3_forward.16} parent=0 // loop_header_branch
    %13 = sbr.rel (%p11) target = $region8
  $region5: #{deeplabv3_forward.16} parent=0 // loop_body
    %s15 = ssub.s32 %s10, 1
    %s16 = ssub.s32 %s10, 2
    %s26 = sadd.s32 1, %s19
    %p27 = scmp.ge.s32.totalorder %s26, 1
    %s28 = scalar_select %p27, 0, %s26
    %s29 = sadd.s32 1, %s18
    %s30 = scalar_select %p27, %s29, %s18
    %p31 = scmp.ge.s32.totalorder %s30, 1
    %s32 = scalar_select %p31, 0, %s30
    %s33 = sadd.s32 1, %s17
    %s34 = scalar_select %p31, %s33, %s17
    %p35 = scmp.ge.s32.totalorder %s34, 2
    %s36 = scalar_select %p35, 0, %s34
    %s37 = ssub.s32 %s17, %s36
    %s38 = ssub.s32 %s19, %s28
    %s39 = sor.u32 %s37, %s38
    %p40 = scmp.eq.s32.totalorder %s39, 0
    %s42 = sadd.s32 %s41, 1
    %s43 = scalar_select %p40, %s41, %s42
    %p46 = pneg %p40
    %p47 = scmp.eq.s32.totalorder %s10, 1
    %p48 = por %p46, %p47
    %p49 = scmp.ne.s32.totalorder %s41, %s44
    %p50 = scmp.eq.s32.totalorder %s10, 0
    %p51 = por %p49, %p50
    %p52 = scmp.ne.s32.totalorder %s41, %s44
    %p53 = scmp.eq.s32.totalorder %s15, 1
    %p54 = por %p52, %p53
    %p55 = scmp.ne.s32.totalorder %s44, %s45
    %p56 = scmp.eq.s32.totalorder %s15, 0
    %p57 = por %p55, %p56
    %p58 = scmp.ne.s32.totalorder %s44, %s45
    %p59 = scmp.eq.s32.totalorder %s16, 1
    %p60 = por %p58, %p59
    %p62 = scmp.ne.s32.totalorder %s45, %s61
    %p63 = scmp.eq.s32.totalorder %s16, 0
    %p64 = por %p62, %p63
    %s65 = ssub.s32 %s19, %s28
    %s66 = ssub.s32 %s18, %s32
    %s67 = sor.u32 %s65, %s66
    %p68 = scmp.eq.s32.totalorder %s67, 0
    %s70 = sadd.s32 %s69, 1
    %s71 = scalar_select %p68, %s69, %s70
    %p74 = pneg %p68
    %p75 = scmp.eq.s32.totalorder %s10, 1
    %p76 = por %p74, %p75
    %p77 = scmp.ne.s32.totalorder %s69, %s72
    %p78 = scmp.eq.s32.totalorder %s10, 0
    %p79 = por %p77, %p78
    %p80 = scmp.ne.s32.totalorder %s69, %s72
    %p81 = scmp.eq.s32.totalorder %s15, 1
    %p82 = por %p80, %p81
    %p83 = scmp.ne.s32.totalorder %s72, %s73
    %p84 = scmp.eq.s32.totalorder %s15, 0
    %p85 = por %p83, %p84
    %p86 = scmp.ne.s32.totalorder %s72, %s73
    %p87 = scmp.eq.s32.totalorder %s16, 1
    %p88 = por %p86, %p87
    %p90 = scmp.ne.s32.totalorder %s73, %s89
    %p91 = scmp.eq.s32.totalorder %s16, 0
    %p92 = por %p90, %p91
    %s93 = ssub.s32 %s18, %s32
    %p94 = scmp.eq.s32.totalorder %s93, 0
    %s96 = sadd.s32 %s95, 1
    %s97 = scalar_select %p94, %s95, %s96
    %p100 = pneg %p94
    %p101 = scmp.eq.s32.totalorder %s10, 1
    %p102 = por %p100, %p101
    %p103 = scmp.ne.s32.totalorder %s95, %s98
    %p104 = scmp.eq.s32.totalorder %s10, 0
    %p105 = por %p103, %p104
    %p106 = scmp.ne.s32.totalorder %s95, %s98
    %p107 = scmp.eq.s32.totalorder %s15, 1
    %p108 = por %p106, %p107
    %p109 = scmp.ne.s32.totalorder %s98, %s99
    %p110 = scmp.eq.s32.totalorder %s15, 0
    %p111 = por %p109, %p110
    %p112 = scmp.ne.s32.totalorder %s98, %s99
    %p113 = scmp.eq.s32.totalorder %s16, 1
    %p114 = por %p112, %p113
    %p116 = scmp.ne.s32.totalorder %s99, %s115
    %p117 = scmp.eq.s32.totalorder %s16, 0
    %p118 = por %p116, %p117
    %s119 = ssub.s32 %s18, %s32
    %p120 = scmp.eq.s32.totalorder %s119, 0
    %s122 = sadd.s32 %s121, 1
    %s123 = scalar_select %p120, %s121, %s122
    %p126 = pneg %p120
    %p127 = scmp.eq.s32.totalorder %s10, 1
    %p128 = por %p126, %p127
    %p129 = scmp.ne.s32.totalorder %s121, %s124
    %p130 = scmp.eq.s32.totalorder %s10, 0
    %p131 = por %p129, %p130
    %p132 = scmp.ne.s32.totalorder %s121, %s124
    %p133 = scmp.eq.s32.totalorder %s15, 1
    %p134 = por %p132, %p133
    %p135 = scmp.ne.s32.totalorder %s124, %s125
    %p136 = scmp.eq.s32.totalorder %s15, 0
    %p137 = por %p135, %p136
    %p138 = scmp.ne.s32.totalorder %s124, %s125
    %p139 = scmp.eq.s32.totalorder %s16, 1
    %p140 = por %p138, %p139
    %p142 = scmp.ne.s32.totalorder %s125, %s141
    %p143 = scmp.eq.s32.totalorder %s16, 0
    %p144 = por %p142, %p143
    %s145 = ssub.s32 %s17, %s36
    %s146 = ssub.s32 %s18, %s32
    %s147 = sor.u32 %s145, %s146
    %p148 = scmp.eq.s32.totalorder %s147, 0
    %s150 = sadd.s32 %s149, 1
    %s151 = scalar_select %p148, %s149, %s150
    %p154 = pneg %p148
    %p155 = scmp.eq.s32.totalorder %s10, 1
    %p156 = por %p154, %p155
    %p157 = scmp.ne.s32.totalorder %s149, %s152
    %p158 = scmp.eq.s32.totalorder %s10, 0
    %p159 = por %p157, %p158
    %p160 = scmp.ne.s32.totalorder %s149, %s152
    %p161 = scmp.eq.s32.totalorder %s15, 1
    %p162 = por %p160, %p161
    %p163 = scmp.ne.s32.totalorder %s152, %s153
    %p164 = scmp.eq.s32.totalorder %s15, 0
    %p165 = por %p163, %p164
    %p166 = scmp.ne.s32.totalorder %s152, %s153
    %p167 = scmp.eq.s32.totalorder %s16, 1
    %p168 = por %p166, %p167
    %p170 = scmp.ne.s32.totalorder %s153, %s169
    %p171 = scmp.eq.s32.totalorder %s16, 0
    %p172 = por %p170, %p171
    %p173 = scmp.le.s32.totalorder 1, %s10
    %p174 = scmp.lt.s32.totalorder %s10, 3
    %p175 = pnand %p173, %p174
    %p176 = pneg %p175
    // Predicated region
    $region9: #{deeplabv3_forward.16} parent=5 // pred_check
      _
    $region10: #{deeplabv3_forward.16} parent=5 // pred_check_branch
      %178 = sbr.rel (%p175) target = $region12
    $region11: #{deeplabv3_forward.16} parent=5 // pred_region
      %s179 = ssub.s32 %s10, 1
      // Predicated region
      $region13: #{deeplabv3_forward.16} parent=11 // pred_check
        %p180 = pneg %p85
      $region14: #{deeplabv3_forward.16} parent=11 // pred_check_branch
        %182 = sbr.rel (%p180) target = $region16
      $region15: #{deeplabv3_forward.16} parent=11 // pred_region
        %s183 = smul.u32 32, %s22
        %p184 = scmp.lt.s32.totalorder %s183, 31
        %s185 = scalar_select %p184, %s183, 31
        %p186 = scmp.lt.s32.totalorder %s21, 0
        %s187 = scalar_select %p186, %s21, 0
        %s188 = sadd.s32 %s187, %s185
        %s189 = smul.addr %s188, 4
        %s190 = scalar_lea.vmem %s1, %s189
        %s191 = smul.u32 32, %s22
      $region16: #{deeplabv3_forward.16} parent=11 // pred_fallthru
        _
      // Predicated region
      $region17: #{deeplabv3_forward.16} parent=11 // pred_check
        %p192 = pneg %p111
      $region18: #{deeplabv3_forward.16} parent=11 // pred_check_branch
        %194 = sbr.rel (%p192) target = $region20
      $region19: #{deeplabv3_forward.16} parent=11 // pred_region
        %p195 = scmp.lt.s32.totalorder %s21, 0
        %s196 = scalar_select %p195, %s21, 0
        %s197 = scalar_lea.vmem %s2, %s196
      $region20: #{deeplabv3_forward.16} parent=11 // pred_fallthru
        _
      // Predicated region
      $region21: #{deeplabv3_forward.16} parent=11 // pred_check
        %p198 = pneg %p137
      $region22: #{deeplabv3_forward.16} parent=11 // pred_check_branch
        %200 = sbr.rel (%p198) target = $region24
      $region23: #{deeplabv3_forward.16} parent=11 // pred_region
        %p201 = scmp.lt.s32.totalorder %s21, 0
        %s202 = scalar_select %p201, %s21, 0
        %s203 = scalar_lea.vmem %s3, %s202
      $region24: #{deeplabv3_forward.16} parent=11 // pred_fallthru
        _
    $region12: #{deeplabv3_forward.16} parent=5 // pred_fallthru
      _
    %p204 = scmp.lt.s32.totalorder %s10, 2
    // Predicated region
    $region25: #{deeplabv3_forward.16} parent=5 // pred_check
      %p205 = pneg %p204
    $region26: #{deeplabv3_forward.16} parent=5 // pred_check_branch
      %207 = sbr.rel (%p205) target = $region28
    $region27: #{deeplabv3_forward.16} parent=5 // pred_region
      // Predicated region
      $region29: #{deeplabv3_forward.16} parent=27 // pred_check
        %p208 = pneg %p51
      $region30: #{deeplabv3_forward.16} parent=27 // pred_check_branch
        %210 = sbr.rel (%p208) target = $region32
      $region31: #{deeplabv3_forward.16} parent=27 // pred_region
        %s211 = smul.u32 2, %s17
        %s212 = smul.u32 2, %s19
        %p213 = scmp.lt.s32.totalorder %s211, 3
        %s214 = scalar_select %p213, %s211, 3
        %p215 = scmp.lt.s32.totalorder %s212, 1
        %s216 = scalar_select %p215, %s212, 1
        %s217 = smul.addr %s214, 2
        %s218 = sadd.s32 %s216, %s217
        %s219 = smul.addr %s218, 4
        %s220 = scalar_lea.vmem %s0, %s219
        %s221 = smul.u32 2, %s17
        %s222 = smul.u32 2, %s19
      $region32: #{deeplabv3_forward.16} parent=27 // pred_fallthru
        _
    $region28: #{deeplabv3_forward.16} parent=5 // pred_fallthru
      _
    %p223 = scmp.le.s32.totalorder 1, %s10
    %p224 = scmp.lt.s32.totalorder %s10, 3
    %p225 = pnand %p223, %p224
    %p226 = pneg %p225
    // Predicated region
    $region33: #{deeplabv3_forward.16} parent=5 // pred_check
      _
    $region34: #{deeplabv3_forward.16} parent=5 // pred_check_branch
      %228 = sbr.rel (%p225) target = $region36
    $region35: #{deeplabv3_forward.16} parent=5 // pred_region
      %s229 = ssub.s32 %s10, 1
      %s230 = smul.u32 2, %s20
      %s231 = smul.u32 2, %s22
      %p232 = scmp.lt.s32.totalorder %s230, 3
      %s233 = scalar_select %p232, %s230, 3
      %p234 = scmp.lt.s32.totalorder %s231, 1
      %s235 = scalar_select %p234, %s231, 1
      %s236 = smul.addr %s233, 2
      %s237 = sadd.s32 %s235, %s236
      %s238 = smul.addr %s237, 4
      %s239 = scalar_lea.vmem %s0, %s238
      %p240 = pneg %p57
      %p241 = pneg %p54
      %s242 = smul.u32 32, %s22
      %p243 = scmp.lt.s32.totalorder %s242, 31
      %s244 = scalar_select %p243, %s242, 31
      %p245 = scmp.lt.s32.totalorder %s21, 0
      %s246 = scalar_select %p245, %s21, 0
      %s247 = sadd.s32 %s246, %s244
      %s248 = smul.addr %s247, 4
      %s249 = scalar_lea.vmem %s1, %s248
      %p250 = pneg %p85
      %p251 = pneg %p82
      %p252 = scmp.lt.s32.totalorder %s21, 0
      %s253 = scalar_select %p252, %s21, 0
      %s254 = scalar_lea.vmem %s2, %s253
      %p255 = pneg %p111
      %p256 = pneg %p108
      %p257 = scmp.lt.s32.totalorder %s21, 0
      %s258 = scalar_select %p257, %s21, 0
      %s259 = scalar_lea.vmem %s3, %s258
      %p260 = pneg %p137
      %p261 = pneg %p134
      %p262 = pneg %p165
      %p263 = pneg %p162
      %s264 = smul.u32 2, %s20
      %p265 = scmp.lt.s32.totalorder %s264, 3
      %s266 = scalar_select %p265, %s264, 3
      %p267 = scmp.lt.s32.totalorder %s21, 0
      %s268 = scalar_select %p267, %s21, 0
      %s269 = sadd.s32 %s268, %s266
      %s270 = smul.addr %s269, 4
      %s271 = scalar_lea.vmem %s4, %s270
      %s272 = smul.u32 2, %s20
      %s273 = smul.u32 2, %s22
      %p274 = scmp.lt.s32.totalorder %s272, 3
      %s275 = scalar_select %p274, %s272, 3
      %p276 = scmp.lt.s32.totalorder %s273, 1
      %s277 = scalar_select %p276, %s273, 1
      %s278 = smul.addr %s275, 2
      %s279 = sadd.s32 %s277, %s278
      %s280 = smul.addr %s279, 4
      %s281 = scalar_lea.vmem %s0, %s280
      %s282 = smul.u32 2, %s20
      %s283 = smul.u32 2, %s22
      %s284 = smul.u32 32, %s22
      %p285 = scmp.lt.s32.totalorder %s284, 31
      %s286 = scalar_select %p285, %s284, 31
      %p287 = scmp.lt.s32.totalorder %s21, 0
      %s288 = scalar_select %p287, %s21, 0
      %s289 = sadd.s32 %s288, %s286
      %s290 = smul.addr %s289, 4
      %s291 = scalar_lea.vmem %s1, %s290
      %s292 = smul.u32 32, %s22
      %p293 = scmp.lt.s32.totalorder %s21, 0
      %s294 = scalar_select %p293, %s21, 0
      %s295 = scalar_lea.vmem %s2, %s294
      %p296 = scmp.lt.s32.totalorder %s21, 0
      %s297 = scalar_select %p296, %s21, 0
      %s298 = scalar_lea.vmem %s3, %s297
      %s299 = smul.u32 2, %s20
      %p300 = scmp.lt.s32.totalorder %s299, 3
      %s301 = scalar_select %p300, %s299, 3
      %p302 = scmp.lt.s32.totalorder %s21, 0
      %s303 = scalar_select %p302, %s21, 0
      %s304 = sadd.s32 %s303, %s301
      %s305 = smul.addr %s304, 4
      %s306 = scalar_lea.vmem %s4, %s305
      %s307 = smul.u32 2, %s20
      %p309 = scmp.eq.s32.totalorder %s22, 0
      // Predicated region
      $region37: #{deeplabv3_forward.16} parent=35 // pred_check
        %p310 = pneg %p309
      $region38: #{deeplabv3_forward.16} parent=35 // pred_check_branch
        %312 = sbr.rel (%p310) target = $region40
      $region39: #{deeplabv3_forward.16} parent=35 // pred_region
        %313 = vst [vmem:[#allocation2] sm:$0xff] 0.0
        %314 = vst [vmem:[#allocation2 + $0x8] sm:$0xff] 0.0
      $region40: #{deeplabv3_forward.16} parent=35 // pred_fallthru
        _
      %v315 = vld [vmem:[#allocation2] sm:$0xff]
      %v316 = vld [vmem:[#allocation2 + $0x8] sm:$0xff]
      %v317 = vld [vmem:[%s281] sm:$0xff]
      %v318 = vld [vmem:[%s281 + $0x8] sm:$0xff]
      %v319 = vld [vmem:[%s291] sm:$0xf]
      %v320 = vld [vmem:[%s291 + $0x4] sm:$0xf]
      %v321 = vld [vmem:[%s291 + $0x8] sm:$0xf]
      %v322 = vld [vmem:[%s291 + $0xc] sm:$0xf]
      %v323 = vld [vmem:[%s291 + $0x10] sm:$0xf]
      %v324 = vld [vmem:[%s291 + $0x14] sm:$0xf]
      %v325 = vld [vmem:[%s291 + $0x18] sm:$0xf]
      %v326 = vld [vmem:[%s291 + $0x1c] sm:$0xf]
      %v327 = vld [vmem:[%s291 + $0x20] sm:$0xf]
      %v328 = vld [vmem:[%s291 + $0x24] sm:$0xf]
      %v329 = vld [vmem:[%s291 + $0x28] sm:$0xf]
      %v330 = vld [vmem:[%s291 + $0x2c] sm:$0xf]
      %v331 = vld [vmem:[%s291 + $0x30] sm:$0xf]
      %v332 = vld [vmem:[%s291 + $0x34] sm:$0xf]
      %v333 = vld [vmem:[%s291 + $0x38] sm:$0xf]
      %v334 = vld [vmem:[%s291 + $0x3c] sm:$0xf]
      %v335 = vld [vmem:[%s291 + $0x40] sm:$0xf]
      %v336 = vld [vmem:[%s291 + $0x44] sm:$0xf]
      %v337 = vld [vmem:[%s291 + $0x48] sm:$0xf]
      %v338 = vld [vmem:[%s291 + $0x4c] sm:$0xf]
      %v339 = vld [vmem:[%s291 + $0x50] sm:$0xf]
      %v340 = vld [vmem:[%s291 + $0x54] sm:$0xf]
      %v341 = vld [vmem:[%s291 + $0x58] sm:$0xf]
      %v342 = vld [vmem:[%s291 + $0x5c] sm:$0xf]
      %v343 = vld [vmem:[%s291 + $0x60] sm:$0xf]
      %v344 = vld [vmem:[%s291 + $0x64] sm:$0xf]
      %v345 = vld [vmem:[%s291 + $0x68] sm:$0xf]
      %v346 = vld [vmem:[%s291 + $0x6c] sm:$0xf]
      %v347 = vld [vmem:[%s291 + $0x70] sm:$0xf]
      %v348 = vld [vmem:[%s291 + $0x74] sm:$0xf]
      %v349 = vld [vmem:[%s291 + $0x78] sm:$0xf]
      %v350 = vld [vmem:[%s291 + $0x7c] sm:$0xf]
      %v353 = vunpack.c.l.b16 %v317
      %v354 = vunpack.c.h.b16 %v317
      %v355 = vunpack.c.l.b16 %v318
      %v356 = vunpack.c.h.b16 %v318
      %v357 = vpack.c.b16 %v355, %v353
      %v358 = vpack.c.b16 %v356, %v354
      %v393 = vunpack.c.l.b16 %v319
      %v394 = vunpack.c.l.b16 %v320
      %v395 = vunpack.c.l.b16 %v321
      %v396 = vunpack.c.l.b16 %v322
      %v397 = vunpack.c.l.b16 %v323
      %v398 = vunpack.c.l.b16 %v324
      %v399 = vunpack.c.l.b16 %v325
      %v400 = vunpack.c.l.b16 %v326
      %v401 = vunpack.c.l.b16 %v327
      %v402 = vunpack.c.l.b16 %v328
      %v403 = vunpack.c.l.b16 %v329
      %v404 = vunpack.c.l.b16 %v330
      %v405 = vunpack.c.l.b16 %v331
      %v406 = vunpack.c.l.b16 %v332
      %v407 = vunpack.c.l.b16 %v333
      %v408 = vunpack.c.l.b16 %v334
      %v409 = vunpack.c.l.b16 %v335
      %v410 = vunpack.c.l.b16 %v336
      %v411 = vunpack.c.l.b16 %v337
      %v412 = vunpack.c.l.b16 %v338
      %v413 = vunpack.c.l.b16 %v339
      %v414 = vunpack.c.l.b16 %v340
      %v415 = vunpack.c.l.b16 %v341
      %v416 = vunpack.c.l.b16 %v342
      %v417 = vunpack.c.l.b16 %v343
      %v418 = vunpack.c.l.b16 %v344
      %v419 = vunpack.c.l.b16 %v345
      %v420 = vunpack.c.l.b16 %v346
      %v421 = vunpack.c.l.b16 %v347
      %v422 = vunpack.c.l.b16 %v348
      %v423 = vunpack.c.l.b16 %v349
      %v424 = vunpack.c.l.b16 %v350
      %v425 = vpack.c.b16 %v394, %v393
      %v426 = vpack.c.b16 %v396, %v395
      %v427 = vpack.c.b16 %v398, %v397
      %v428 = vpack.c.b16 %v400, %v399
      %v429 = vpack.c.b16 %v402, %v401
      %v430 = vpack.c.b16 %v404, %v403
      %v431 = vpack.c.b16 %v406, %v405
      %v432 = vpack.c.b16 %v408, %v407
      %v433 = vpack.c.b16 %v410, %v409
      %v434 = vpack.c.b16 %v412, %v411
      %v435 = vpack.c.b16 %v414, %v413
      %v436 = vpack.c.b16 %v416, %v415
      %v437 = vpack.c.b16 %v418, %v417
      %v438 = vpack.c.b16 %v420, %v419
      %v439 = vpack.c.b16 %v422, %v421
      %v440 = vpack.c.b16 %v424, %v423
      %457 = vmatprep.subr.bf16.mxu0 0
      %458 = vmatpush1.bf16.msra.mxu0 %v432
      %459 = vmatprep.subr.bf16.mxu0 0
      %460 = vmatpush1.bf16.msra.mxu0 %v431
      %461 = vmatprep.subr.bf16.mxu0 0
      %462 = vmatpush1.bf16.msra.mxu0 %v430
      %463 = vmatprep.subr.bf16.mxu0 0
      %464 = vmatpush1.bf16.msra.mxu0 %v429
      %465 = vmatprep.subr.bf16.mxu0 0
      %466 = vmatpush1.bf16.msra.mxu0 %v428
      %467 = vmatprep.subr.bf16.mxu0 0
      %468 = vmatpush1.bf16.msra.mxu0 %v427
      %469 = vmatprep.subr.bf16.mxu0 0
      %470 = vmatpush1.bf16.msra.mxu0 %v426
      %471 = vmatprep.subr.bf16.mxu0 0
      %472 = vmatpush1.bf16.msra.mxu0 %v425
      %473 = vmatprep.subr.bf16.mxu0 0
      %474 = vmatpush2.bf16.msra.mxu0 %v440
      %475 = vmatprep.subr.bf16.mxu0 0
      %476 = vmatpush2.bf16.msra.mxu0 %v439
      %477 = vmatprep.subr.bf16.mxu0 0
      %478 = vmatpush2.bf16.msra.mxu0 %v438
      %479 = vmatprep.subr.bf16.mxu0 0
      %480 = vmatpush2.bf16.msra.mxu0 %v437
      %481 = vmatprep.subr.bf16.mxu0 0
      %482 = vmatpush2.bf16.msra.mxu0 %v436
      %483 = vmatprep.subr.bf16.mxu0 0
      %484 = vmatpush2.bf16.msra.mxu0 %v435
      %485 = vmatprep.subr.bf16.mxu0 0
      %486 = vmatpush2.bf16.msra.mxu0 %v434
      %487 = vmatprep.subr.bf16.mxu0 0
      %488 = vmatpush2.bf16.msra.mxu0 %v433
      %489 = vmatprep.mubr.bf16.mxu0 %v358
      %490 = vmatmul.mubr.bf16.gmra.mxu0 %v357
      %v491 = vpop.f32.mrf.mxu0
      %v492 = vadd.f32 0.0, %v491
      %v493 = vpop.f32.mrf.mxu0
      %v494 = vpop.f32.mrf.mxu0
      %v495 = vadd.f32 0.0, %v494
      %v496 = vpop.f32.mrf.mxu0
      %497 = vdwg.mxu0
      %v498 = vadd.f32 %v315, %v492
      %v499 = vadd.f32 %v316, %v495
      %500 = vst [vmem:[#allocation2] sm:$0xff] %v498
      %501 = vst [vmem:[#allocation2 + $0x8] sm:$0xff] %v499
      // Predicated region
      $region41: #{deeplabv3_forward.16} parent=35 // pred_check
        %p502 = pneg %p309
      $region42: #{deeplabv3_forward.16} parent=35 // pred_check_branch
        %504 = sbr.rel (%p502) target = $region44
      $region43: #{deeplabv3_forward.16} parent=35 // pred_region
        %v505 = vld [vmem:[#allocation2] sm:$0xff]
        %v506 = vld [vmem:[#allocation2 + $0x8] sm:$0xff]
        %v507 = vld [vmem:[%s295] sm:$0x1]
        %v509 = vlaneseq
        %v510 = vshrl.u32 %v509, 7
        %v511 = vsub.s32 0, %v510
        %v512 = vrot.slane %v507, %v511
        %v514 = vmul.f32 %v505, %v512
        %v515 = vmul.f32 %v506, %v512
        %v516 = vld [vmem:[%s298] sm:$0x1]
        %v518 = vlaneseq
        %v519 = vshrl.u32 %v518, 7
        %v520 = vsub.s32 0, %v519
        %v521 = vrot.slane %v516, %v520
        %v523 = vadd.f32 %v514, %v521
        %v524 = vadd.f32 %v515, %v521
        %v525 = vmax.f32 %v523, 0.0
        %v526 = vmax.f32 %v524, 0.0
        %v527 = vpack.c.bf16 %v526, %v525
        %v529 = vunpack.c.l.b16 %v527
        %v530 = vunpack.c.h.b16 %v527
        %v531 = vpack.c.b16 %v529, %v529
        %v532 = vpack.c.b16 %v530, %v530
        %535 = vst [vmem:[%s306] sm:$0xf] %v531
        %536 = vst [vmem:[%s306 + $0x4] sm:$0xf] %v532
      $region44: #{deeplabv3_forward.16} parent=35 // pred_fallthru
        _
      %s537 = smul.u32 2, %s20
      %p538 = scmp.lt.s32.totalorder %s537, 3
      %s539 = scalar_select %p538, %s537, 3
      %p540 = scmp.lt.s32.totalorder %s21, 0
      %s541 = scalar_select %p540, %s21, 0
      %s542 = sadd.s32 %s541, %s539
      %s543 = smul.addr %s542, 4
      %s544 = scalar_lea.vmem %s4, %s543
      // Predicated region
      $region45: #{deeplabv3_forward.16} parent=35 // pred_check
        %p545 = pneg %p162
      $region46: #{deeplabv3_forward.16} parent=35 // pred_check_branch
        %547 = sbr.rel (%p545) target = $region48
      $region47: #{deeplabv3_forward.16} parent=35 // pred_region
        %s548 = smul.u32 2, %s20
      $region48: #{deeplabv3_forward.16} parent=35 // pred_fallthru
        _
    $region36: #{deeplabv3_forward.16} parent=5 // pred_fallthru
      _
    %p549 = scmp.le.s32.totalorder 2, %s10
    // Predicated region
    $region49: #{deeplabv3_forward.16} parent=5 // pred_check
      %p550 = pneg %p549
    $region50: #{deeplabv3_forward.16} parent=5 // pred_check_branch
      %552 = sbr.rel (%p550) target = $region52
    $region51: #{deeplabv3_forward.16} parent=5 // pred_region
      %s553 = ssub.s32 %s10, 2
      // Predicated region
      $region53: #{deeplabv3_forward.16} parent=51 // pred_check
        %p554 = pneg %p168
      $region54: #{deeplabv3_forward.16} parent=51 // pred_check_branch
        %556 = sbr.rel (%p554) target = $region56
      $region55: #{deeplabv3_forward.16} parent=51 // pred_region
        %s557 = smul.u32 2, %s23
        %p558 = scmp.lt.s32.totalorder %s557, 3
        %s559 = scalar_select %p558, %s557, 3
        %p560 = scmp.lt.s32.totalorder %s24, 0
        %s561 = scalar_select %p560, %s24, 0
        %s562 = sadd.s32 %s561, %s559
        %s563 = smul.addr %s562, 4
        %s564 = scalar_lea.vmem %s4, %s563
      $region56: #{deeplabv3_forward.16} parent=51 // pred_fallthru
        _
    $region52: #{deeplabv3_forward.16} parent=5 // pred_fallthru
      _
  $region6: #{deeplabv3_forward.16} parent=0 // loop_footer
    %s14 = sadd.s32 1, %s10
  $region7: #{deeplabv3_forward.16} parent=0 // loop_footer_branch
    %9 = sbr.rel target = $region3
  $region8: #{deeplabv3_forward.16} parent=0 // loop_exit
    _

// kernel: deeplabv3_forward.14
$region0: #{deeplabv3_forward.14}
  #allocation0 [shape = 'u32[]', space=smem, size = 0x4, offset = 0x4, fixed_abs, tag = 'smem constant byte address 0x4 - core index']
  #allocation1 [shape = 'u32[144,128]{1,0:T(1,128)}', space=vmem, size = 0x12000, scoped, tag = 'internal scratch']
  #allocation2 [shape = 'f32[64,128]{1,0:T(8,128)}', space=vmem, size = 0x8000, scoped, tag = 'scratch operand']
  %s0 = inlined_call_operand.vmem [shape: bf16[128,256], index: 0, kind: input, shape index: {}]
  %s1 = inlined_call_operand.vmem [shape: bf16[256,128], index: 1, kind: input, shape index: {}]
  %s2 = inlined_call_operand.vmem [shape: f32[1,128], index: 2, kind: input, shape index: {}]
  %s3 = inlined_call_operand.vmem [shape: f32[1,128], index: 3, kind: input, shape index: {}]
  %s4 = inlined_call_operand.vmem [shape: bf16[128,128], index: 4, kind: output, shape index: {}]
  %s5 = sld [smem:[#allocation0]]
  $region57: #{deeplabv3_forward.14} parent=0
    _
  %s7 = ssub.s32 1, %s5
  %s8 = scalar_select 0, %s7, %s5
  loop: start=0, step=1, limit=4
  $region2: #{deeplabv3_forward.14} parent=0 // loop_pre_header
    _
  $region3: #{deeplabv3_forward.14} parent=0 // loop_header
    %s10 = sphi 0, %s14
    %p11 = scmp.ge.s32.totalorder %s10, 4
    %s17 = sphi 0, %s36
    %s18 = sphi 0, %s32
    %s19 = sphi 0, %s28
    %s20 = sphi 0, %s17
    %s21 = sphi 0, %s18
    %s22 = sphi 0, %s19
    %s23 = sphi 0, %s20
    %s24 = sphi 0, %s21
    %s25 = sphi 0, %s22
    %s41 = sphi 0, %s43
    %s44 = sphi 0, %s41
    %s45 = sphi 0, %s44
    %s61 = sphi 0, %s45
    %s69 = sphi 0, %s71
    %s72 = sphi 0, %s69
    %s73 = sphi 0, %s72
    %s89 = sphi 0, %s73
    %s95 = sphi 0, %s97
    %s98 = sphi 0, %s95
    %s99 = sphi 0, %s98
    %s115 = sphi 0, %s99
    %s121 = sphi 0, %s123
    %s124 = sphi 0, %s121
    %s125 = sphi 0, %s124
    %s141 = sphi 0, %s125
    %s149 = sphi 0, %s151
    %s152 = sphi 0, %s149
    %s153 = sphi 0, %s152
    %s169 = sphi 0, %s153
  $region4: #{deeplabv3_forward.14} parent=0 // loop_header_branch
    %13 = sbr.rel (%p11) target = $region8
  $region5: #{deeplabv3_forward.14} parent=0 // loop_body
    %s15 = ssub.s32 %s10, 1
    %s16 = ssub.s32 %s10, 2
    %s26 = sadd.s32 1, %s19
    %p27 = scmp.ge.s32.totalorder %s26, 1
    %s28 = scalar_select %p27, 0, %s26
    %s29 = sadd.s32 1, %s18
    %s30 = scalar_select %p27, %s29, %s18
    %p31 = scmp.ge.s32.totalorder %s30, 1
    %s32 = scalar_select %p31, 0, %s30
    %s33 = sadd.s32 1, %s17
    %s34 = scalar_select %p31, %s33, %s17
    %p35 = scmp.ge.s32.totalorder %s34, 2
    %s36 = scalar_select %p35, 0, %s34
    %s37 = ssub.s32 %s17, %s36
    %s38 = ssub.s32 %s19, %s28
    %s39 = sor.u32 %s37, %s38
    %p40 = scmp.eq.s32.totalorder %s39, 0
    %s42 = sadd.s32 %s41, 1
    %s43 = scalar_select %p40, %s41, %s42
    %p46 = pneg %p40
    %p47 = scmp.eq.s32.totalorder %s10, 1
    %p48 = por %p46, %p47
    %p49 = scmp.ne.s32.totalorder %s41, %s44
    %p50 = scmp.eq.s32.totalorder %s10, 0
    %p51 = por %p49, %p50
    %p52 = scmp.ne.s32.totalorder %s41, %s44
    %p53 = scmp.eq.s32.totalorder %s15, 1
    %p54 = por %p52, %p53
    %p55 = scmp.ne.s32.totalorder %s44, %s45
    %p56 = scmp.eq.s32.totalorder %s15, 0
    %p57 = por %p55, %p56
    %p58 = scmp.ne.s32.totalorder %s44, %s45
    %p59 = scmp.eq.s32.totalorder %s16, 1
    %p60 = por %p58, %p59
    %p62 = scmp.ne.s32.totalorder %s45, %s61
    %p63 = scmp.eq.s32.totalorder %s16, 0
    %p64 = por %p62, %p63
    %s65 = ssub.s32 %s19, %s28
    %s66 = ssub.s32 %s18, %s32
    %s67 = sor.u32 %s65, %s66
    %p68 = scmp.eq.s32.totalorder %s67, 0
    %s70 = sadd.s32 %s69, 1
    %s71 = scalar_select %p68, %s69, %s70
    %p74 = pneg %p68
    %p75 = scmp.eq.s32.totalorder %s10, 1
    %p76 = por %p74, %p75
    %p77 = scmp.ne.s32.totalorder %s69, %s72
    %p78 = scmp.eq.s32.totalorder %s10, 0
    %p79 = por %p77, %p78
    %p80 = scmp.ne.s32.totalorder %s69, %s72
    %p81 = scmp.eq.s32.totalorder %s15, 1
    %p82 = por %p80, %p81
    %p83 = scmp.ne.s32.totalorder %s72, %s73
    %p84 = scmp.eq.s32.totalorder %s15, 0
    %p85 = por %p83, %p84
    %p86 = scmp.ne.s32.totalorder %s72, %s73
    %p87 = scmp.eq.s32.totalorder %s16, 1
    %p88 = por %p86, %p87
    %p90 = scmp.ne.s32.totalorder %s73, %s89
    %p91 = scmp.eq.s32.totalorder %s16, 0
    %p92 = por %p90, %p91
    %s93 = ssub.s32 %s18, %s32
    %p94 = scmp.eq.s32.totalorder %s93, 0
    %s96 = sadd.s32 %s95, 1
    %s97 = scalar_select %p94, %s95, %s96
    %p100 = pneg %p94
    %p101 = scmp.eq.s32.totalorder %s10, 1
    %p102 = por %p100, %p101
    %p103 = scmp.ne.s32.totalorder %s95, %s98
    %p104 = scmp.eq.s32.totalorder %s10, 0
    %p105 = por %p103, %p104
    %p106 = scmp.ne.s32.totalorder %s95, %s98
    %p107 = scmp.eq.s32.totalorder %s15, 1
    %p108 = por %p106, %p107
    %p109 = scmp.ne.s32.totalorder %s98, %s99
    %p110 = scmp.eq.s32.totalorder %s15, 0
    %p111 = por %p109, %p110
    %p112 = scmp.ne.s32.totalorder %s98, %s99
    %p113 = scmp.eq.s32.totalorder %s16, 1
    %p114 = por %p112, %p113
    %p116 = scmp.ne.s32.totalorder %s99, %s115
    %p117 = scmp.eq.s32.totalorder %s16, 0
    %p118 = por %p116, %p117
    %s119 = ssub.s32 %s18, %s32
    %p120 = scmp.eq.s32.totalorder %s119, 0
    %s122 = sadd.s32 %s121, 1
    %s123 = scalar_select %p120, %s121, %s122
    %p126 = pneg %p120
    %p127 = scmp.eq.s32.totalorder %s10, 1
    %p128 = por %p126, %p127
    %p129 = scmp.ne.s32.totalorder %s121, %s124
    %p130 = scmp.eq.s32.totalorder %s10, 0
    %p131 = por %p129, %p130
    %p132 = scmp.ne.s32.totalorder %s121, %s124
    %p133 = scmp.eq.s32.totalorder %s15, 1
    %p134 = por %p132, %p133
    %p135 = scmp.ne.s32.totalorder %s124, %s125
    %p136 = scmp.eq.s32.totalorder %s15, 0
    %p137 = por %p135, %p136
    %p138 = scmp.ne.s32.totalorder %s124, %s125
    %p139 = scmp.eq.s32.totalorder %s16, 1
    %p140 = por %p138, %p139
    %p142 = scmp.ne.s32.totalorder %s125, %s141
    %p143 = scmp.eq.s32.totalorder %s16, 0
    %p144 = por %p142, %p143
    %s145 = ssub.s32 %s17, %s36
    %s146 = ssub.s32 %s18, %s32
    %s147 = sor.u32 %s145, %s146
    %p148 = scmp.eq.s32.totalorder %s147, 0
    %s150 = sadd.s32 %s149, 1
    %s151 = scalar_select %p148, %s149, %s150
    %p154 = pneg %p148
    %p155 = scmp.eq.s32.totalorder %s10, 1
    %p156 = por %p154, %p155
    %p157 = scmp.ne.s32.totalorder %s149, %s152
    %p158 = scmp.eq.s32.totalorder %s10, 0
    %p159 = por %p157, %p158
    %p160 = scmp.ne.s32.totalorder %s149, %s152
    %p161 = scmp.eq.s32.totalorder %s15, 1
    %p162 = por %p160, %p161
    %p163 = scmp.ne.s32.totalorder %s152, %s153
    %p164 = scmp.eq.s32.totalorder %s15, 0
    %p165 = por %p163, %p164
    %p166 = scmp.ne.s32.totalorder %s152, %s153
    %p167 = scmp.eq.s32.totalorder %s16, 1
    %p168 = por %p166, %p167
    %p170 = scmp.ne.s32.totalorder %s153, %s169
    %p171 = scmp.eq.s32.totalorder %s16, 0
    %p172 = por %p170, %p171
    %p173 = scmp.le.s32.totalorder 1, %s10
    %p174 = scmp.lt.s32.totalorder %s10, 3
    %p175 = pnand %p173, %p174
    %p176 = pneg %p175
    // Predicated region
    $region9: #{deeplabv3_forward.14} parent=5 // pred_check
      _
    $region10: #{deeplabv3_forward.14} parent=5 // pred_check_branch
      %178 = sbr.rel (%p175) target = $region12
    $region11: #{deeplabv3_forward.14} parent=5 // pred_region
      %s179 = ssub.s32 %s10, 1
      // Predicated region
      $region13: #{deeplabv3_forward.14} parent=11 // pred_check
        %p180 = pneg %p85
      $region14: #{deeplabv3_forward.14} parent=11 // pred_check_branch
        %182 = sbr.rel (%p180) target = $region16
      $region15: #{deeplabv3_forward.14} parent=11 // pred_region
        %s183 = smul.u32 32, %s22
        %p184 = scmp.lt.s32.totalorder %s183, 31
        %s185 = scalar_select %p184, %s183, 31
        %p186 = scmp.lt.s32.totalorder %s21, 0
        %s187 = scalar_select %p186, %s21, 0
        %s188 = sadd.s32 %s187, %s185
        %s189 = smul.addr %s188, 4
        %s190 = scalar_lea.vmem %s1, %s189
        %s191 = smul.u32 32, %s22
      $region16: #{deeplabv3_forward.14} parent=11 // pred_fallthru
        _
      // Predicated region
      $region17: #{deeplabv3_forward.14} parent=11 // pred_check
        %p192 = pneg %p111
      $region18: #{deeplabv3_forward.14} parent=11 // pred_check_branch
        %194 = sbr.rel (%p192) target = $region20
      $region19: #{deeplabv3_forward.14} parent=11 // pred_region
        %p195 = scmp.lt.s32.totalorder %s21, 0
        %s196 = scalar_select %p195, %s21, 0
        %s197 = scalar_lea.vmem %s2, %s196
      $region20: #{deeplabv3_forward.14} parent=11 // pred_fallthru
        _
      // Predicated region
      $region21: #{deeplabv3_forward.14} parent=11 // pred_check
        %p198 = pneg %p137
      $region22: #{deeplabv3_forward.14} parent=11 // pred_check_branch
        %200 = sbr.rel (%p198) target = $region24
      $region23: #{deeplabv3_forward.14} parent=11 // pred_region
        %p201 = scmp.lt.s32.totalorder %s21, 0
        %s202 = scalar_select %p201, %s21, 0
        %s203 = scalar_lea.vmem %s3, %s202
      $region24: #{deeplabv3_forward.14} parent=11 // pred_fallthru
        _
    $region12: #{deeplabv3_forward.14} parent=5 // pred_fallthru
      _
    %p204 = scmp.lt.s32.totalorder %s10, 2
    // Predicated region
    $region25: #{deeplabv3_forward.14} parent=5 // pred_check
      %p205 = pneg %p204
    $region26: #{deeplabv3_forward.14} parent=5 // pred_check_branch
      %207 = sbr.rel (%p205) target = $region28
    $region27: #{deeplabv3_forward.14} parent=5 // pred_region
      // Predicated region
      $region29: #{deeplabv3_forward.14} parent=27 // pred_check
        %p208 = pneg %p51
      $region30: #{deeplabv3_forward.14} parent=27 // pred_check_branch
        %210 = sbr.rel (%p208) target = $region32
      $region31: #{deeplabv3_forward.14} parent=27 // pred_region
        %s211 = smul.u32 8, %s17
        %s212 = smul.u32 2, %s19
        %p213 = scmp.lt.s32.totalorder %s211, 15
        %s214 = scalar_select %p213, %s211, 15
        %p215 = scmp.lt.s32.totalorder %s212, 1
        %s216 = scalar_select %p215, %s212, 1
        %s217 = smul.addr %s214, 2
        %s218 = sadd.s32 %s216, %s217
        %s219 = smul.addr %s218, 4
        %s220 = scalar_lea.vmem %s0, %s219
        %s221 = smul.u32 8, %s17
        %s222 = smul.u32 2, %s19
      $region32: #{deeplabv3_forward.14} parent=27 // pred_fallthru
        _
    $region28: #{deeplabv3_forward.14} parent=5 // pred_fallthru
      _
    %p223 = scmp.le.s32.totalorder 1, %s10
    %p224 = scmp.lt.s32.totalorder %s10, 3
    %p225 = pnand %p223, %p224
    %p226 = pneg %p225
    // Predicated region
    $region33: #{deeplabv3_forward.14} parent=5 // pred_check
      _
    $region34: #{deeplabv3_forward.14} parent=5 // pred_check_branch
      %228 = sbr.rel (%p225) target = $region36
    $region35: #{deeplabv3_forward.14} parent=5 // pred_region
      %s229 = ssub.s32 %s10, 1
      %s230 = smul.u32 8, %s20
      %s231 = smul.u32 2, %s22
      %p232 = scmp.lt.s32.totalorder %s230, 15
      %s233 = scalar_select %p232, %s230, 15
      %p234 = scmp.lt.s32.totalorder %s231, 1
      %s235 = scalar_select %p234, %s231, 1
      %s236 = smul.addr %s233, 2
      %s237 = sadd.s32 %s235, %s236
      %s238 = smul.addr %s237, 4
      %s239 = scalar_lea.vmem %s0, %s238
      %p240 = pneg %p57
      %p241 = pneg %p54
      %s242 = smul.u32 32, %s22
      %p243 = scmp.lt.s32.totalorder %s242, 31
      %s244 = scalar_select %p243, %s242, 31
      %p245 = scmp.lt.s32.totalorder %s21, 0
      %s246 = scalar_select %p245, %s21, 0
      %s247 = sadd.s32 %s246, %s244
      %s248 = smul.addr %s247, 4
      %s249 = scalar_lea.vmem %s1, %s248
      %p250 = pneg %p85
      %p251 = pneg %p82
      %p252 = scmp.lt.s32.totalorder %s21, 0
      %s253 = scalar_select %p252, %s21, 0
      %s254 = scalar_lea.vmem %s2, %s253
      %p255 = pneg %p111
      %p256 = pneg %p108
      %p257 = scmp.lt.s32.totalorder %s21, 0
      %s258 = scalar_select %p257, %s21, 0
      %s259 = scalar_lea.vmem %s3, %s258
      %p260 = pneg %p137
      %p261 = pneg %p134
      %p262 = pneg %p165
      %p263 = pneg %p162
      %s264 = smul.u32 8, %s20
      %p265 = scmp.lt.s32.totalorder %s264, 15
      %s266 = scalar_select %p265, %s264, 15
      %p267 = scmp.lt.s32.totalorder %s21, 0
      %s268 = scalar_select %p267, %s21, 0
      %s269 = sadd.s32 %s268, %s266
      %s270 = smul.addr %s269, 4
      %s271 = scalar_lea.vmem %s4, %s270
      %s272 = smul.u32 8, %s20
      %s273 = smul.u32 2, %s22
      %p274 = scmp.lt.s32.totalorder %s272, 15
      %s275 = scalar_select %p274, %s272, 15
      %p276 = scmp.lt.s32.totalorder %s273, 1
      %s277 = scalar_select %p276, %s273, 1
      %s278 = smul.addr %s275, 2
      %s279 = sadd.s32 %s277, %s278
      %s280 = smul.addr %s279, 4
      %s281 = scalar_lea.vmem %s0, %s280
      %s282 = smul.u32 8, %s20
      %s283 = smul.u32 2, %s22
      %s284 = smul.u32 32, %s22
      %p285 = scmp.lt.s32.totalorder %s284, 31
      %s286 = scalar_select %p285, %s284, 31
      %p287 = scmp.lt.s32.totalorder %s21, 0
      %s288 = scalar_select %p287, %s21, 0
      %s289 = sadd.s32 %s288, %s286
      %s290 = smul.addr %s289, 4
      %s291 = scalar_lea.vmem %s1, %s290
      %s292 = smul.u32 32, %s22
      %p293 = scmp.lt.s32.totalorder %s21, 0
      %s294 = scalar_select %p293, %s21, 0
      %s295 = scalar_lea.vmem %s2, %s294
      %p296 = scmp.lt.s32.totalorder %s21, 0
      %s297 = scalar_select %p296, %s21, 0
      %s298 = scalar_lea.vmem %s3, %s297
      %s299 = smul.u32 8, %s20
      %p300 = scmp.lt.s32.totalorder %s299, 15
      %s301 = scalar_select %p300, %s299, 15
      %p302 = scmp.lt.s32.totalorder %s21, 0
      %s303 = scalar_select %p302, %s21, 0
      %s304 = sadd.s32 %s303, %s301
      %s305 = smul.addr %s304, 4
      %s306 = scalar_lea.vmem %s4, %s305
      %s307 = smul.u32 8, %s20
      %p309 = scmp.eq.s32.totalorder %s22, 0
      // Predicated region
      $region37: #{deeplabv3_forward.14} parent=35 // pred_check
        %p310 = pneg %p309
      $region38: #{deeplabv3_forward.14} parent=35 // pred_check_branch
        %312 = sbr.rel (%p310) target = $region40
      $region39: #{deeplabv3_forward.14} parent=35 // pred_region
        %313 = vst [vmem:[#allocation2] sm:$0xff] 0.0
        %314 = vst [vmem:[#allocation2 + $0x8] sm:$0xff] 0.0
        %315 = vst [vmem:[#allocation2 + $0x10] sm:$0xff] 0.0
        %316 = vst [vmem:[#allocation2 + $0x18] sm:$0xff] 0.0
        %317 = vst [vmem:[#allocation2 + $0x20] sm:$0xff] 0.0
        %318 = vst [vmem:[#allocation2 + $0x28] sm:$0xff] 0.0
        %319 = vst [vmem:[#allocation2 + $0x30] sm:$0xff] 0.0
        %320 = vst [vmem:[#allocation2 + $0x38] sm:$0xff] 0.0
      $region40: #{deeplabv3_forward.14} parent=35 // pred_fallthru
        _
      %v321 = vld [vmem:[#allocation2] sm:$0xff]
      %v322 = vld [vmem:[#allocation2 + $0x8] sm:$0xff]
      %v323 = vld [vmem:[#allocation2 + $0x10] sm:$0xff]
      %v324 = vld [vmem:[#allocation2 + $0x18] sm:$0xff]
      %v325 = vld [vmem:[#allocation2 + $0x20] sm:$0xff]
      %v326 = vld [vmem:[#allocation2 + $0x28] sm:$0xff]
      %v327 = vld [vmem:[#allocation2 + $0x30] sm:$0xff]
      %v328 = vld [vmem:[#allocation2 + $0x38] sm:$0xff]
      %v329 = vld [vmem:[%s281] sm:$0xff]
      %v330 = vld [vmem:[%s281 + $0x8] sm:$0xff]
      %v331 = vld [vmem:[%s281 + $0x10] sm:$0xff]
      %v332 = vld [vmem:[%s281 + $0x18] sm:$0xff]
      %v333 = vld [vmem:[%s281 + $0x20] sm:$0xff]
      %v334 = vld [vmem:[%s281 + $0x28] sm:$0xff]
      %v335 = vld [vmem:[%s281 + $0x30] sm:$0xff]
      %v336 = vld [vmem:[%s281 + $0x38] sm:$0xff]
      %v337 = vld [vmem:[%s291] sm:$0xf]
      %v338 = vld [vmem:[%s291 + $0x4] sm:$0xf]
      %v339 = vld [vmem:[%s291 + $0x8] sm:$0xf]
      %v340 = vld [vmem:[%s291 + $0xc] sm:$0xf]
      %v341 = vld [vmem:[%s291 + $0x10] sm:$0xf]
      %v342 = vld [vmem:[%s291 + $0x14] sm:$0xf]
      %v343 = vld [vmem:[%s291 + $0x18] sm:$0xf]
      %v344 = vld [vmem:[%s291 + $0x1c] sm:$0xf]
      %v345 = vld [vmem:[%s291 + $0x20] sm:$0xf]
      %v346 = vld [vmem:[%s291 + $0x24] sm:$0xf]
      %v347 = vld [vmem:[%s291 + $0x28] sm:$0xf]
      %v348 = vld [vmem:[%s291 + $0x2c] sm:$0xf]
      %v349 = vld [vmem:[%s291 + $0x30] sm:$0xf]
      %v350 = vld [vmem:[%s291 + $0x34] sm:$0xf]
      %v351 = vld [vmem:[%s291 + $0x38] sm:$0xf]
      %v352 = vld [vmem:[%s291 + $0x3c] sm:$0xf]
      %v353 = vld [vmem:[%s291 + $0x40] sm:$0xf]
      %v354 = vld [vmem:[%s291 + $0x44] sm:$0xf]
      %v355 = vld [vmem:[%s291 + $0x48] sm:$0xf]
      %v356 = vld [vmem:[%s291 + $0x4c] sm:$0xf]
      %v357 = vld [vmem:[%s291 + $0x50] sm:$0xf]
      %v358 = vld [vmem:[%s291 + $0x54] sm:$0xf]
      %v359 = vld [vmem:[%s291 + $0x58] sm:$0xf]
      %v360 = vld [vmem:[%s291 + $0x5c] sm:$0xf]
      %v361 = vld [vmem:[%s291 + $0x60] sm:$0xf]
      %v362 = vld [vmem:[%s291 + $0x64] sm:$0xf]
      %v363 = vld [vmem:[%s291 + $0x68] sm:$0xf]
      %v364 = vld [vmem:[%s291 + $0x6c] sm:$0xf]
      %v365 = vld [vmem:[%s291 + $0x70] sm:$0xf]
      %v366 = vld [vmem:[%s291 + $0x74] sm:$0xf]
      %v367 = vld [vmem:[%s291 + $0x78] sm:$0xf]
      %v368 = vld [vmem:[%s291 + $0x7c] sm:$0xf]
      %v377 = vunpack.c.l.b16 %v329
      %v378 = vunpack.c.h.b16 %v329
      %v379 = vunpack.c.l.b16 %v330
      %v380 = vunpack.c.h.b16 %v330
      %v381 = vunpack.c.l.b16 %v331
      %v382 = vunpack.c.h.b16 %v331
      %v383 = vunpack.c.l.b16 %v332
      %v384 = vunpack.c.h.b16 %v332
      %v385 = vunpack.c.l.b16 %v333
      %v386 = vunpack.c.h.b16 %v333
      %v387 = vunpack.c.l.b16 %v334
      %v388 = vunpack.c.h.b16 %v334
      %v389 = vunpack.c.l.b16 %v335
      %v390 = vunpack.c.h.b16 %v335
      %v391 = vunpack.c.l.b16 %v336
      %v392 = vunpack.c.h.b16 %v336
      %v393 = vpack.c.b16 %v379, %v377
      %v394 = vpack.c.b16 %v380, %v378
      %v395 = vpack.c.b16 %v383, %v381
      %v396 = vpack.c.b16 %v384, %v382
      %v397 = vpack.c.b16 %v387, %v385
      %v398 = vpack.c.b16 %v388, %v386
      %v399 = vpack.c.b16 %v391, %v389
      %v400 = vpack.c.b16 %v392, %v390
      %v441 = vunpack.c.l.b16 %v337
      %v442 = vunpack.c.l.b16 %v338
      %v443 = vunpack.c.l.b16 %v339
      %v444 = vunpack.c.l.b16 %v340
      %v445 = vunpack.c.l.b16 %v341
      %v446 = vunpack.c.l.b16 %v342
      %v447 = vunpack.c.l.b16 %v343
      %v448 = vunpack.c.l.b16 %v344
      %v449 = vunpack.c.l.b16 %v345
      %v450 = vunpack.c.l.b16 %v346
      %v451 = vunpack.c.l.b16 %v347
      %v452 = vunpack.c.l.b16 %v348
      %v453 = vunpack.c.l.b16 %v349
      %v454 = vunpack.c.l.b16 %v350
      %v455 = vunpack.c.l.b16 %v351
      %v456 = vunpack.c.l.b16 %v352
      %v457 = vunpack.c.l.b16 %v353
      %v458 = vunpack.c.l.b16 %v354
      %v459 = vunpack.c.l.b16 %v355
      %v460 = vunpack.c.l.b16 %v356
      %v461 = vunpack.c.l.b16 %v357
      %v462 = vunpack.c.l.b16 %v358
      %v463 = vunpack.c.l.b16 %v359
      %v464 = vunpack.c.l.b16 %v360
      %v465 = vunpack.c.l.b16 %v361
      %v466 = vunpack.c.l.b16 %v362
      %v467 = vunpack.c.l.b16 %v363
      %v468 = vunpack.c.l.b16 %v364
      %v469 = vunpack.c.l.b16 %v365
      %v470 = vunpack.c.l.b16 %v366
      %v471 = vunpack.c.l.b16 %v367
      %v472 = vunpack.c.l.b16 %v368
      %v473 = vpack.c.b16 %v442, %v441
      %v474 = vpack.c.b16 %v444, %v443
      %v475 = vpack.c.b16 %v446, %v445
      %v476 = vpack.c.b16 %v448, %v447
      %v477 = vpack.c.b16 %v450, %v449
      %v478 = vpack.c.b16 %v452, %v451
      %v479 = vpack.c.b16 %v454, %v453
      %v480 = vpack.c.b16 %v456, %v455
      %v481 = vpack.c.b16 %v458, %v457
      %v482 = vpack.c.b16 %v460, %v459
      %v483 = vpack.c.b16 %v462, %v461
      %v484 = vpack.c.b16 %v464, %v463
      %v485 = vpack.c.b16 %v466, %v465
      %v486 = vpack.c.b16 %v468, %v467
      %v487 = vpack.c.b16 %v470, %v469
      %v488 = vpack.c.b16 %v472, %v471
      %505 = vmatprep.subr.bf16.mxu0 0
      %506 = vmatpush1.bf16.msra.mxu0 %v480
      %507 = vmatprep.subr.bf16.mxu0 0
      %508 = vmatpush1.bf16.msra.mxu0 %v479
      %509 = vmatprep.subr.bf16.mxu0 0
      %510 = vmatpush1.bf16.msra.mxu0 %v478
      %511 = vmatprep.subr.bf16.mxu0 0
      %512 = vmatpush1.bf16.msra.mxu0 %v477
      %513 = vmatprep.subr.bf16.mxu0 0
      %514 = vmatpush1.bf16.msra.mxu0 %v476
      %515 = vmatprep.subr.bf16.mxu0 0
      %516 = vmatpush1.bf16.msra.mxu0 %v475
      %517 = vmatprep.subr.bf16.mxu0 0
      %518 = vmatpush1.bf16.msra.mxu0 %v474
      %519 = vmatprep.subr.bf16.mxu0 0
      %520 = vmatpush1.bf16.msra.mxu0 %v473
      %521 = vmatprep.subr.bf16.mxu0 0
      %522 = vmatpush2.bf16.msra.mxu0 %v488
      %523 = vmatprep.subr.bf16.mxu0 0
      %524 = vmatpush2.bf16.msra.mxu0 %v487
      %525 = vmatprep.subr.bf16.mxu0 0
      %526 = vmatpush2.bf16.msra.mxu0 %v486
      %527 = vmatprep.subr.bf16.mxu0 0
      %528 = vmatpush2.bf16.msra.mxu0 %v485
      %529 = vmatprep.subr.bf16.mxu0 0
      %530 = vmatpush2.bf16.msra.mxu0 %v484
      %531 = vmatprep.subr.bf16.mxu0 0
      %532 = vmatpush2.bf16.msra.mxu0 %v483
      %533 = vmatprep.subr.bf16.mxu0 0
      %534 = vmatpush2.bf16.msra.mxu0 %v482
      %535 = vmatprep.subr.bf16.mxu0 0
      %536 = vmatpush2.bf16.msra.mxu0 %v481
      %537 = vmatprep.mubr.bf16.mxu0 %v394
      %538 = vmatmul.mubr.bf16.gmra.mxu0 %v393
      %v539 = vpop.f32.mrf.mxu0
      %v540 = vadd.f32 0.0, %v539
      %v541 = vpop.f32.mrf.mxu0
      %v542 = vpop.f32.mrf.mxu0
      %v543 = vadd.f32 0.0, %v542
      %v544 = vpop.f32.mrf.mxu0
      %545 = vmatprep.mubr.bf16.mxu0 %v396
      %546 = vmatmul.mubr.bf16.gmra.mxu0 %v395
      %v547 = vpop.f32.mrf.mxu0
      %v548 = vadd.f32 0.0, %v547
      %v549 = vpop.f32.mrf.mxu0
      %v550 = vpop.f32.mrf.mxu0
      %v551 = vadd.f32 0.0, %v550
      %v552 = vpop.f32.mrf.mxu0
      %553 = vmatprep.mubr.bf16.mxu0 %v398
      %554 = vmatmul.mubr.bf16.gmra.mxu0 %v397
      %v555 = vpop.f32.mrf.mxu0
      %v556 = vadd.f32 0.0, %v555
      %v557 = vpop.f32.mrf.mxu0
      %v558 = vpop.f32.mrf.mxu0
      %v559 = vadd.f32 0.0, %v558
      %v560 = vpop.f32.mrf.mxu0
      %561 = vmatprep.mubr.bf16.mxu0 %v400
      %562 = vmatmul.mubr.bf16.gmra.mxu0 %v399
      %v563 = vpop.f32.mrf.mxu0
      %v564 = vadd.f32 0.0, %v563
      %v565 = vpop.f32.mrf.mxu0
      %v566 = vpop.f32.mrf.mxu0
      %v567 = vadd.f32 0.0, %v566
      %v568 = vpop.f32.mrf.mxu0
      %569 = vdwg.mxu0
      %v570 = vadd.f32 %v321, %v540
      %v571 = vadd.f32 %v322, %v543
      %v572 = vadd.f32 %v323, %v548
      %v573 = vadd.f32 %v324, %v551
      %v574 = vadd.f32 %v325, %v556
      %v575 = vadd.f32 %v326, %v559
      %v576 = vadd.f32 %v327, %v564
      %v577 = vadd.f32 %v328, %v567
      %578 = vst [vmem:[#allocation2] sm:$0xff] %v570
      %579 = vst [vmem:[#allocation2 + $0x8] sm:$0xff] %v571
      %580 = vst [vmem:[#allocation2 + $0x10] sm:$0xff] %v572
      %581 = vst [vmem:[#allocation2 + $0x18] sm:$0xff] %v573
      %582 = vst [vmem:[#allocation2 + $0x20] sm:$0xff] %v574
      %583 = vst [vmem:[#allocation2 + $0x28] sm:$0xff] %v575
      %584 = vst [vmem:[#allocation2 + $0x30] sm:$0xff] %v576
      %585 = vst [vmem:[#allocation2 + $0x38] sm:$0xff] %v577
      // Predicated region
      $region41: #{deeplabv3_forward.14} parent=35 // pred_check
        %p586 = pneg %p309
      $region42: #{deeplabv3_forward.14} parent=35 // pred_check_branch
        %588 = sbr.rel (%p586) target = $region44
      $region43: #{deeplabv3_forward.14} parent=35 // pred_region
        %v589 = vld [vmem:[#allocation2] sm:$0xff]
        %v590 = vld [vmem:[#allocation2 + $0x8] sm:$0xff]
        %v591 = vld [vmem:[#allocation2 + $0x10] sm:$0xff]
        %v592 = vld [vmem:[#allocation2 + $0x18] sm:$0xff]
        %v593 = vld [vmem:[#allocation2 + $0x20] sm:$0xff]
        %v594 = vld [vmem:[#allocation2 + $0x28] sm:$0xff]
        %v595 = vld [vmem:[#allocation2 + $0x30] sm:$0xff]
        %v596 = vld [vmem:[#allocation2 + $0x38] sm:$0xff]
        %v597 = vld [vmem:[%s295] sm:$0x1]
        %v599 = vlaneseq
        %v600 = vshrl.u32 %v599, 7
        %v601 = vsub.s32 0, %v600
        %v602 = vrot.slane %v597, %v601
        %v604 = vmul.f32 %v589, %v602
        %v605 = vmul.f32 %v590, %v602
        %v606 = vmul.f32 %v591, %v602
        %v607 = vmul.f32 %v592, %v602
        %v608 = vmul.f32 %v593, %v602
        %v609 = vmul.f32 %v594, %v602
        %v610 = vmul.f32 %v595, %v602
        %v611 = vmul.f32 %v596, %v602
        %v612 = vld [vmem:[%s298] sm:$0x1]
        %v614 = vlaneseq
        %v615 = vshrl.u32 %v614, 7
        %v616 = vsub.s32 0, %v615
        %v617 = vrot.slane %v612, %v616
        %v619 = vadd.f32 %v604, %v617
        %v620 = vadd.f32 %v605, %v617
        %v621 = vadd.f32 %v606, %v617
        %v622 = vadd.f32 %v607, %v617
        %v623 = vadd.f32 %v608, %v617
        %v624 = vadd.f32 %v609, %v617
        %v625 = vadd.f32 %v610, %v617
        %v626 = vadd.f32 %v611, %v617
        %v627 = vmax.f32 %v619, 0.0
        %v628 = vmax.f32 %v620, 0.0
        %v629 = vmax.f32 %v621, 0.0
        %v630 = vmax.f32 %v622, 0.0
        %v631 = vmax.f32 %v623, 0.0
        %v632 = vmax.f32 %v624, 0.0
        %v633 = vmax.f32 %v625, 0.0
        %v634 = vmax.f32 %v626, 0.0
        %v635 = vpack.c.bf16 %v628, %v627
        %v636 = vpack.c.bf16 %v630, %v629
        %v637 = vpack.c.bf16 %v632, %v631
        %v638 = vpack.c.bf16 %v634, %v633
        %v643 = vunpack.c.l.b16 %v635
        %v644 = vunpack.c.h.b16 %v635
        %v645 = vunpack.c.l.b16 %v636
        %v646 = vunpack.c.h.b16 %v636
        %v647 = vunpack.c.l.b16 %v637
        %v648 = vunpack.c.h.b16 %v637
        %v649 = vunpack.c.l.b16 %v638
        %v650 = vunpack.c.h.b16 %v638
        %v651 = vpack.c.b16 %v643, %v643
        %v652 = vpack.c.b16 %v644, %v644
        %v653 = vpack.c.b16 %v645, %v645
        %v654 = vpack.c.b16 %v646, %v646
        %v655 = vpack.c.b16 %v647, %v647
        %v656 = vpack.c.b16 %v648, %v648
        %v657 = vpack.c.b16 %v649, %v649
        %v658 = vpack.c.b16 %v650, %v650
        %667 = vst [vmem:[%s306] sm:$0xf] %v651
        %668 = vst [vmem:[%s306 + $0x4] sm:$0xf] %v652
        %669 = vst [vmem:[%s306 + $0x8] sm:$0xf] %v653
        %670 = vst [vmem:[%s306 + $0xc] sm:$0xf] %v654
        %671 = vst [vmem:[%s306 + $0x10] sm:$0xf] %v655
        %672 = vst [vmem:[%s306 + $0x14] sm:$0xf] %v656
        %673 = vst [vmem:[%s306 + $0x18] sm:$0xf] %v657
        %674 = vst [vmem:[%s306 + $0x1c] sm:$0xf] %v658
      $region44: #{deeplabv3_forward.14} parent=35 // pred_fallthru
        _
      %s675 = smul.u32 8, %s20
      %p676 = scmp.lt.s32.totalorder %s675, 15
      %s677 = scalar_select %p676, %s675, 15
      %p678 = scmp.lt.s32.totalorder %s21, 0
      %s679 = scalar_select %p678, %s21, 0
      %s680 = sadd.s32 %s679, %s677
      %s681 = smul.addr %s680, 4
      %s682 = scalar_lea.vmem %s4, %s681
      // Predicated region
      $region45: #{deeplabv3_forward.14} parent=35 // pred_check
        %p683 = pneg %p162
      $region46: #{deeplabv3_forward.14} parent=35 // pred_check_branch
        %685 = sbr.rel (%p683) target = $region48
      $region47: #{deeplabv3_forward.14} parent=35 // pred_region
        %s686 = smul.u32 8, %s20
      $region48: #{deeplabv3_forward.14} parent=35 // pred_fallthru
        _
    $region36: #{deeplabv3_forward.14} parent=5 // pred_fallthru
      _
    %p687 = scmp.le.s32.totalorder 2, %s10
    // Predicated region
    $region49: #{deeplabv3_forward.14} parent=5 // pred_check
      %p688 = pneg %p687
    $region50: #{deeplabv3_forward.14} parent=5 // pred_check_branch
      %690 = sbr.rel (%p688) target = $region52
    $region51: #{deeplabv3_forward.14} parent=5 // pred_region
      %s691 = ssub.s32 %s10, 2
      // Predicated region
      $region53: #{deeplabv3_forward.14} parent=51 // pred_check
        %p692 = pneg %p168
      $region54: #{deeplabv3_forward.14} parent=51 // pred_check_branch
        %694 = sbr.rel (%p692) target = $region56
      $region55: #{deeplabv3_forward.14} parent=51 // pred_region
        %s695 = smul.u32 8, %s23
        %p696 = scmp.lt.s32.totalorder %s695, 15
        %s697 = scalar_select %p696, %s695, 15
        %p698 = scmp.lt.s32.totalorder %s24, 0
        %s699 = scalar_select %p698, %s24, 0
        %s700 = sadd.s32 %s699, %s697
        %s701 = smul.addr %s700, 4
        %s702 = scalar_lea.vmem %s4, %s701
      $region56: #{deeplabv3_forward.14} parent=51 // pred_fallthru
        _
    $region52: #{deeplabv3_forward.14} parent=5 // pred_fallthru
      _
  $region6: #{deeplabv3_forward.14} parent=0 // loop_footer
    %s14 = sadd.s32 1, %s10
  $region7: #{deeplabv3_forward.14} parent=0 // loop_footer_branch
    %9 = sbr.rel target = $region3
  $region8: #{deeplabv3_forward.14} parent=0 // loop_exit
    _

// kernel: deeplabv3_forward.17
$region0: #{deeplabv3_forward.17}
  #allocation0 [shape = 'u32[]', space=smem, size = 0x4, offset = 0x4, fixed_abs, tag = 'smem constant byte address 0x4 - core index']
  #allocation1 [shape = 'u32[144,128]{1,0:T(1,128)}', space=vmem, size = 0x12000, scoped, tag = 'internal scratch']
  #allocation2 [shape = 'f32[16,128]{1,0:T(8,128)}', space=vmem, size = 0x2000, scoped, tag = 'scratch operand']
  %s0 = inlined_call_operand.vmem [shape: bf16[16,384], index: 0, kind: input, shape index: {}]
  %s1 = inlined_call_operand.vmem [shape: bf16[384,128], index: 1, kind: input, shape index: {}]
  %s2 = inlined_call_operand.vmem [shape: f32[1,128], index: 2, kind: input, shape index: {}]
  %s3 = inlined_call_operand.vmem [shape: f32[1,128], index: 3, kind: input, shape index: {}]
  %s4 = inlined_call_operand.vmem [shape: bf16[16,128], index: 4, kind: output, shape index: {}]
  %s5 = sld [smem:[#allocation0]]
  $region34: #{deeplabv3_forward.17} parent=0
    _
  %s7 = ssub.s32 1, %s5
  %s8 = scalar_select 0, %s7, %s5
  // Predicated region
  $region2: #{deeplabv3_forward.17} parent=0 // pred_check
    _
  $region3: #{deeplabv3_forward.17} parent=0 // pred_check_branch
    %10 = sbr.rel (0) target = $region5
  $region4: #{deeplabv3_forward.17} parent=0 // pred_region
    _
  $region5: #{deeplabv3_forward.17} parent=0 // pred_fallthru
    _
  // Predicated region
  $region6: #{deeplabv3_forward.17} parent=0 // pred_check
    _
  $region7: #{deeplabv3_forward.17} parent=0 // pred_check_branch
    %12 = sbr.rel (0) target = $region9
  $region8: #{deeplabv3_forward.17} parent=0 // pred_region
    _
  $region9: #{deeplabv3_forward.17} parent=0 // pred_fallthru
    _
  // Predicated region
  $region10: #{deeplabv3_forward.17} parent=0 // pred_check
    _
  $region11: #{deeplabv3_forward.17} parent=0 // pred_check_branch
    %14 = sbr.rel (0) target = $region13
  $region12: #{deeplabv3_forward.17} parent=0 // pred_region
    _
  $region13: #{deeplabv3_forward.17} parent=0 // pred_fallthru
    _
  // Predicated region
  $region14: #{deeplabv3_forward.17} parent=0 // pred_check
    _
  $region15: #{deeplabv3_forward.17} parent=0 // pred_check_branch
    %16 = sbr.rel (0) target = $region17
  $region16: #{deeplabv3_forward.17} parent=0 // pred_region
    _
  $region17: #{deeplabv3_forward.17} parent=0 // pred_fallthru
    _
  %p18 = scmp.eq.s32.totalorder 0, 0
  // Predicated region
  $region18: #{deeplabv3_forward.17} parent=0 // pred_check
    %p19 = pneg %p18
  $region19: #{deeplabv3_forward.17} parent=0 // pred_check_branch
    %21 = sbr.rel (%p19) target = $region21
  $region20: #{deeplabv3_forward.17} parent=0 // pred_region
    %22 = vst [vmem:[#allocation2] sm:$0xff] 0.0
    %23 = vst [vmem:[#allocation2 + $0x8] sm:$0xff] 0.0
  $region21: #{deeplabv3_forward.17} parent=0 // pred_fallthru
    _
  %v24 = vld [vmem:[#allocation2] sm:$0xff]
  %v25 = vld [vmem:[#allocation2 + $0x8] sm:$0xff]
  %v26 = vld [vmem:[%s0] sm:$0xff]
  %v27 = vld [vmem:[%s0 + $0x8] sm:$0xf]
  %v28 = vld [vmem:[%s0 + $0xc] sm:$0xff]
  %v29 = vld [vmem:[%s0 + $0x14] sm:$0xf]
  %v30 = vld [vmem:[%s1] sm:$0xf]
  %v31 = vld [vmem:[%s1 + $0x4] sm:$0xf]
  %v32 = vld [vmem:[%s1 + $0x8] sm:$0xf]
  %v33 = vld [vmem:[%s1 + $0xc] sm:$0xf]
  %v34 = vld [vmem:[%s1 + $0x10] sm:$0xf]
  %v35 = vld [vmem:[%s1 + $0x14] sm:$0xf]
  %v36 = vld [vmem:[%s1 + $0x18] sm:$0xf]
  %v37 = vld [vmem:[%s1 + $0x1c] sm:$0xf]
  %v38 = vld [vmem:[%s1 + $0x20] sm:$0xf]
  %v39 = vld [vmem:[%s1 + $0x24] sm:$0xf]
  %v40 = vld [vmem:[%s1 + $0x28] sm:$0xf]
  %v41 = vld [vmem:[%s1 + $0x2c] sm:$0xf]
  %v42 = vld [vmem:[%s1 + $0x30] sm:$0xf]
  %v43 = vld [vmem:[%s1 + $0x34] sm:$0xf]
  %v44 = vld [vmem:[%s1 + $0x38] sm:$0xf]
  %v45 = vld [vmem:[%s1 + $0x3c] sm:$0xf]
  %v46 = vld [vmem:[%s1 + $0x40] sm:$0xf]
  %v47 = vld [vmem:[%s1 + $0x44] sm:$0xf]
  %v48 = vld [vmem:[%s1 + $0x48] sm:$0xf]
  %v49 = vld [vmem:[%s1 + $0x4c] sm:$0xf]
  %v50 = vld [vmem:[%s1 + $0x50] sm:$0xf]
  %v51 = vld [vmem:[%s1 + $0x54] sm:$0xf]
  %v52 = vld [vmem:[%s1 + $0x58] sm:$0xf]
  %v53 = vld [vmem:[%s1 + $0x5c] sm:$0xf]
  %v54 = vld [vmem:[%s1 + $0x60] sm:$0xf]
  %v55 = vld [vmem:[%s1 + $0x64] sm:$0xf]
  %v56 = vld [vmem:[%s1 + $0x68] sm:$0xf]
  %v57 = vld [vmem:[%s1 + $0x6c] sm:$0xf]
  %v58 = vld [vmem:[%s1 + $0x70] sm:$0xf]
  %v59 = vld [vmem:[%s1 + $0x74] sm:$0xf]
  %v60 = vld [vmem:[%s1 + $0x78] sm:$0xf]
  %v61 = vld [vmem:[%s1 + $0x7c] sm:$0xf]
  %v62 = vld [vmem:[%s1 + $0x80] sm:$0xf]
  %v63 = vld [vmem:[%s1 + $0x84] sm:$0xf]
  %v64 = vld [vmem:[%s1 + $0x88] sm:$0xf]
  %v65 = vld [vmem:[%s1 + $0x8c] sm:$0xf]
  %v66 = vld [vmem:[%s1 + $0x90] sm:$0xf]
  %v67 = vld [vmem:[%s1 + $0x94] sm:$0xf]
  %v68 = vld [vmem:[%s1 + $0x98] sm:$0xf]
  %v69 = vld [vmem:[%s1 + $0x9c] sm:$0xf]
  %v70 = vld [vmem:[%s1 + $0xa0] sm:$0xf]
  %v71 = vld [vmem:[%s1 + $0xa4] sm:$0xf]
  %v72 = vld [vmem:[%s1 + $0xa8] sm:$0xf]
  %v73 = vld [vmem:[%s1 + $0xac] sm:$0xf]
  %v74 = vld [vmem:[%s1 + $0xb0] sm:$0xf]
  %v75 = vld [vmem:[%s1 + $0xb4] sm:$0xf]
  %v76 = vld [vmem:[%s1 + $0xb8] sm:$0xf]
  %v77 = vld [vmem:[%s1 + $0xbc] sm:$0xf]
  %v82 = vunpack.c.l.b16 %v26
  %v83 = vunpack.c.h.b16 %v26
  %v84 = vunpack.c.l.b16 %v27
  %v85 = vunpack.c.l.b16 %v28
  %v86 = vunpack.c.h.b16 %v28
  %v87 = vunpack.c.l.b16 %v29
  %v88 = vpack.c.b16 %v85, %v82
  %v89 = vpack.c.b16 %v86, %v83
  %v90 = vpack.c.b16 %v87, %v84
  %v142 = vunpack.c.l.b16 %v30
  %v143 = vunpack.c.l.b16 %v31
  %v144 = vunpack.c.l.b16 %v32
  %v145 = vunpack.c.l.b16 %v33
  %v146 = vunpack.c.l.b16 %v34
  %v147 = vunpack.c.l.b16 %v35
  %v148 = vunpack.c.l.b16 %v36
  %v149 = vunpack.c.l.b16 %v37
  %v150 = vunpack.c.l.b16 %v38
  %v151 = vunpack.c.l.b16 %v39
  %v152 = vunpack.c.l.b16 %v40
  %v153 = vunpack.c.l.b16 %v41
  %v154 = vunpack.c.l.b16 %v42
  %v155 = vunpack.c.l.b16 %v43
  %v156 = vunpack.c.l.b16 %v44
  %v157 = vunpack.c.l.b16 %v45
  %v158 = vunpack.c.l.b16 %v46
  %v159 = vunpack.c.l.b16 %v47
  %v160 = vunpack.c.l.b16 %v48
  %v161 = vunpack.c.l.b16 %v49
  %v162 = vunpack.c.l.b16 %v50
  %v163 = vunpack.c.l.b16 %v51
  %v164 = vunpack.c.l.b16 %v52
  %v165 = vunpack.c.l.b16 %v53
  %v166 = vunpack.c.l.b16 %v54
  %v167 = vunpack.c.l.b16 %v55
  %v168 = vunpack.c.l.b16 %v56
  %v169 = vunpack.c.l.b16 %v57
  %v170 = vunpack.c.l.b16 %v58
  %v171 = vunpack.c.l.b16 %v59
  %v172 = vunpack.c.l.b16 %v60
  %v173 = vunpack.c.l.b16 %v61
  %v174 = vunpack.c.l.b16 %v62
  %v175 = vunpack.c.l.b16 %v63
  %v176 = vunpack.c.l.b16 %v64
  %v177 = vunpack.c.l.b16 %v65
  %v178 = vunpack.c.l.b16 %v66
  %v179 = vunpack.c.l.b16 %v67
  %v180 = vunpack.c.l.b16 %v68
  %v181 = vunpack.c.l.b16 %v69
  %v182 = vunpack.c.l.b16 %v70
  %v183 = vunpack.c.l.b16 %v71
  %v184 = vunpack.c.l.b16 %v72
  %v185 = vunpack.c.l.b16 %v73
  %v186 = vunpack.c.l.b16 %v74
  %v187 = vunpack.c.l.b16 %v75
  %v188 = vunpack.c.l.b16 %v76
  %v189 = vunpack.c.l.b16 %v77
  %v190 = vpack.c.b16 %v143, %v142
  %v191 = vpack.c.b16 %v145, %v144
  %v192 = vpack.c.b16 %v147, %v146
  %v193 = vpack.c.b16 %v149, %v148
  %v194 = vpack.c.b16 %v151, %v150
  %v195 = vpack.c.b16 %v153, %v152
  %v196 = vpack.c.b16 %v155, %v154
  %v197 = vpack.c.b16 %v157, %v156
  %v198 = vpack.c.b16 %v159, %v158
  %v199 = vpack.c.b16 %v161, %v160
  %v200 = vpack.c.b16 %v163, %v162
  %v201 = vpack.c.b16 %v165, %v164
  %v202 = vpack.c.b16 %v167, %v166
  %v203 = vpack.c.b16 %v169, %v168
  %v204 = vpack.c.b16 %v171, %v170
  %v205 = vpack.c.b16 %v173, %v172
  %v206 = vpack.c.b16 %v175, %v174
  %v207 = vpack.c.b16 %v177, %v176
  %v208 = vpack.c.b16 %v179, %v178
  %v209 = vpack.c.b16 %v181, %v180
  %v210 = vpack.c.b16 %v183, %v182
  %v211 = vpack.c.b16 %v185, %v184
  %v212 = vpack.c.b16 %v187, %v186
  %v213 = vpack.c.b16 %v189, %v188
  %238 = vmatprep.subr.bf16.mxu0 0
  %239 = vmatpush1.bf16.msra.mxu0 %v197
  %240 = vmatprep.subr.bf16.mxu0 0
  %241 = vmatpush1.bf16.msra.mxu0 %v196
  %242 = vmatprep.subr.bf16.mxu0 0
  %243 = vmatpush1.bf16.msra.mxu0 %v195
  %244 = vmatprep.subr.bf16.mxu0 0
  %245 = vmatpush1.bf16.msra.mxu0 %v194
  %246 = vmatprep.subr.bf16.mxu0 0
  %247 = vmatpush1.bf16.msra.mxu0 %v193
  %248 = vmatprep.subr.bf16.mxu0 0
  %249 = vmatpush1.bf16.msra.mxu0 %v192
  %250 = vmatprep.subr.bf16.mxu0 0
  %251 = vmatpush1.bf16.msra.mxu0 %v191
  %252 = vmatprep.subr.bf16.mxu0 0
  %253 = vmatpush1.bf16.msra.mxu0 %v190
  %254 = vmatprep.subr.bf16.mxu0 0
  %255 = vmatpush2.bf16.msra.mxu0 %v205
  %256 = vmatprep.subr.bf16.mxu0 0
  %257 = vmatpush2.bf16.msra.mxu0 %v204
  %258 = vmatprep.subr.bf16.mxu0 0
  %259 = vmatpush2.bf16.msra.mxu0 %v203
  %260 = vmatprep.subr.bf16.mxu0 0
  %261 = vmatpush2.bf16.msra.mxu0 %v202
  %262 = vmatprep.subr.bf16.mxu0 0
  %263 = vmatpush2.bf16.msra.mxu0 %v201
  %264 = vmatprep.subr.bf16.mxu0 0
  %265 = vmatpush2.bf16.msra.mxu0 %v200
  %266 = vmatprep.subr.bf16.mxu0 0
  %267 = vmatpush2.bf16.msra.mxu0 %v199
  %268 = vmatprep.subr.bf16.mxu0 0
  %269 = vmatpush2.bf16.msra.mxu0 %v198
  %270 = vmatprep.mubr.bf16.mxu0 %v89
  %271 = vmatmul.mubr.bf16.gmra.mxu0 %v88
  %v272 = vpop.f32.mrf.mxu0
  %v273 = vadd.f32 0.0, %v272
  %v274 = vpop.f32.mrf.mxu0
  %v275 = vpop.f32.mrf.mxu0
  %v276 = vadd.f32 0.0, %v275
  %v277 = vpop.f32.mrf.mxu0
  %278 = vdwg.mxu0
  %279 = vmatprep.subr.bf16.mxu0 0
  %280 = vmatpush1.bf16.msra.mxu0 %v213
  %281 = vmatprep.subr.bf16.mxu0 0
  %282 = vmatpush1.bf16.msra.mxu0 %v212
  %283 = vmatprep.subr.bf16.mxu0 0
  %284 = vmatpush1.bf16.msra.mxu0 %v211
  %285 = vmatprep.subr.bf16.mxu0 0
  %286 = vmatpush1.bf16.msra.mxu0 %v210
  %287 = vmatprep.subr.bf16.mxu0 0
  %288 = vmatpush1.bf16.msra.mxu0 %v209
  %289 = vmatprep.subr.bf16.mxu0 0
  %290 = vmatpush1.bf16.msra.mxu0 %v208
  %291 = vmatprep.subr.bf16.mxu0 0
  %292 = vmatpush1.bf16.msra.mxu0 %v207
  %293 = vmatprep.subr.bf16.mxu0 0
  %294 = vmatpush1.bf16.msra.mxu0 %v206
  %295 = vmatprep.subr.bf16.mxu0 0
  %296 = vmatpush2.bf16.msra.mxu0 0
  %297 = vmatprep.subr.bf16.mxu0 0
  %298 = vmatpush2.bf16.msra.mxu0 0
  %299 = vmatprep.subr.bf16.mxu0 0
  %300 = vmatpush2.bf16.msra.mxu0 0
  %301 = vmatprep.subr.bf16.mxu0 0
  %302 = vmatpush2.bf16.msra.mxu0 0
  %303 = vmatprep.subr.bf16.mxu0 0
  %304 = vmatpush2.bf16.msra.mxu0 0
  %305 = vmatprep.subr.bf16.mxu0 0
  %306 = vmatpush2.bf16.msra.mxu0 0
  %307 = vmatprep.subr.bf16.mxu0 0
  %308 = vmatpush2.bf16.msra.mxu0 0
  %309 = vmatprep.subr.bf16.mxu0 0
  %310 = vmatpush2.bf16.msra.mxu0 0
  %311 = vmatprep.mubr.bf16.mxu0 0
  %312 = vmatmul.mubr.bf16.gmra.mxu0 %v90
  %v313 = vpop.f32.mrf.mxu0
  %v314 = vadd.f32 %v273, %v313
  %v315 = vpop.f32.mrf.mxu0
  %v316 = vpop.f32.mrf.mxu0
  %v317 = vadd.f32 %v276, %v316
  %v318 = vpop.f32.mrf.mxu0
  %319 = vdwg.mxu0
  %v320 = vadd.f32 %v24, %v314
  %v321 = vadd.f32 %v25, %v317
  %322 = vst [vmem:[#allocation2] sm:$0xff] %v320
  %323 = vst [vmem:[#allocation2 + $0x8] sm:$0xff] %v321
  // Predicated region
  $region22: #{deeplabv3_forward.17} parent=0 // pred_check
    %p324 = pneg %p18
  $region23: #{deeplabv3_forward.17} parent=0 // pred_check_branch
    %326 = sbr.rel (%p324) target = $region25
  $region24: #{deeplabv3_forward.17} parent=0 // pred_region
    %v327 = vld [vmem:[#allocation2] sm:$0xff]
    %v328 = vld [vmem:[#allocation2 + $0x8] sm:$0xff]
    %v329 = vld [vmem:[%s2] sm:$0x1]
    %v331 = vlaneseq
    %v332 = vshrl.u32 %v331, 7
    %v333 = vsub.s32 0, %v332
    %v334 = vrot.slane %v329, %v333
    %v336 = vmul.f32 %v327, %v334
    %v337 = vmul.f32 %v328, %v334
    %v338 = vld [vmem:[%s3] sm:$0x1]
    %v340 = vlaneseq
    %v341 = vshrl.u32 %v340, 7
    %v342 = vsub.s32 0, %v341
    %v343 = vrot.slane %v338, %v342
    %v345 = vadd.f32 %v336, %v343
    %v346 = vadd.f32 %v337, %v343
    %v347 = vmax.f32 %v345, 0.0
    %v348 = vmax.f32 %v346, 0.0
    %v349 = vpack.c.bf16 %v348, %v347
    %v351 = vunpack.c.l.b16 %v349
    %v352 = vunpack.c.h.b16 %v349
    %v353 = vpack.c.b16 %v351, %v351
    %v354 = vpack.c.b16 %v352, %v352
    %357 = vst [vmem:[%s4] sm:$0xf] %v353
    %358 = vst [vmem:[%s4 + $0x4] sm:$0xf] %v354
  $region25: #{deeplabv3_forward.17} parent=0 // pred_fallthru
    _
  // Predicated region
  $region26: #{deeplabv3_forward.17} parent=0 // pred_check
    _
  $region27: #{deeplabv3_forward.17} parent=0 // pred_check_branch
    %360 = sbr.rel (0) target = $region29
  $region28: #{deeplabv3_forward.17} parent=0 // pred_region
    _
  $region29: #{deeplabv3_forward.17} parent=0 // pred_fallthru
    _
  // Predicated region
  $region30: #{deeplabv3_forward.17} parent=0 // pred_check
    _
  $region31: #{deeplabv3_forward.17} parent=0 // pred_check_branch
    %362 = sbr.rel (0) target = $region33
  $region32: #{deeplabv3_forward.17} parent=0 // pred_region
    _
  $region33: #{deeplabv3_forward.17} parent=0 // pred_fallthru
    _

// kernel: deeplabv3_forward.22
$region0: #{deeplabv3_forward.22}
  #allocation0 [shape = 'u32[]', space=smem, size = 0x4, offset = 0x4, fixed_abs, tag = 'smem constant byte address 0x4 - core index']
  #allocation1 [shape = 'u32[144,128]{1,0:T(1,128)}', space=vmem, size = 0x12000, scoped, tag = 'internal scratch']
  #allocation2 [shape = 'f32[2,1,64]{2,1,0:T(1,128)}', space=vmem, size = 0x400, scoped, tag = 'scratch operand']
  %s0 = inlined_call_operand.vmem [shape: bf16[2,16,64], index: 0, kind: input, shape index: {}]
  %s1 = inlined_call_operand.vmem [shape: bf16[2,1,64], index: 1, kind: output, shape index: {}]
  %s2 = sld [smem:[#allocation0]]
  $region22: #{deeplabv3_forward.22} parent=0
    _
  %s4 = ssub.s32 1, %s2
  %s5 = scalar_select 0, %s4, %s2
  // Predicated region
  $region2: #{deeplabv3_forward.22} parent=0 // pred_check
    _
  $region3: #{deeplabv3_forward.22} parent=0 // pred_check_branch
    %7 = sbr.rel (0) target = $region5
  $region4: #{deeplabv3_forward.22} parent=0 // pred_region
    _
  $region5: #{deeplabv3_forward.22} parent=0 // pred_fallthru
    _
  %p8 = scmp.eq.s32.totalorder 0, 0
  // Predicated region
  $region6: #{deeplabv3_forward.22} parent=0 // pred_check
    %p9 = pneg %p8
  $region7: #{deeplabv3_forward.22} parent=0 // pred_check_branch
    %11 = sbr.rel (%p9) target = $region9
  $region8: #{deeplabv3_forward.22} parent=0 // pred_region
    %vm12 = vcmask 516096
    %13 = vst.msk [vmem:[#allocation2] sm:$0x1] %vm12, 0.0
    %14 = vst.msk [vmem:[#allocation2 + $0x1] sm:$0x1] %vm12, 0.0
  $region9: #{deeplabv3_forward.22} parent=0 // pred_fallthru
    _
  %v15 = vld [vmem:[#allocation2] sm:$0x1]
  %v16 = vld [vmem:[#allocation2 + $0x1] sm:$0x1]
  %v17 = vld [vmem:[%s0] sm:$0xf]
  %v18 = vld [vmem:[%s0 + $0x4] sm:$0xf]
  %v19 = vld [vmem:[%s0 + $0x8] sm:$0xf]
  %v20 = vld [vmem:[%s0 + $0xc] sm:$0xf]
  %v21 = vunpack.c.l.bf16 %v17
  %v22 = vunpack.c.l.bf16 %v18
  %v23 = vunpack.c.l.bf16 %v19
  %v24 = vunpack.c.l.bf16 %v20
  %vm25 = vcmask 523264
  %v26 = vsel %vm25, %v21, 0.0
  %v27 = vsel %vm25, %v22, 0.0
  %v28 = vadd.f32 %v26, %v27
  %v29 = vrot.slane %v28, 4
  %v30 = vadd.f32 %v28, %v29
  %v31 = vrot.slane %v30, 2
  %v32 = vadd.f32 %v30, %v31
  %v33 = vrot.slane %v32, 1
  %v34 = vadd.f32 %v32, %v33
  %v35 = vsel %vm25, %v23, 0.0
  %v36 = vsel %vm25, %v24, 0.0
  %v37 = vadd.f32 %v35, %v36
  %v38 = vrot.slane %v37, 4
  %v39 = vadd.f32 %v37, %v38
  %v40 = vrot.slane %v39, 2
  %v41 = vadd.f32 %v39, %v40
  %v42 = vrot.slane %v41, 1
  %v43 = vadd.f32 %v41, %v42
  %v44 = vadd.f32 %v15, %v34
  %v45 = vadd.f32 %v16, %v43
  %vm46 = vcmask 516096
  %47 = vst.msk [vmem:[#allocation2] sm:$0x1] %vm46, %v44
  %48 = vst.msk [vmem:[#allocation2 + $0x1] sm:$0x1] %vm46, %v45
  // Predicated region
  $region10: #{deeplabv3_forward.22} parent=0 // pred_check
    %p49 = pneg %p8
  $region11: #{deeplabv3_forward.22} parent=0 // pred_check_branch
    %51 = sbr.rel (%p49) target = $region13
  $region12: #{deeplabv3_forward.22} parent=0 // pred_region
    %v52 = vld [vmem:[#allocation2] sm:$0x1]
    %v53 = vld [vmem:[#allocation2 + $0x1] sm:$0x1]
    %v54 = vmul.f32 %v52, 0.25
    %v55 = vmul.f32 %v53, 0.25
    %v56 = vpack.c.bf16 %v54, %v54
    %v57 = vpack.c.bf16 %v55, %v55
    %vm58 = vcmask 516096
    %vm59 = vsmask.f32 256
    %vm60 = vmand %vm58, %vm59
    %v61 = vld [vmem:[%s1] sm:$0x1]
    %v62 = vsel %vm60, %v56, %v61
    %63 = vst [vmem:[%s1] sm:$0x1] %v62
    %v64 = vld [vmem:[%s1 + $0x1] sm:$0x1]
    %v65 = vsel %vm60, %v57, %v64
    %66 = vst [vmem:[%s1 + $0x1] sm:$0x1] %v65
  $region13: #{deeplabv3_forward.22} parent=0 // pred_fallthru
    _
  // Predicated region
  $region14: #{deeplabv3_forward.22} parent=0 // pred_check
    _
  $region15: #{deeplabv3_forward.22} parent=0 // pred_check_branch
    %68 = sbr.rel (0) target = $region17
  $region16: #{deeplabv3_forward.22} parent=0 // pred_region
    _
  $region17: #{deeplabv3_forward.22} parent=0 // pred_fallthru
    _
  // Predicated region
  $region18: #{deeplabv3_forward.22} parent=0 // pred_check
    _
  $region19: #{deeplabv3_forward.22} parent=0 // pred_check_branch
    %70 = sbr.rel (0) target = $region21
  $region20: #{deeplabv3_forward.22} parent=0 // pred_region
    _
  $region21: #{deeplabv3_forward.22} parent=0 // pred_fallthru
    _

// kernel: deeplabv3_forward.19
$region0: #{deeplabv3_forward.19}
  #allocation0 [shape = 'u32[]', space=smem, size = 0x4, offset = 0x4, fixed_abs, tag = 'smem constant byte address 0x4 - core index']
  #allocation1 [shape = 'u32[144,128]{1,0:T(1,128)}', space=vmem, size = 0x12000, scoped, tag = 'internal scratch']
  #allocation2 [shape = 'f32[16,128]{1,0:T(8,128)}', space=vmem, size = 0x2000, scoped, tag = 'scratch operand']
  %s0 = inlined_call_operand.vmem [shape: bf16[16,640], index: 0, kind: input, shape index: {}]
  %s1 = inlined_call_operand.vmem [shape: bf16[640,128], index: 1, kind: input, shape index: {}]
  %s2 = inlined_call_operand.vmem [shape: f32[1,128], index: 2, kind: input, shape index: {}]
  %s3 = inlined_call_operand.vmem [shape: f32[1,128], index: 3, kind: input, shape index: {}]
  %s4 = inlined_call_operand.vmem [shape: bf16[16,128], index: 4, kind: output, shape index: {}]
  %s5 = sld [smem:[#allocation0]]
  $region34: #{deeplabv3_forward.19} parent=0
    _
  %s7 = ssub.s32 1, %s5
  %s8 = scalar_select 0, %s7, %s5
  // Predicated region
  $region2: #{deeplabv3_forward.19} parent=0 // pred_check
    _
  $region3: #{deeplabv3_forward.19} parent=0 // pred_check_branch
    %10 = sbr.rel (0) target = $region5
  $region4: #{deeplabv3_forward.19} parent=0 // pred_region
    _
  $region5: #{deeplabv3_forward.19} parent=0 // pred_fallthru
    _
  // Predicated region
  $region6: #{deeplabv3_forward.19} parent=0 // pred_check
    _
  $region7: #{deeplabv3_forward.19} parent=0 // pred_check_branch
    %12 = sbr.rel (0) target = $region9
  $region8: #{deeplabv3_forward.19} parent=0 // pred_region
    _
  $region9: #{deeplabv3_forward.19} parent=0 // pred_fallthru
    _
  // Predicated region
  $region10: #{deeplabv3_forward.19} parent=0 // pred_check
    _
  $region11: #{deeplabv3_forward.19} parent=0 // pred_check_branch
    %14 = sbr.rel (0) target = $region13
  $region12: #{deeplabv3_forward.19} parent=0 // pred_region
    _
  $region13: #{deeplabv3_forward.19} parent=0 // pred_fallthru
    _
  // Predicated region
  $region14: #{deeplabv3_forward.19} parent=0 // pred_check
    _
  $region15: #{deeplabv3_forward.19} parent=0 // pred_check_branch
    %16 = sbr.rel (0) target = $region17
  $region16: #{deeplabv3_forward.19} parent=0 // pred_region
    _
  $region17: #{deeplabv3_forward.19} parent=0 // pred_fallthru
    _
  %p18 = scmp.eq.s32.totalorder 0, 0
  // Predicated region
  $region18: #{deeplabv3_forward.19} parent=0 // pred_check
    %p19 = pneg %p18
  $region19: #{deeplabv3_forward.19} parent=0 // pred_check_branch
    %21 = sbr.rel (%p19) target = $region21
  $region20: #{deeplabv3_forward.19} parent=0 // pred_region
    %22 = vst [vmem:[#allocation2] sm:$0xff] 0.0
    %23 = vst [vmem:[#allocation2 + $0x8] sm:$0xff] 0.0
  $region21: #{deeplabv3_forward.19} parent=0 // pred_fallthru
    _
  %v24 = vld [vmem:[#allocation2] sm:$0xff]
  %v25 = vld [vmem:[#allocation2 + $0x8] sm:$0xff]
  %v26 = vld [vmem:[%s0] sm:$0xff]
  %v27 = vld [vmem:[%s0 + $0x8] sm:$0xff]
  %v28 = vld [vmem:[%s0 + $0x10] sm:$0xf]
  %v29 = vld [vmem:[%s0 + $0x14] sm:$0xff]
  %v30 = vld [vmem:[%s0 + $0x1c] sm:$0xff]
  %v31 = vld [vmem:[%s0 + $0x24] sm:$0xf]
  %v32 = vld [vmem:[%s1] sm:$0xf]
  %v33 = vld [vmem:[%s1 + $0x4] sm:$0xf]
  %v34 = vld [vmem:[%s1 + $0x8] sm:$0xf]
  %v35 = vld [vmem:[%s1 + $0xc] sm:$0xf]
  %v36 = vld [vmem:[%s1 + $0x10] sm:$0xf]
  %v37 = vld [vmem:[%s1 + $0x14] sm:$0xf]
  %v38 = vld [vmem:[%s1 + $0x18] sm:$0xf]
  %v39 = vld [vmem:[%s1 + $0x1c] sm:$0xf]
  %v40 = vld [vmem:[%s1 + $0x20] sm:$0xf]
  %v41 = vld [vmem:[%s1 + $0x24] sm:$0xf]
  %v42 = vld [vmem:[%s1 + $0x28] sm:$0xf]
  %v43 = vld [vmem:[%s1 + $0x2c] sm:$0xf]
  %v44 = vld [vmem:[%s1 + $0x30] sm:$0xf]
  %v45 = vld [vmem:[%s1 + $0x34] sm:$0xf]
  %v46 = vld [vmem:[%s1 + $0x38] sm:$0xf]
  %v47 = vld [vmem:[%s1 + $0x3c] sm:$0xf]
  %v48 = vld [vmem:[%s1 + $0x40] sm:$0xf]
  %v49 = vld [vmem:[%s1 + $0x44] sm:$0xf]
  %v50 = vld [vmem:[%s1 + $0x48] sm:$0xf]
  %v51 = vld [vmem:[%s1 + $0x4c] sm:$0xf]
  %v52 = vld [vmem:[%s1 + $0x50] sm:$0xf]
  %v53 = vld [vmem:[%s1 + $0x54] sm:$0xf]
  %v54 = vld [vmem:[%s1 + $0x58] sm:$0xf]
  %v55 = vld [vmem:[%s1 + $0x5c] sm:$0xf]
  %v56 = vld [vmem:[%s1 + $0x60] sm:$0xf]
  %v57 = vld [vmem:[%s1 + $0x64] sm:$0xf]
  %v58 = vld [vmem:[%s1 + $0x68] sm:$0xf]
  %v59 = vld [vmem:[%s1 + $0x6c] sm:$0xf]
  %v60 = vld [vmem:[%s1 + $0x70] sm:$0xf]
  %v61 = vld [vmem:[%s1 + $0x74] sm:$0xf]
  %v62 = vld [vmem:[%s1 + $0x78] sm:$0xf]
  %v63 = vld [vmem:[%s1 + $0x7c] sm:$0xf]
  %v64 = vld [vmem:[%s1 + $0x80] sm:$0xf]
  %v65 = vld [vmem:[%s1 + $0x84] sm:$0xf]
  %v66 = vld [vmem:[%s1 + $0x88] sm:$0xf]
  %v67 = vld [vmem:[%s1 + $0x8c] sm:$0xf]
  %v68 = vld [vmem:[%s1 + $0x90] sm:$0xf]
  %v69 = vld [vmem:[%s1 + $0x94] sm:$0xf]
  %v70 = vld [vmem:[%s1 + $0x98] sm:$0xf]
  %v71 = vld [vmem:[%s1 + $0x9c] sm:$0xf]
  %v72 = vld [vmem:[%s1 + $0xa0] sm:$0xf]
  %v73 = vld [vmem:[%s1 + $0xa4] sm:$0xf]
  %v74 = vld [vmem:[%s1 + $0xa8] sm:$0xf]
  %v75 = vld [vmem:[%s1 + $0xac] sm:$0xf]
  %v76 = vld [vmem:[%s1 + $0xb0] sm:$0xf]
  %v77 = vld [vmem:[%s1 + $0xb4] sm:$0xf]
  %v78 = vld [vmem:[%s1 + $0xb8] sm:$0xf]
  %v79 = vld [vmem:[%s1 + $0xbc] sm:$0xf]
  %v80 = vld [vmem:[%s1 + $0xc0] sm:$0xf]
  %v81 = vld [vmem:[%s1 + $0xc4] sm:$0xf]
  %v82 = vld [vmem:[%s1 + $0xc8] sm:$0xf]
  %v83 = vld [vmem:[%s1 + $0xcc] sm:$0xf]
  %v84 = vld [vmem:[%s1 + $0xd0] sm:$0xf]
  %v85 = vld [vmem:[%s1 + $0xd4] sm:$0xf]
  %v86 = vld [vmem:[%s1 + $0xd8] sm:$0xf]
  %v87 = vld [vmem:[%s1 + $0xdc] sm:$0xf]
  %v88 = vld [vmem:[%s1 + $0xe0] sm:$0xf]
  %v89 = vld [vmem:[%s1 + $0xe4] sm:$0xf]
  %v90 = vld [vmem:[%s1 + $0xe8] sm:$0xf]
  %v91 = vld [vmem:[%s1 + $0xec] sm:$0xf]
  %v92 = vld [vmem:[%s1 + $0xf0] sm:$0xf]
  %v93 = vld [vmem:[%s1 + $0xf4] sm:$0xf]
  %v94 = vld [vmem:[%s1 + $0xf8] sm:$0xf]
  %v95 = vld [vmem:[%s1 + $0xfc] sm:$0xf]
  %v96 = vld [vmem:[%s1 + $0x100] sm:$0xf]
  %v97 = vld [vmem:[%s1 + $0x104] sm:$0xf]
  %v98 = vld [vmem:[%s1 + $0x108] sm:$0xf]
  %v99 = vld [vmem:[%s1 + $0x10c] sm:$0xf]
  %v100 = vld [vmem:[%s1 + $0x110] sm:$0xf]
  %v101 = vld [vmem:[%s1 + $0x114] sm:$0xf]
  %v102 = vld [vmem:[%s1 + $0x118] sm:$0xf]
  %v103 = vld [vmem:[%s1 + $0x11c] sm:$0xf]
  %v104 = vld [vmem:[%s1 + $0x120] sm:$0xf]
  %v105 = vld [vmem:[%s1 + $0x124] sm:$0xf]
  %v106 = vld [vmem:[%s1 + $0x128] sm:$0xf]
  %v107 = vld [vmem:[%s1 + $0x12c] sm:$0xf]
  %v108 = vld [vmem:[%s1 + $0x130] sm:$0xf]
  %v109 = vld [vmem:[%s1 + $0x134] sm:$0xf]
  %v110 = vld [vmem:[%s1 + $0x138] sm:$0xf]
  %v111 = vld [vmem:[%s1 + $0x13c] sm:$0xf]
  %v118 = vunpack.c.l.b16 %v26
  %v119 = vunpack.c.h.b16 %v26
  %v120 = vunpack.c.l.b16 %v27
  %v121 = vunpack.c.h.b16 %v27
  %v122 = vunpack.c.l.b16 %v28
  %v123 = vunpack.c.l.b16 %v29
  %v124 = vunpack.c.h.b16 %v29
  %v125 = vunpack.c.l.b16 %v30
  %v126 = vunpack.c.h.b16 %v30
  %v127 = vunpack.c.l.b16 %v31
  %v128 = vpack.c.b16 %v123, %v118
  %v129 = vpack.c.b16 %v124, %v119
  %v130 = vpack.c.b16 %v125, %v120
  %v131 = vpack.c.b16 %v126, %v121
  %v132 = vpack.c.b16 %v127, %v122
  %v218 = vunpack.c.l.b16 %v32
  %v219 = vunpack.c.l.b16 %v33
  %v220 = vunpack.c.l.b16 %v34
  %v221 = vunpack.c.l.b16 %v35
  %v222 = vunpack.c.l.b16 %v36
  %v223 = vunpack.c.l.b16 %v37
  %v224 = vunpack.c.l.b16 %v38
  %v225 = vunpack.c.l.b16 %v39
  %v226 = vunpack.c.l.b16 %v40
  %v227 = vunpack.c.l.b16 %v41
  %v228 = vunpack.c.l.b16 %v42
  %v229 = vunpack.c.l.b16 %v43
  %v230 = vunpack.c.l.b16 %v44
  %v231 = vunpack.c.l.b16 %v45
  %v232 = vunpack.c.l.b16 %v46
  %v233 = vunpack.c.l.b16 %v47
  %v234 = vunpack.c.l.b16 %v48
  %v235 = vunpack.c.l.b16 %v49
  %v236 = vunpack.c.l.b16 %v50
  %v237 = vunpack.c.l.b16 %v51
  %v238 = vunpack.c.l.b16 %v52
  %v239 = vunpack.c.l.b16 %v53
  %v240 = vunpack.c.l.b16 %v54
  %v241 = vunpack.c.l.b16 %v55
  %v242 = vunpack.c.l.b16 %v56
  %v243 = vunpack.c.l.b16 %v57
  %v244 = vunpack.c.l.b16 %v58
  %v245 = vunpack.c.l.b16 %v59
  %v246 = vunpack.c.l.b16 %v60
  %v247 = vunpack.c.l.b16 %v61
  %v248 = vunpack.c.l.b16 %v62
  %v249 = vunpack.c.l.b16 %v63
  %v250 = vunpack.c.l.b16 %v64
  %v251 = vunpack.c.l.b16 %v65
  %v252 = vunpack.c.l.b16 %v66
  %v253 = vunpack.c.l.b16 %v67
  %v254 = vunpack.c.l.b16 %v68
  %v255 = vunpack.c.l.b16 %v69
  %v256 = vunpack.c.l.b16 %v70
  %v257 = vunpack.c.l.b16 %v71
  %v258 = vunpack.c.l.b16 %v72
  %v259 = vunpack.c.l.b16 %v73
  %v260 = vunpack.c.l.b16 %v74
  %v261 = vunpack.c.l.b16 %v75
  %v262 = vunpack.c.l.b16 %v76
  %v263 = vunpack.c.l.b16 %v77
  %v264 = vunpack.c.l.b16 %v78
  %v265 = vunpack.c.l.b16 %v79
  %v266 = vunpack.c.l.b16 %v80
  %v267 = vunpack.c.l.b16 %v81
  %v268 = vunpack.c.l.b16 %v82
  %v269 = vunpack.c.l.b16 %v83
  %v270 = vunpack.c.l.b16 %v84
  %v271 = vunpack.c.l.b16 %v85
  %v272 = vunpack.c.l.b16 %v86
  %v273 = vunpack.c.l.b16 %v87
  %v274 = vunpack.c.l.b16 %v88
  %v275 = vunpack.c.l.b16 %v89
  %v276 = vunpack.c.l.b16 %v90
  %v277 = vunpack.c.l.b16 %v91
  %v278 = vunpack.c.l.b16 %v92
  %v279 = vunpack.c.l.b16 %v93
  %v280 = vunpack.c.l.b16 %v94
  %v281 = vunpack.c.l.b16 %v95
  %v282 = vunpack.c.l.b16 %v96
  %v283 = vunpack.c.l.b16 %v97
  %v284 = vunpack.c.l.b16 %v98
  %v285 = vunpack.c.l.b16 %v99
  %v286 = vunpack.c.l.b16 %v100
  %v287 = vunpack.c.l.b16 %v101
  %v288 = vunpack.c.l.b16 %v102
  %v289 = vunpack.c.l.b16 %v103
  %v290 = vunpack.c.l.b16 %v104
  %v291 = vunpack.c.l.b16 %v105
  %v292 = vunpack.c.l.b16 %v106
  %v293 = vunpack.c.l.b16 %v107
  %v294 = vunpack.c.l.b16 %v108
  %v295 = vunpack.c.l.b16 %v109
  %v296 = vunpack.c.l.b16 %v110
  %v297 = vunpack.c.l.b16 %v111
  %v298 = vpack.c.b16 %v219, %v218
  %v299 = vpack.c.b16 %v221, %v220
  %v300 = vpack.c.b16 %v223, %v222
  %v301 = vpack.c.b16 %v225, %v224
  %v302 = vpack.c.b16 %v227, %v226
  %v303 = vpack.c.b16 %v229, %v228
  %v304 = vpack.c.b16 %v231, %v230
  %v305 = vpack.c.b16 %v233, %v232
  %v306 = vpack.c.b16 %v235, %v234
  %v307 = vpack.c.b16 %v237, %v236
  %v308 = vpack.c.b16 %v239, %v238
  %v309 = vpack.c.b16 %v241, %v240
  %v310 = vpack.c.b16 %v243, %v242
  %v311 = vpack.c.b16 %v245, %v244
  %v312 = vpack.c.b16 %v247, %v246
  %v313 = vpack.c.b16 %v249, %v248
  %v314 = vpack.c.b16 %v251, %v250
  %v315 = vpack.c.b16 %v253, %v252
  %v316 = vpack.c.b16 %v255, %v254
  %v317 = vpack.c.b16 %v257, %v256
  %v318 = vpack.c.b16 %v259, %v258
  %v319 = vpack.c.b16 %v261, %v260
  %v320 = vpack.c.b16 %v263, %v262
  %v321 = vpack.c.b16 %v265, %v264
  %v322 = vpack.c.b16 %v267, %v266
  %v323 = vpack.c.b16 %v269, %v268
  %v324 = vpack.c.b16 %v271, %v270
  %v325 = vpack.c.b16 %v273, %v272
  %v326 = vpack.c.b16 %v275, %v274
  %v327 = vpack.c.b16 %v277, %v276
  %v328 = vpack.c.b16 %v279, %v278
  %v329 = vpack.c.b16 %v281, %v280
  %v330 = vpack.c.b16 %v283, %v282
  %v331 = vpack.c.b16 %v285, %v284
  %v332 = vpack.c.b16 %v287, %v286
  %v333 = vpack.c.b16 %v289, %v288
  %v334 = vpack.c.b16 %v291, %v290
  %v335 = vpack.c.b16 %v293, %v292
  %v336 = vpack.c.b16 %v295, %v294
  %v337 = vpack.c.b16 %v297, %v296
  %378 = vmatprep.subr.bf16.mxu0 0
  %379 = vmatpush1.bf16.msra.mxu0 %v305
  %380 = vmatprep.subr.bf16.mxu0 0
  %381 = vmatpush1.bf16.msra.mxu0 %v304
  %382 = vmatprep.subr.bf16.mxu0 0
  %383 = vmatpush1.bf16.msra.mxu0 %v303
  %384 = vmatprep.subr.bf16.mxu0 0
  %385 = vmatpush1.bf16.msra.mxu0 %v302
  %386 = vmatprep.subr.bf16.mxu0 0
  %387 = vmatpush1.bf16.msra.mxu0 %v301
  %388 = vmatprep.subr.bf16.mxu0 0
  %389 = vmatpush1.bf16.msra.mxu0 %v300
  %390 = vmatprep.subr.bf16.mxu0 0
  %391 = vmatpush1.bf16.msra.mxu0 %v299
  %392 = vmatprep.subr.bf16.mxu0 0
  %393 = vmatpush1.bf16.msra.mxu0 %v298
  %394 = vmatprep.subr.bf16.mxu0 0
  %395 = vmatpush2.bf16.msra.mxu0 %v313
  %396 = vmatprep.subr.bf16.mxu0 0
  %397 = vmatpush2.bf16.msra.mxu0 %v312
  %398 = vmatprep.subr.bf16.mxu0 0
  %399 = vmatpush2.bf16.msra.mxu0 %v311
  %400 = vmatprep.subr.bf16.mxu0 0
  %401 = vmatpush2.bf16.msra.mxu0 %v310
  %402 = vmatprep.subr.bf16.mxu0 0
  %403 = vmatpush2.bf16.msra.mxu0 %v309
  %404 = vmatprep.subr.bf16.mxu0 0
  %405 = vmatpush2.bf16.msra.mxu0 %v308
  %406 = vmatprep.subr.bf16.mxu0 0
  %407 = vmatpush2.bf16.msra.mxu0 %v307
  %408 = vmatprep.subr.bf16.mxu0 0
  %409 = vmatpush2.bf16.msra.mxu0 %v306
  %410 = vmatprep.mubr.bf16.mxu0 %v129
  %411 = vmatmul.mubr.bf16.gmra.mxu0 %v128
  %v412 = vpop.f32.mrf.mxu0
  %v413 = vadd.f32 0.0, %v412
  %v414 = vpop.f32.mrf.mxu0
  %v415 = vpop.f32.mrf.mxu0
  %v416 = vadd.f32 0.0, %v415
  %v417 = vpop.f32.mrf.mxu0
  %418 = vdwg.mxu0
  %419 = vmatprep.subr.bf16.mxu0 0
  %420 = vmatpush1.bf16.msra.mxu0 %v321
  %421 = vmatprep.subr.bf16.mxu0 0
  %422 = vmatpush1.bf16.msra.mxu0 %v320
  %423 = vmatprep.subr.bf16.mxu0 0
  %424 = vmatpush1.bf16.msra.mxu0 %v319
  %425 = vmatprep.subr.bf16.mxu0 0
  %426 = vmatpush1.bf16.msra.mxu0 %v318
  %427 = vmatprep.subr.bf16.mxu0 0
  %428 = vmatpush1.bf16.msra.mxu0 %v317
  %429 = vmatprep.subr.bf16.mxu0 0
  %430 = vmatpush1.bf16.msra.mxu0 %v316
  %431 = vmatprep.subr.bf16.mxu0 0
  %432 = vmatpush1.bf16.msra.mxu0 %v315
  %433 = vmatprep.subr.bf16.mxu0 0
  %434 = vmatpush1.bf16.msra.mxu0 %v314
  %435 = vmatprep.subr.bf16.mxu0 0
  %436 = vmatpush2.bf16.msra.mxu0 %v329
  %437 = vmatprep.subr.bf16.mxu0 0
  %438 = vmatpush2.bf16.msra.mxu0 %v328
  %439 = vmatprep.subr.bf16.mxu0 0
  %440 = vmatpush2.bf16.msra.mxu0 %v327
  %441 = vmatprep.subr.bf16.mxu0 0
  %442 = vmatpush2.bf16.msra.mxu0 %v326
  %443 = vmatprep.subr.bf16.mxu0 0
  %444 = vmatpush2.bf16.msra.mxu0 %v325
  %445 = vmatprep.subr.bf16.mxu0 0
  %446 = vmatpush2.bf16.msra.mxu0 %v324
  %447 = vmatprep.subr.bf16.mxu0 0
  %448 = vmatpush2.bf16.msra.mxu0 %v323
  %449 = vmatprep.subr.bf16.mxu0 0
  %450 = vmatpush2.bf16.msra.mxu0 %v322
  %451 = vmatprep.mubr.bf16.mxu0 %v131
  %452 = vmatmul.mubr.bf16.gmra.mxu0 %v130
  %v453 = vpop.f32.mrf.mxu0
  %v454 = vadd.f32 %v413, %v453
  %v455 = vpop.f32.mrf.mxu0
  %v456 = vpop.f32.mrf.mxu0
  %v457 = vadd.f32 %v416, %v456
  %v458 = vpop.f32.mrf.mxu0
  %459 = vdwg.mxu0
  %460 = vmatprep.subr.bf16.mxu0 0
  %461 = vmatpush1.bf16.msra.mxu0 %v337
  %462 = vmatprep.subr.bf16.mxu0 0
  %463 = vmatpush1.bf16.msra.mxu0 %v336
  %464 = vmatprep.subr.bf16.mxu0 0
  %465 = vmatpush1.bf16.msra.mxu0 %v335
  %466 = vmatprep.subr.bf16.mxu0 0
  %467 = vmatpush1.bf16.msra.mxu0 %v334
  %468 = vmatprep.subr.bf16.mxu0 0
  %469 = vmatpush1.bf16.msra.mxu0 %v333
  %470 = vmatprep.subr.bf16.mxu0 0
  %471 = vmatpush1.bf16.msra.mxu0 %v332
  %472 = vmatprep.subr.bf16.mxu0 0
  %473 = vmatpush1.bf16.msra.mxu0 %v331
  %474 = vmatprep.subr.bf16.mxu0 0
  %475 = vmatpush1.bf16.msra.mxu0 %v330
  %476 = vmatprep.subr.bf16.mxu0 0
  %477 = vmatpush2.bf16.msra.mxu0 0
  %478 = vmatprep.subr.bf16.mxu0 0
  %479 = vmatpush2.bf16.msra.mxu0 0
  %480 = vmatprep.subr.bf16.mxu0 0
  %481 = vmatpush2.bf16.msra.mxu0 0
  %482 = vmatprep.subr.bf16.mxu0 0
  %483 = vmatpush2.bf16.msra.mxu0 0
  %484 = vmatprep.subr.bf16.mxu0 0
  %485 = vmatpush2.bf16.msra.mxu0 0
  %486 = vmatprep.subr.bf16.mxu0 0
  %487 = vmatpush2.bf16.msra.mxu0 0
  %488 = vmatprep.subr.bf16.mxu0 0
  %489 = vmatpush2.bf16.msra.mxu0 0
  %490 = vmatprep.subr.bf16.mxu0 0
  %491 = vmatpush2.bf16.msra.mxu0 0
  %492 = vmatprep.mubr.bf16.mxu0 0
  %493 = vmatmul.mubr.bf16.gmra.mxu0 %v132
  %v494 = vpop.f32.mrf.mxu0
  %v495 = vadd.f32 %v454, %v494
  %v496 = vpop.f32.mrf.mxu0
  %v497 = vpop.f32.mrf.mxu0
  %v498 = vadd.f32 %v457, %v497
  %v499 = vpop.f32.mrf.mxu0
  %500 = vdwg.mxu0
  %v501 = vadd.f32 %v24, %v495
  %v502 = vadd.f32 %v25, %v498
  %503 = vst [vmem:[#allocation2] sm:$0xff] %v501
  %504 = vst [vmem:[#allocation2 + $0x8] sm:$0xff] %v502
  // Predicated region
  $region22: #{deeplabv3_forward.19} parent=0 // pred_check
    %p505 = pneg %p18
  $region23: #{deeplabv3_forward.19} parent=0 // pred_check_branch
    %507 = sbr.rel (%p505) target = $region25
  $region24: #{deeplabv3_forward.19} parent=0 // pred_region
    %v508 = vld [vmem:[#allocation2] sm:$0xff]
    %v509 = vld [vmem:[#allocation2 + $0x8] sm:$0xff]
    %v510 = vld [vmem:[%s2] sm:$0x1]
    %v512 = vlaneseq
    %v513 = vshrl.u32 %v512, 7
    %v514 = vsub.s32 0, %v513
    %v515 = vrot.slane %v510, %v514
    %v517 = vmul.f32 %v508, %v515
    %v518 = vmul.f32 %v509, %v515
    %v519 = vld [vmem:[%s3] sm:$0x1]
    %v521 = vlaneseq
    %v522 = vshrl.u32 %v521, 7
    %v523 = vsub.s32 0, %v522
    %v524 = vrot.slane %v519, %v523
    %v526 = vadd.f32 %v517, %v524
    %v527 = vadd.f32 %v518, %v524
    %v528 = vmax.f32 %v526, 0.0
    %v529 = vmax.f32 %v527, 0.0
    %v530 = vpack.c.bf16 %v529, %v528
    %v532 = vunpack.c.l.b16 %v530
    %v533 = vunpack.c.h.b16 %v530
    %v534 = vpack.c.b16 %v532, %v532
    %v535 = vpack.c.b16 %v533, %v533
    %538 = vst [vmem:[%s4] sm:$0xf] %v534
    %539 = vst [vmem:[%s4 + $0x4] sm:$0xf] %v535
  $region25: #{deeplabv3_forward.19} parent=0 // pred_fallthru
    _
  // Predicated region
  $region26: #{deeplabv3_forward.19} parent=0 // pred_check
    _
  $region27: #{deeplabv3_forward.19} parent=0 // pred_check_branch
    %541 = sbr.rel (0) target = $region29
  $region28: #{deeplabv3_forward.19} parent=0 // pred_region
    _
  $region29: #{deeplabv3_forward.19} parent=0 // pred_fallthru
    _
  // Predicated region
  $region30: #{deeplabv3_forward.19} parent=0 // pred_check
    _
  $region31: #{deeplabv3_forward.19} parent=0 // pred_check_branch
    %543 = sbr.rel (0) target = $region33
  $region32: #{deeplabv3_forward.19} parent=0 // pred_region
    _
  $region33: #{deeplabv3_forward.19} parent=0 // pred_fallthru
    _

// kernel: deeplabv3_forward.23
$region0: #{deeplabv3_forward.23}
  #allocation0 [shape = 'u32[]', space=smem, size = 0x4, offset = 0x4, fixed_abs, tag = 'smem constant byte address 0x4 - core index']
  #allocation1 [shape = 'u32[144,128]{1,0:T(1,128)}', space=vmem, size = 0x12000, scoped, tag = 'internal scratch']
  #allocation2 [shape = 'f32[16,128]{1,0:T(8,128)}', space=vmem, size = 0x2000, scoped, tag = 'scratch operand']
  %s0 = inlined_call_operand.vmem [shape: bf16[16,128], index: 0, kind: input, shape index: {}]
  %s1 = inlined_call_operand.vmem [shape: bf16[128,128], index: 1, kind: input, shape index: {}]
  %s2 = inlined_call_operand.vmem [shape: f32[1,128], index: 2, kind: input, shape index: {}]
  %s3 = inlined_call_operand.vmem [shape: f32[1,128], index: 3, kind: input, shape index: {}]
  %s4 = inlined_call_operand.vmem [shape: bf16[16,128], index: 4, kind: output, shape index: {}]
  %s5 = sld [smem:[#allocation0]]
  $region34: #{deeplabv3_forward.23} parent=0
    _
  %s7 = ssub.s32 1, %s5
  %s8 = scalar_select 0, %s7, %s5
  // Predicated region
  $region2: #{deeplabv3_forward.23} parent=0 // pred_check
    _
  $region3: #{deeplabv3_forward.23} parent=0 // pred_check_branch
    %10 = sbr.rel (0) target = $region5
  $region4: #{deeplabv3_forward.23} parent=0 // pred_region
    _
  $region5: #{deeplabv3_forward.23} parent=0 // pred_fallthru
    _
  // Predicated region
  $region6: #{deeplabv3_forward.23} parent=0 // pred_check
    _
  $region7: #{deeplabv3_forward.23} parent=0 // pred_check_branch
    %12 = sbr.rel (0) target = $region9
  $region8: #{deeplabv3_forward.23} parent=0 // pred_region
    _
  $region9: #{deeplabv3_forward.23} parent=0 // pred_fallthru
    _
  // Predicated region
  $region10: #{deeplabv3_forward.23} parent=0 // pred_check
    _
  $region11: #{deeplabv3_forward.23} parent=0 // pred_check_branch
    %14 = sbr.rel (0) target = $region13
  $region12: #{deeplabv3_forward.23} parent=0 // pred_region
    _
  $region13: #{deeplabv3_forward.23} parent=0 // pred_fallthru
    _
  // Predicated region
  $region14: #{deeplabv3_forward.23} parent=0 // pred_check
    _
  $region15: #{deeplabv3_forward.23} parent=0 // pred_check_branch
    %16 = sbr.rel (0) target = $region17
  $region16: #{deeplabv3_forward.23} parent=0 // pred_region
    _
  $region17: #{deeplabv3_forward.23} parent=0 // pred_fallthru
    _
  %p18 = scmp.eq.s32.totalorder 0, 0
  // Predicated region
  $region18: #{deeplabv3_forward.23} parent=0 // pred_check
    %p19 = pneg %p18
  $region19: #{deeplabv3_forward.23} parent=0 // pred_check_branch
    %21 = sbr.rel (%p19) target = $region21
  $region20: #{deeplabv3_forward.23} parent=0 // pred_region
    %22 = vst [vmem:[#allocation2] sm:$0xff] 0.0
    %23 = vst [vmem:[#allocation2 + $0x8] sm:$0xff] 0.0
  $region21: #{deeplabv3_forward.23} parent=0 // pred_fallthru
    _
  %v24 = vld [vmem:[#allocation2] sm:$0xff]
  %v25 = vld [vmem:[#allocation2 + $0x8] sm:$0xff]
  %v26 = vld [vmem:[%s0] sm:$0xf]
  %v27 = vld [vmem:[%s0 + $0x4] sm:$0xf]
  %v28 = vld [vmem:[%s1] sm:$0xf]
  %v29 = vld [vmem:[%s1 + $0x4] sm:$0xf]
  %v30 = vld [vmem:[%s1 + $0x8] sm:$0xf]
  %v31 = vld [vmem:[%s1 + $0xc] sm:$0xf]
  %v32 = vld [vmem:[%s1 + $0x10] sm:$0xf]
  %v33 = vld [vmem:[%s1 + $0x14] sm:$0xf]
  %v34 = vld [vmem:[%s1 + $0x18] sm:$0xf]
  %v35 = vld [vmem:[%s1 + $0x1c] sm:$0xf]
  %v36 = vld [vmem:[%s1 + $0x20] sm:$0xf]
  %v37 = vld [vmem:[%s1 + $0x24] sm:$0xf]
  %v38 = vld [vmem:[%s1 + $0x28] sm:$0xf]
  %v39 = vld [vmem:[%s1 + $0x2c] sm:$0xf]
  %v40 = vld [vmem:[%s1 + $0x30] sm:$0xf]
  %v41 = vld [vmem:[%s1 + $0x34] sm:$0xf]
  %v42 = vld [vmem:[%s1 + $0x38] sm:$0xf]
  %v43 = vld [vmem:[%s1 + $0x3c] sm:$0xf]
  %v46 = vunpack.c.l.b16 %v26
  %v47 = vunpack.c.l.b16 %v27
  %v48 = vpack.c.b16 %v47, %v46
  %v66 = vunpack.c.l.b16 %v28
  %v67 = vunpack.c.l.b16 %v29
  %v68 = vunpack.c.l.b16 %v30
  %v69 = vunpack.c.l.b16 %v31
  %v70 = vunpack.c.l.b16 %v32
  %v71 = vunpack.c.l.b16 %v33
  %v72 = vunpack.c.l.b16 %v34
  %v73 = vunpack.c.l.b16 %v35
  %v74 = vunpack.c.l.b16 %v36
  %v75 = vunpack.c.l.b16 %v37
  %v76 = vunpack.c.l.b16 %v38
  %v77 = vunpack.c.l.b16 %v39
  %v78 = vunpack.c.l.b16 %v40
  %v79 = vunpack.c.l.b16 %v41
  %v80 = vunpack.c.l.b16 %v42
  %v81 = vunpack.c.l.b16 %v43
  %v82 = vpack.c.b16 %v67, %v66
  %v83 = vpack.c.b16 %v69, %v68
  %v84 = vpack.c.b16 %v71, %v70
  %v85 = vpack.c.b16 %v73, %v72
  %v86 = vpack.c.b16 %v75, %v74
  %v87 = vpack.c.b16 %v77, %v76
  %v88 = vpack.c.b16 %v79, %v78
  %v89 = vpack.c.b16 %v81, %v80
  %98 = vmatprep.subr.bf16.mxu0 0
  %99 = vmatpush1.bf16.msra.mxu0 %v89
  %100 = vmatprep.subr.bf16.mxu0 0
  %101 = vmatpush1.bf16.msra.mxu0 %v88
  %102 = vmatprep.subr.bf16.mxu0 0
  %103 = vmatpush1.bf16.msra.mxu0 %v87
  %104 = vmatprep.subr.bf16.mxu0 0
  %105 = vmatpush1.bf16.msra.mxu0 %v86
  %106 = vmatprep.subr.bf16.mxu0 0
  %107 = vmatpush1.bf16.msra.mxu0 %v85
  %108 = vmatprep.subr.bf16.mxu0 0
  %109 = vmatpush1.bf16.msra.mxu0 %v84
  %110 = vmatprep.subr.bf16.mxu0 0
  %111 = vmatpush1.bf16.msra.mxu0 %v83
  %112 = vmatprep.subr.bf16.mxu0 0
  %113 = vmatpush1.bf16.msra.mxu0 %v82
  %114 = vmatprep.subr.bf16.mxu0 0
  %115 = vmatpush2.bf16.msra.mxu0 0
  %116 = vmatprep.subr.bf16.mxu0 0
  %117 = vmatpush2.bf16.msra.mxu0 0
  %118 = vmatprep.subr.bf16.mxu0 0
  %119 = vmatpush2.bf16.msra.mxu0 0
  %120 = vmatprep.subr.bf16.mxu0 0
  %121 = vmatpush2.bf16.msra.mxu0 0
  %122 = vmatprep.subr.bf16.mxu0 0
  %123 = vmatpush2.bf16.msra.mxu0 0
  %124 = vmatprep.subr.bf16.mxu0 0
  %125 = vmatpush2.bf16.msra.mxu0 0
  %126 = vmatprep.subr.bf16.mxu0 0
  %127 = vmatpush2.bf16.msra.mxu0 0
  %128 = vmatprep.subr.bf16.mxu0 0
  %129 = vmatpush2.bf16.msra.mxu0 0
  %130 = vmatprep.mubr.bf16.mxu0 0
  %131 = vmatmul.mubr.bf16.gmra.mxu0 %v48
  %v132 = vpop.f32.mrf.mxu0
  %v133 = vadd.f32 0.0, %v132
  %v134 = vpop.f32.mrf.mxu0
  %v135 = vpop.f32.mrf.mxu0
  %v136 = vadd.f32 0.0, %v135
  %v137 = vpop.f32.mrf.mxu0
  %138 = vdwg.mxu0
  %v139 = vadd.f32 %v24, %v133
  %v140 = vadd.f32 %v25, %v136
  %141 = vst [vmem:[#allocation2] sm:$0xff] %v139
  %142 = vst [vmem:[#allocation2 + $0x8] sm:$0xff] %v140
  // Predicated region
  $region22: #{deeplabv3_forward.23} parent=0 // pred_check
    %p143 = pneg %p18
  $region23: #{deeplabv3_forward.23} parent=0 // pred_check_branch
    %145 = sbr.rel (%p143) target = $region25
  $region24: #{deeplabv3_forward.23} parent=0 // pred_region
    %v146 = vld [vmem:[#allocation2] sm:$0xff]
    %v147 = vld [vmem:[#allocation2 + $0x8] sm:$0xff]
    %v148 = vld [vmem:[%s2] sm:$0x1]
    %v150 = vlaneseq
    %v151 = vshrl.u32 %v150, 7
    %v152 = vsub.s32 0, %v151
    %v153 = vrot.slane %v148, %v152
    %v155 = vmul.f32 %v146, %v153
    %v156 = vmul.f32 %v147, %v153
    %v157 = vld [vmem:[%s3] sm:$0x1]
    %v159 = vlaneseq
    %v160 = vshrl.u32 %v159, 7
    %v161 = vsub.s32 0, %v160
    %v162 = vrot.slane %v157, %v161
    %v164 = vadd.f32 %v155, %v162
    %v165 = vadd.f32 %v156, %v162
    %v166 = vmax.f32 %v164, 0.0
    %v167 = vmax.f32 %v165, 0.0
    %v168 = vpack.c.bf16 %v167, %v166
    %v170 = vunpack.c.l.b16 %v168
    %v171 = vunpack.c.h.b16 %v168
    %v172 = vpack.c.b16 %v170, %v170
    %v173 = vpack.c.b16 %v171, %v171
    %176 = vst [vmem:[%s4] sm:$0xf] %v172
    %177 = vst [vmem:[%s4 + $0x4] sm:$0xf] %v173
  $region25: #{deeplabv3_forward.23} parent=0 // pred_fallthru
    _
  // Predicated region
  $region26: #{deeplabv3_forward.23} parent=0 // pred_check
    _
  $region27: #{deeplabv3_forward.23} parent=0 // pred_check_branch
    %179 = sbr.rel (0) target = $region29
  $region28: #{deeplabv3_forward.23} parent=0 // pred_region
    _
  $region29: #{deeplabv3_forward.23} parent=0 // pred_fallthru
    _
  // Predicated region
  $region30: #{deeplabv3_forward.23} parent=0 // pred_check
    _
  $region31: #{deeplabv3_forward.23} parent=0 // pred_check_branch
    %181 = sbr.rel (0) target = $region33
  $region32: #{deeplabv3_forward.23} parent=0 // pred_region
    _
  $region33: #{deeplabv3_forward.23} parent=0 // pred_fallthru
    _

// kernel: deeplabv3_forward.24
$region0: #{deeplabv3_forward.24}
  #allocation0 [shape = 'u32[]', space=smem, size = 0x4, offset = 0x4, fixed_abs, tag = 'smem constant byte address 0x4 - core index']
  #allocation1 [shape = 'u32[144,128]{1,0:T(1,128)}', space=vmem, size = 0x12000, scoped, tag = 'internal scratch']
  %s0 = inlined_call_operand.vmem [shape: bf16[16,32], index: 0, kind: input, shape index: {}]
  %s1 = inlined_call_operand.vmem [shape: bf16[16,32], index: 1, kind: input, shape index: {}]
  %s2 = inlined_call_operand.vmem [shape: bf16[16,32], index: 2, kind: input, shape index: {}]
  %s3 = inlined_call_operand.vmem [shape: bf16[16,32], index: 3, kind: input, shape index: {}]
  %s4 = inlined_call_operand.vmem [shape: bf16[16,32], index: 4, kind: input, shape index: {}]
  %s5 = inlined_call_operand.vmem [shape: bf16[32,128], index: 5, kind: input, shape index: {}]
  %s6 = inlined_call_operand.vmem [shape: bf16[32,128], index: 6, kind: input, shape index: {}]
  %s7 = inlined_call_operand.vmem [shape: bf16[32,128], index: 7, kind: input, shape index: {}]
  %s8 = inlined_call_operand.vmem [shape: bf16[32,128], index: 8, kind: input, shape index: {}]
  %s9 = inlined_call_operand.vmem [shape: bf16[32,128], index: 9, kind: input, shape index: {}]
  %s10 = inlined_call_operand.vmem [shape: f32[1,128], index: 10, kind: input, shape index: {}]
  %s11 = inlined_call_operand.vmem [shape: f32[1,128], index: 11, kind: input, shape index: {}]
  %s12 = inlined_call_operand.vmem [shape: bf16[16,128], index: 12, kind: output, shape index: {}]
  %s13 = sld [smem:[#allocation0]]
  $region58: #{deeplabv3_forward.24} parent=0
    _
  %s15 = ssub.s32 1, %s13
  %s16 = scalar_select 0, %s15, %s13
  // Predicated region
  $region2: #{deeplabv3_forward.24} parent=0 // pred_check
    _
  $region3: #{deeplabv3_forward.24} parent=0 // pred_check_branch
    %18 = sbr.rel (0) target = $region5
  $region4: #{deeplabv3_forward.24} parent=0 // pred_region
    _
  $region5: #{deeplabv3_forward.24} parent=0 // pred_fallthru
    _
  // Predicated region
  $region6: #{deeplabv3_forward.24} parent=0 // pred_check
    _
  $region7: #{deeplabv3_forward.24} parent=0 // pred_check_branch
    %20 = sbr.rel (0) target = $region9
  $region8: #{deeplabv3_forward.24} parent=0 // pred_region
    _
  $region9: #{deeplabv3_forward.24} parent=0 // pred_fallthru
    _
  // Predicated region
  $region10: #{deeplabv3_forward.24} parent=0 // pred_check
    _
  $region11: #{deeplabv3_forward.24} parent=0 // pred_check_branch
    %22 = sbr.rel (0) target = $region13
  $region12: #{deeplabv3_forward.24} parent=0 // pred_region
    _
  $region13: #{deeplabv3_forward.24} parent=0 // pred_fallthru
    _
  // Predicated region
  $region14: #{deeplabv3_forward.24} parent=0 // pred_check
    _
  $region15: #{deeplabv3_forward.24} parent=0 // pred_check_branch
    %24 = sbr.rel (0) target = $region17
  $region16: #{deeplabv3_forward.24} parent=0 // pred_region
    _
  $region17: #{deeplabv3_forward.24} parent=0 // pred_fallthru
    _
  // Predicated region
  $region18: #{deeplabv3_forward.24} parent=0 // pred_check
    _
  $region19: #{deeplabv3_forward.24} parent=0 // pred_check_branch
    %26 = sbr.rel (0) target = $region21
  $region20: #{deeplabv3_forward.24} parent=0 // pred_region
    _
  $region21: #{deeplabv3_forward.24} parent=0 // pred_fallthru
    _
  // Predicated region
  $region22: #{deeplabv3_forward.24} parent=0 // pred_check
    _
  $region23: #{deeplabv3_forward.24} parent=0 // pred_check_branch
    %28 = sbr.rel (0) target = $region25
  $region24: #{deeplabv3_forward.24} parent=0 // pred_region
    _
  $region25: #{deeplabv3_forward.24} parent=0 // pred_fallthru
    _
  // Predicated region
  $region26: #{deeplabv3_forward.24} parent=0 // pred_check
    _
  $region27: #{deeplabv3_forward.24} parent=0 // pred_check_branch
    %30 = sbr.rel (0) target = $region29
  $region28: #{deeplabv3_forward.24} parent=0 // pred_region
    _
  $region29: #{deeplabv3_forward.24} parent=0 // pred_fallthru
    _
  // Predicated region
  $region30: #{deeplabv3_forward.24} parent=0 // pred_check
    _
  $region31: #{deeplabv3_forward.24} parent=0 // pred_check_branch
    %32 = sbr.rel (0) target = $region33
  $region32: #{deeplabv3_forward.24} parent=0 // pred_region
    _
  $region33: #{deeplabv3_forward.24} parent=0 // pred_fallthru
    _
  // Predicated region
  $region34: #{deeplabv3_forward.24} parent=0 // pred_check
    _
  $region35: #{deeplabv3_forward.24} parent=0 // pred_check_branch
    %34 = sbr.rel (0) target = $region37
  $region36: #{deeplabv3_forward.24} parent=0 // pred_region
    _
  $region37: #{deeplabv3_forward.24} parent=0 // pred_fallthru
    _
  // Predicated region
  $region38: #{deeplabv3_forward.24} parent=0 // pred_check
    _
  $region39: #{deeplabv3_forward.24} parent=0 // pred_check_branch
    %36 = sbr.rel (0) target = $region41
  $region40: #{deeplabv3_forward.24} parent=0 // pred_region
    _
  $region41: #{deeplabv3_forward.24} parent=0 // pred_fallthru
    _
  // Predicated region
  $region42: #{deeplabv3_forward.24} parent=0 // pred_check
    _
  $region43: #{deeplabv3_forward.24} parent=0 // pred_check_branch
    %38 = sbr.rel (0) target = $region45
  $region44: #{deeplabv3_forward.24} parent=0 // pred_region
    _
  $region45: #{deeplabv3_forward.24} parent=0 // pred_fallthru
    _
  // Predicated region
  $region46: #{deeplabv3_forward.24} parent=0 // pred_check
    _
  $region47: #{deeplabv3_forward.24} parent=0 // pred_check_branch
    %40 = sbr.rel (0) target = $region49
  $region48: #{deeplabv3_forward.24} parent=0 // pred_region
    _
  $region49: #{deeplabv3_forward.24} parent=0 // pred_fallthru
    _
  %v42 = vld [vmem:[%s0] sm:$0xf]
  %v43 = vld [vmem:[%s0 + $0x4] sm:$0xf]
  %v44 = vld [vmem:[%s5] sm:$0xf]
  %v45 = vld [vmem:[%s5 + $0x4] sm:$0xf]
  %v46 = vld [vmem:[%s5 + $0x8] sm:$0xf]
  %v47 = vld [vmem:[%s5 + $0xc] sm:$0xf]
  %v48 = vld [vmem:[%s1] sm:$0xf]
  %v49 = vld [vmem:[%s1 + $0x4] sm:$0xf]
  %v50 = vld [vmem:[%s6] sm:$0xf]
  %v51 = vld [vmem:[%s6 + $0x4] sm:$0xf]
  %v52 = vld [vmem:[%s6 + $0x8] sm:$0xf]
  %v53 = vld [vmem:[%s6 + $0xc] sm:$0xf]
  %v56 = vunpack.c.l.b16 %v48
  %v57 = vunpack.c.l.b16 %v49
  %v58 = vpack.c.b16 %v57, %v56
  %v63 = vunpack.c.l.b16 %v50
  %v64 = vunpack.c.l.b16 %v51
  %v65 = vunpack.c.l.b16 %v52
  %v66 = vunpack.c.l.b16 %v53
  %v67 = vpack.c.b16 %v64, %v63
  %v68 = vpack.c.b16 %v66, %v65
  %vm71 = vcmask 261120
  %v73 = vsel %vm71, %v58, 0
  %75 = vmatprep.subr.bf16.mxu0 0
  %76 = vmatpush1.bf16.msra.mxu0 0
  %77 = vmatprep.subr.bf16.mxu0 0
  %78 = vmatpush1.bf16.msra.mxu0 0
  %79 = vmatprep.subr.bf16.mxu0 0
  %80 = vmatpush1.bf16.msra.mxu0 0
  %81 = vmatprep.subr.bf16.mxu0 0
  %82 = vmatpush1.bf16.msra.mxu0 0
  %83 = vmatprep.subr.bf16.mxu0 0
  %84 = vmatpush1.bf16.msra.mxu0 0
  %85 = vmatprep.subr.bf16.mxu0 0
  %86 = vmatpush1.bf16.msra.mxu0 0
  %87 = vmatprep.subr.bf16.mxu0 0
  %88 = vmatpush1.bf16.msra.mxu0 %v68
  %89 = vmatprep.subr.bf16.mxu0 0
  %90 = vmatpush1.bf16.msra.mxu0 %v67
  %91 = vmatprep.subr.bf16.mxu0 0
  %92 = vmatpush2.bf16.msra.mxu0 0
  %93 = vmatprep.subr.bf16.mxu0 0
  %94 = vmatpush2.bf16.msra.mxu0 0
  %95 = vmatprep.subr.bf16.mxu0 0
  %96 = vmatpush2.bf16.msra.mxu0 0
  %97 = vmatprep.subr.bf16.mxu0 0
  %98 = vmatpush2.bf16.msra.mxu0 0
  %99 = vmatprep.subr.bf16.mxu0 0
  %100 = vmatpush2.bf16.msra.mxu0 0
  %101 = vmatprep.subr.bf16.mxu0 0
  %102 = vmatpush2.bf16.msra.mxu0 0
  %103 = vmatprep.subr.bf16.mxu0 0
  %104 = vmatpush2.bf16.msra.mxu0 0
  %105 = vmatprep.subr.bf16.mxu0 0
  %106 = vmatpush2.bf16.msra.mxu0 0
  %107 = vmatprep.mubr.bf16.mxu0 0
  %108 = vmatmul.mubr.bf16.gmra.mxu0 %v73
  %v109 = vpop.f32.mrf.mxu0
  %v110 = vadd.f32 0.0, %v109
  %v111 = vpop.f32.mrf.mxu0
  %v112 = vpop.f32.mrf.mxu0
  %v113 = vadd.f32 0.0, %v112
  %v114 = vpop.f32.mrf.mxu0
  %115 = vdwg.mxu0
  %v118 = vunpack.c.l.b16 %v42
  %v119 = vunpack.c.l.b16 %v43
  %v120 = vpack.c.b16 %v119, %v118
  %v125 = vunpack.c.l.b16 %v44
  %v126 = vunpack.c.l.b16 %v45
  %v127 = vunpack.c.l.b16 %v46
  %v128 = vunpack.c.l.b16 %v47
  %v129 = vpack.c.b16 %v126, %v125
  %v130 = vpack.c.b16 %v128, %v127
  %v134 = vsel %vm71, %v120, 0
  %136 = vmatprep.subr.bf16.mxu0 0
  %137 = vmatpush1.bf16.msra.mxu0 0
  %138 = vmatprep.subr.bf16.mxu0 0
  %139 = vmatpush1.bf16.msra.mxu0 0
  %140 = vmatprep.subr.bf16.mxu0 0
  %141 = vmatpush1.bf16.msra.mxu0 0
  %142 = vmatprep.subr.bf16.mxu0 0
  %143 = vmatpush1.bf16.msra.mxu0 0
  %144 = vmatprep.subr.bf16.mxu0 0
  %145 = vmatpush1.bf16.msra.mxu0 0
  %146 = vmatprep.subr.bf16.mxu0 0
  %147 = vmatpush1.bf16.msra.mxu0 0
  %148 = vmatprep.subr.bf16.mxu0 0
  %149 = vmatpush1.bf16.msra.mxu0 %v130
  %150 = vmatprep.subr.bf16.mxu0 0
  %151 = vmatpush1.bf16.msra.mxu0 %v129
  %152 = vmatprep.subr.bf16.mxu0 0
  %153 = vmatpush2.bf16.msra.mxu0 0
  %154 = vmatprep.subr.bf16.mxu0 0
  %155 = vmatpush2.bf16.msra.mxu0 0
  %156 = vmatprep.subr.bf16.mxu0 0
  %157 = vmatpush2.bf16.msra.mxu0 0
  %158 = vmatprep.subr.bf16.mxu0 0
  %159 = vmatpush2.bf16.msra.mxu0 0
  %160 = vmatprep.subr.bf16.mxu0 0
  %161 = vmatpush2.bf16.msra.mxu0 0
  %162 = vmatprep.subr.bf16.mxu0 0
  %163 = vmatpush2.bf16.msra.mxu0 0
  %164 = vmatprep.subr.bf16.mxu0 0
  %165 = vmatpush2.bf16.msra.mxu0 0
  %166 = vmatprep.subr.bf16.mxu0 0
  %167 = vmatpush2.bf16.msra.mxu0 0
  %168 = vmatprep.mubr.bf16.mxu0 0
  %169 = vmatmul.mubr.bf16.gmra.mxu0 %v134
  %v170 = vpop.f32.mrf.mxu0
  %v171 = vadd.f32 %v110, %v170
  %v172 = vpop.f32.mrf.mxu0
  %v173 = vpop.f32.mrf.mxu0
  %v174 = vadd.f32 %v113, %v173
  %v175 = vpop.f32.mrf.mxu0
  %176 = vdwg.mxu0
  %v177 = vld [vmem:[%s2] sm:$0xf]
  %v178 = vld [vmem:[%s2 + $0x4] sm:$0xf]
  %v179 = vld [vmem:[%s7] sm:$0xf]
  %v180 = vld [vmem:[%s7 + $0x4] sm:$0xf]
  %v181 = vld [vmem:[%s7 + $0x8] sm:$0xf]
  %v182 = vld [vmem:[%s7 + $0xc] sm:$0xf]
  %v185 = vunpack.c.l.b16 %v177
  %v186 = vunpack.c.l.b16 %v178
  %v187 = vpack.c.b16 %v186, %v185
  %v192 = vunpack.c.l.b16 %v179
  %v193 = vunpack.c.l.b16 %v180
  %v194 = vunpack.c.l.b16 %v181
  %v195 = vunpack.c.l.b16 %v182
  %v196 = vpack.c.b16 %v193, %v192
  %v197 = vpack.c.b16 %v195, %v194
  %v201 = vsel %vm71, %v187, 0
  %203 = vmatprep.subr.bf16.mxu0 0
  %204 = vmatpush1.bf16.msra.mxu0 0
  %205 = vmatprep.subr.bf16.mxu0 0
  %206 = vmatpush1.bf16.msra.mxu0 0
  %207 = vmatprep.subr.bf16.mxu0 0
  %208 = vmatpush1.bf16.msra.mxu0 0
  %209 = vmatprep.subr.bf16.mxu0 0
  %210 = vmatpush1.bf16.msra.mxu0 0
  %211 = vmatprep.subr.bf16.mxu0 0
  %212 = vmatpush1.bf16.msra.mxu0 0
  %213 = vmatprep.subr.bf16.mxu0 0
  %214 = vmatpush1.bf16.msra.mxu0 0
  %215 = vmatprep.subr.bf16.mxu0 0
  %216 = vmatpush1.bf16.msra.mxu0 %v197
  %217 = vmatprep.subr.bf16.mxu0 0
  %218 = vmatpush1.bf16.msra.mxu0 %v196
  %219 = vmatprep.subr.bf16.mxu0 0
  %220 = vmatpush2.bf16.msra.mxu0 0
  %221 = vmatprep.subr.bf16.mxu0 0
  %222 = vmatpush2.bf16.msra.mxu0 0
  %223 = vmatprep.subr.bf16.mxu0 0
  %224 = vmatpush2.bf16.msra.mxu0 0
  %225 = vmatprep.subr.bf16.mxu0 0
  %226 = vmatpush2.bf16.msra.mxu0 0
  %227 = vmatprep.subr.bf16.mxu0 0
  %228 = vmatpush2.bf16.msra.mxu0 0
  %229 = vmatprep.subr.bf16.mxu0 0
  %230 = vmatpush2.bf16.msra.mxu0 0
  %231 = vmatprep.subr.bf16.mxu0 0
  %232 = vmatpush2.bf16.msra.mxu0 0
  %233 = vmatprep.subr.bf16.mxu0 0
  %234 = vmatpush2.bf16.msra.mxu0 0
  %235 = vmatprep.mubr.bf16.mxu0 0
  %236 = vmatmul.mubr.bf16.gmra.mxu0 %v201
  %v237 = vpop.f32.mrf.mxu0
  %v238 = vadd.f32 0.0, %v237
  %v239 = vpop.f32.mrf.mxu0
  %v240 = vpop.f32.mrf.mxu0
  %v241 = vadd.f32 0.0, %v240
  %v242 = vpop.f32.mrf.mxu0
  %243 = vdwg.mxu0
  %v244 = vadd.f32 %v171, %v238
  %v245 = vadd.f32 %v174, %v241
  %v246 = vld [vmem:[%s3] sm:$0xf]
  %v247 = vld [vmem:[%s3 + $0x4] sm:$0xf]
  %v248 = vld [vmem:[%s8] sm:$0xf]
  %v249 = vld [vmem:[%s8 + $0x4] sm:$0xf]
  %v250 = vld [vmem:[%s8 + $0x8] sm:$0xf]
  %v251 = vld [vmem:[%s8 + $0xc] sm:$0xf]
  %v254 = vunpack.c.l.b16 %v246
  %v255 = vunpack.c.l.b16 %v247
  %v256 = vpack.c.b16 %v255, %v254
  %v261 = vunpack.c.l.b16 %v248
  %v262 = vunpack.c.l.b16 %v249
  %v263 = vunpack.c.l.b16 %v250
  %v264 = vunpack.c.l.b16 %v251
  %v265 = vpack.c.b16 %v262, %v261
  %v266 = vpack.c.b16 %v264, %v263
  %v270 = vsel %vm71, %v256, 0
  %272 = vmatprep.subr.bf16.mxu0 0
  %273 = vmatpush1.bf16.msra.mxu0 0
  %274 = vmatprep.subr.bf16.mxu0 0
  %275 = vmatpush1.bf16.msra.mxu0 0
  %276 = vmatprep.subr.bf16.mxu0 0
  %277 = vmatpush1.bf16.msra.mxu0 0
  %278 = vmatprep.subr.bf16.mxu0 0
  %279 = vmatpush1.bf16.msra.mxu0 0
  %280 = vmatprep.subr.bf16.mxu0 0
  %281 = vmatpush1.bf16.msra.mxu0 0
  %282 = vmatprep.subr.bf16.mxu0 0
  %283 = vmatpush1.bf16.msra.mxu0 0
  %284 = vmatprep.subr.bf16.mxu0 0
  %285 = vmatpush1.bf16.msra.mxu0 %v266
  %286 = vmatprep.subr.bf16.mxu0 0
  %287 = vmatpush1.bf16.msra.mxu0 %v265
  %288 = vmatprep.subr.bf16.mxu0 0
  %289 = vmatpush2.bf16.msra.mxu0 0
  %290 = vmatprep.subr.bf16.mxu0 0
  %291 = vmatpush2.bf16.msra.mxu0 0
  %292 = vmatprep.subr.bf16.mxu0 0
  %293 = vmatpush2.bf16.msra.mxu0 0
  %294 = vmatprep.subr.bf16.mxu0 0
  %295 = vmatpush2.bf16.msra.mxu0 0
  %296 = vmatprep.subr.bf16.mxu0 0
  %297 = vmatpush2.bf16.msra.mxu0 0
  %298 = vmatprep.subr.bf16.mxu0 0
  %299 = vmatpush2.bf16.msra.mxu0 0
  %300 = vmatprep.subr.bf16.mxu0 0
  %301 = vmatpush2.bf16.msra.mxu0 0
  %302 = vmatprep.subr.bf16.mxu0 0
  %303 = vmatpush2.bf16.msra.mxu0 0
  %304 = vmatprep.mubr.bf16.mxu0 0
  %305 = vmatmul.mubr.bf16.gmra.mxu0 %v270
  %v306 = vpop.f32.mrf.mxu0
  %v307 = vadd.f32 0.0, %v306
  %v308 = vpop.f32.mrf.mxu0
  %v309 = vpop.f32.mrf.mxu0
  %v310 = vadd.f32 0.0, %v309
  %v311 = vpop.f32.mrf.mxu0
  %312 = vdwg.mxu0
  %v313 = vadd.f32 %v244, %v307
  %v314 = vadd.f32 %v245, %v310
  %v315 = vld [vmem:[%s4] sm:$0xf]
  %v316 = vld [vmem:[%s4 + $0x4] sm:$0xf]
  %v317 = vld [vmem:[%s9] sm:$0xf]
  %v318 = vld [vmem:[%s9 + $0x4] sm:$0xf]
  %v319 = vld [vmem:[%s9 + $0x8] sm:$0xf]
  %v320 = vld [vmem:[%s9 + $0xc] sm:$0xf]
  %v323 = vunpack.c.l.b16 %v315
  %v324 = vunpack.c.l.b16 %v316
  %v325 = vpack.c.b16 %v324, %v323
  %v330 = vunpack.c.l.b16 %v317
  %v331 = vunpack.c.l.b16 %v318
  %v332 = vunpack.c.l.b16 %v319
  %v333 = vunpack.c.l.b16 %v320
  %v334 = vpack.c.b16 %v331, %v330
  %v335 = vpack.c.b16 %v333, %v332
  %v339 = vsel %vm71, %v325, 0
  %341 = vmatprep.subr.bf16.mxu0 0
  %342 = vmatpush1.bf16.msra.mxu0 0
  %343 = vmatprep.subr.bf16.mxu0 0
  %344 = vmatpush1.bf16.msra.mxu0 0
  %345 = vmatprep.subr.bf16.mxu0 0
  %346 = vmatpush1.bf16.msra.mxu0 0
  %347 = vmatprep.subr.bf16.mxu0 0
  %348 = vmatpush1.bf16.msra.mxu0 0
  %349 = vmatprep.subr.bf16.mxu0 0
  %350 = vmatpush1.bf16.msra.mxu0 0
  %351 = vmatprep.subr.bf16.mxu0 0
  %352 = vmatpush1.bf16.msra.mxu0 0
  %353 = vmatprep.subr.bf16.mxu0 0
  %354 = vmatpush1.bf16.msra.mxu0 %v335
  %355 = vmatprep.subr.bf16.mxu0 0
  %356 = vmatpush1.bf16.msra.mxu0 %v334
  %357 = vmatprep.subr.bf16.mxu0 0
  %358 = vmatpush2.bf16.msra.mxu0 0
  %359 = vmatprep.subr.bf16.mxu0 0
  %360 = vmatpush2.bf16.msra.mxu0 0
  %361 = vmatprep.subr.bf16.mxu0 0
  %362 = vmatpush2.bf16.msra.mxu0 0
  %363 = vmatprep.subr.bf16.mxu0 0
  %364 = vmatpush2.bf16.msra.mxu0 0
  %365 = vmatprep.subr.bf16.mxu0 0
  %366 = vmatpush2.bf16.msra.mxu0 0
  %367 = vmatprep.subr.bf16.mxu0 0
  %368 = vmatpush2.bf16.msra.mxu0 0
  %369 = vmatprep.subr.bf16.mxu0 0
  %370 = vmatpush2.bf16.msra.mxu0 0
  %371 = vmatprep.subr.bf16.mxu0 0
  %372 = vmatpush2.bf16.msra.mxu0 0
  %373 = vmatprep.mubr.bf16.mxu0 0
  %374 = vmatmul.mubr.bf16.gmra.mxu0 %v339
  %v375 = vpop.f32.mrf.mxu0
  %v376 = vadd.f32 0.0, %v375
  %v377 = vpop.f32.mrf.mxu0
  %v378 = vpop.f32.mrf.mxu0
  %v379 = vadd.f32 0.0, %v378
  %v380 = vpop.f32.mrf.mxu0
  %381 = vdwg.mxu0
  %v382 = vadd.f32 %v313, %v376
  %v383 = vadd.f32 %v314, %v379
  %v384 = vld [vmem:[%s10] sm:$0x1]
  %v386 = vlaneseq
  %v387 = vshrl.u32 %v386, 7
  %v388 = vsub.s32 0, %v387
  %v389 = vrot.slane %v384, %v388
  %v391 = vmul.f32 %v382, %v389
  %v392 = vmul.f32 %v383, %v389
  %v393 = vld [vmem:[%s11] sm:$0x1]
  %v395 = vlaneseq
  %v396 = vshrl.u32 %v395, 7
  %v397 = vsub.s32 0, %v396
  %v398 = vrot.slane %v393, %v397
  %v400 = vadd.f32 %v391, %v398
  %v401 = vadd.f32 %v392, %v398
  %v402 = vmax.f32 %v400, 0.0
  %v403 = vmax.f32 %v401, 0.0
  %v404 = vpack.c.bf16 %v403, %v402
  %v406 = vunpack.c.l.b16 %v404
  %v407 = vunpack.c.h.b16 %v404
  %v408 = vpack.c.b16 %v406, %v406
  %v409 = vpack.c.b16 %v407, %v407
  %412 = vst [vmem:[%s12] sm:$0xf] %v408
  %413 = vst [vmem:[%s12 + $0x4] sm:$0xf] %v409
  // Predicated region
  $region50: #{deeplabv3_forward.24} parent=0 // pred_check
    _
  $region51: #{deeplabv3_forward.24} parent=0 // pred_check_branch
    %415 = sbr.rel (0) target = $region53
  $region52: #{deeplabv3_forward.24} parent=0 // pred_region
    _
  $region53: #{deeplabv3_forward.24} parent=0 // pred_fallthru
    _
  // Predicated region
  $region54: #{deeplabv3_forward.24} parent=0 // pred_check
    _
  $region55: #{deeplabv3_forward.24} parent=0 // pred_check_branch
    %417 = sbr.rel (0) target = $region57
  $region56: #{deeplabv3_forward.24} parent=0 // pred_region
    _
  $region57: #{deeplabv3_forward.24} parent=0 // pred_fallthru
    _

// kernel: deeplabv3_forward.26
$region0: #{deeplabv3_forward.26}
  #allocation0 [shape = 'u32[]', space=smem, size = 0x4, offset = 0x4, fixed_abs, tag = 'smem constant byte address 0x4 - core index']
  #allocation1 [shape = 'u32[144,128]{1,0:T(1,128)}', space=vmem, size = 0x12000, scoped, tag = 'internal scratch']
  #allocation2 [shape = 'f32[16,128]{1,0:T(8,128)}', space=vmem, size = 0x2000, scoped, tag = 'scratch operand']
  %s0 = inlined_call_operand.vmem [shape: bf16[16,128], index: 0, kind: input, shape index: {}]
  %s1 = inlined_call_operand.vmem [shape: bf16[128,128], index: 1, kind: input, shape index: {}]
  %s2 = inlined_call_operand.vmem [shape: f32[1,128], index: 2, kind: input, shape index: {}]
  %s3 = inlined_call_operand.vmem [shape: f32[1,128], index: 3, kind: input, shape index: {}]
  %s4 = inlined_call_operand.vmem [shape: f32[16,128], index: 4, kind: output, shape index: {}]
  %s5 = sld [smem:[#allocation0]]
  $region34: #{deeplabv3_forward.26} parent=0
    _
  %s7 = ssub.s32 1, %s5
  %s8 = scalar_select 0, %s7, %s5
  // Predicated region
  $region2: #{deeplabv3_forward.26} parent=0 // pred_check
    _
  $region3: #{deeplabv3_forward.26} parent=0 // pred_check_branch
    %10 = sbr.rel (0) target = $region5
  $region4: #{deeplabv3_forward.26} parent=0 // pred_region
    _
  $region5: #{deeplabv3_forward.26} parent=0 // pred_fallthru
    _
  // Predicated region
  $region6: #{deeplabv3_forward.26} parent=0 // pred_check
    _
  $region7: #{deeplabv3_forward.26} parent=0 // pred_check_branch
    %12 = sbr.rel (0) target = $region9
  $region8: #{deeplabv3_forward.26} parent=0 // pred_region
    _
  $region9: #{deeplabv3_forward.26} parent=0 // pred_fallthru
    _
  // Predicated region
  $region10: #{deeplabv3_forward.26} parent=0 // pred_check
    _
  $region11: #{deeplabv3_forward.26} parent=0 // pred_check_branch
    %14 = sbr.rel (0) target = $region13
  $region12: #{deeplabv3_forward.26} parent=0 // pred_region
    _
  $region13: #{deeplabv3_forward.26} parent=0 // pred_fallthru
    _
  // Predicated region
  $region14: #{deeplabv3_forward.26} parent=0 // pred_check
    _
  $region15: #{deeplabv3_forward.26} parent=0 // pred_check_branch
    %16 = sbr.rel (0) target = $region17
  $region16: #{deeplabv3_forward.26} parent=0 // pred_region
    _
  $region17: #{deeplabv3_forward.26} parent=0 // pred_fallthru
    _
  %p18 = scmp.eq.s32.totalorder 0, 0
  // Predicated region
  $region18: #{deeplabv3_forward.26} parent=0 // pred_check
    %p19 = pneg %p18
  $region19: #{deeplabv3_forward.26} parent=0 // pred_check_branch
    %21 = sbr.rel (%p19) target = $region21
  $region20: #{deeplabv3_forward.26} parent=0 // pred_region
    %22 = vst [vmem:[#allocation2] sm:$0xff] 0.0
    %23 = vst [vmem:[#allocation2 + $0x8] sm:$0xff] 0.0
  $region21: #{deeplabv3_forward.26} parent=0 // pred_fallthru
    _
  %v24 = vld [vmem:[#allocation2] sm:$0xff]
  %v25 = vld [vmem:[#allocation2 + $0x8] sm:$0xff]
  %v26 = vld [vmem:[%s0] sm:$0xf]
  %v27 = vld [vmem:[%s0 + $0x4] sm:$0xf]
  %v28 = vld [vmem:[%s1] sm:$0xf]
  %v29 = vld [vmem:[%s1 + $0x4] sm:$0xf]
  %v30 = vld [vmem:[%s1 + $0x8] sm:$0xf]
  %v31 = vld [vmem:[%s1 + $0xc] sm:$0xf]
  %v32 = vld [vmem:[%s1 + $0x10] sm:$0xf]
  %v33 = vld [vmem:[%s1 + $0x14] sm:$0xf]
  %v34 = vld [vmem:[%s1 + $0x18] sm:$0xf]
  %v35 = vld [vmem:[%s1 + $0x1c] sm:$0xf]
  %v36 = vld [vmem:[%s1 + $0x20] sm:$0xf]
  %v37 = vld [vmem:[%s1 + $0x24] sm:$0xf]
  %v38 = vld [vmem:[%s1 + $0x28] sm:$0xf]
  %v39 = vld [vmem:[%s1 + $0x2c] sm:$0xf]
  %v40 = vld [vmem:[%s1 + $0x30] sm:$0xf]
  %v41 = vld [vmem:[%s1 + $0x34] sm:$0xf]
  %v42 = vld [vmem:[%s1 + $0x38] sm:$0xf]
  %v43 = vld [vmem:[%s1 + $0x3c] sm:$0xf]
  %v46 = vunpack.c.l.b16 %v26
  %v47 = vunpack.c.l.b16 %v27
  %v48 = vpack.c.b16 %v47, %v46
  %v66 = vunpack.c.l.b16 %v28
  %v67 = vunpack.c.l.b16 %v29
  %v68 = vunpack.c.l.b16 %v30
  %v69 = vunpack.c.l.b16 %v31
  %v70 = vunpack.c.l.b16 %v32
  %v71 = vunpack.c.l.b16 %v33
  %v72 = vunpack.c.l.b16 %v34
  %v73 = vunpack.c.l.b16 %v35
  %v74 = vunpack.c.l.b16 %v36
  %v75 = vunpack.c.l.b16 %v37
  %v76 = vunpack.c.l.b16 %v38
  %v77 = vunpack.c.l.b16 %v39
  %v78 = vunpack.c.l.b16 %v40
  %v79 = vunpack.c.l.b16 %v41
  %v80 = vunpack.c.l.b16 %v42
  %v81 = vunpack.c.l.b16 %v43
  %v82 = vpack.c.b16 %v67, %v66
  %v83 = vpack.c.b16 %v69, %v68
  %v84 = vpack.c.b16 %v71, %v70
  %v85 = vpack.c.b16 %v73, %v72
  %v86 = vpack.c.b16 %v75, %v74
  %v87 = vpack.c.b16 %v77, %v76
  %v88 = vpack.c.b16 %v79, %v78
  %v89 = vpack.c.b16 %v81, %v80
  %98 = vmatprep.subr.bf16.mxu0 0
  %99 = vmatpush1.bf16.msra.mxu0 %v89
  %100 = vmatprep.subr.bf16.mxu0 0
  %101 = vmatpush1.bf16.msra.mxu0 %v88
  %102 = vmatprep.subr.bf16.mxu0 0
  %103 = vmatpush1.bf16.msra.mxu0 %v87
  %104 = vmatprep.subr.bf16.mxu0 0
  %105 = vmatpush1.bf16.msra.mxu0 %v86
  %106 = vmatprep.subr.bf16.mxu0 0
  %107 = vmatpush1.bf16.msra.mxu0 %v85
  %108 = vmatprep.subr.bf16.mxu0 0
  %109 = vmatpush1.bf16.msra.mxu0 %v84
  %110 = vmatprep.subr.bf16.mxu0 0
  %111 = vmatpush1.bf16.msra.mxu0 %v83
  %112 = vmatprep.subr.bf16.mxu0 0
  %113 = vmatpush1.bf16.msra.mxu0 %v82
  %114 = vmatprep.subr.bf16.mxu0 0
  %115 = vmatpush2.bf16.msra.mxu0 0
  %116 = vmatprep.subr.bf16.mxu0 0
  %117 = vmatpush2.bf16.msra.mxu0 0
  %118 = vmatprep.subr.bf16.mxu0 0
  %119 = vmatpush2.bf16.msra.mxu0 0
  %120 = vmatprep.subr.bf16.mxu0 0
  %121 = vmatpush2.bf16.msra.mxu0 0
  %122 = vmatprep.subr.bf16.mxu0 0
  %123 = vmatpush2.bf16.msra.mxu0 0
  %124 = vmatprep.subr.bf16.mxu0 0
  %125 = vmatpush2.bf16.msra.mxu0 0
  %126 = vmatprep.subr.bf16.mxu0 0
  %127 = vmatpush2.bf16.msra.mxu0 0
  %128 = vmatprep.subr.bf16.mxu0 0
  %129 = vmatpush2.bf16.msra.mxu0 0
  %130 = vmatprep.mubr.bf16.mxu0 0
  %131 = vmatmul.mubr.bf16.gmra.mxu0 %v48
  %v132 = vpop.f32.mrf.mxu0
  %v133 = vadd.f32 0.0, %v132
  %v134 = vpop.f32.mrf.mxu0
  %v135 = vpop.f32.mrf.mxu0
  %v136 = vadd.f32 0.0, %v135
  %v137 = vpop.f32.mrf.mxu0
  %138 = vdwg.mxu0
  %v139 = vadd.f32 %v24, %v133
  %v140 = vadd.f32 %v25, %v136
  %141 = vst [vmem:[#allocation2] sm:$0xff] %v139
  %142 = vst [vmem:[#allocation2 + $0x8] sm:$0xff] %v140
  // Predicated region
  $region22: #{deeplabv3_forward.26} parent=0 // pred_check
    %p143 = pneg %p18
  $region23: #{deeplabv3_forward.26} parent=0 // pred_check_branch
    %145 = sbr.rel (%p143) target = $region25
  $region24: #{deeplabv3_forward.26} parent=0 // pred_region
    %v146 = vld [vmem:[#allocation2] sm:$0xff]
    %v147 = vld [vmem:[#allocation2 + $0x8] sm:$0xff]
    %v148 = vld [vmem:[%s2] sm:$0x1]
    %v150 = vlaneseq
    %v151 = vshrl.u32 %v150, 7
    %v152 = vsub.s32 0, %v151
    %v153 = vrot.slane %v148, %v152
    %v155 = vmul.f32 %v146, %v153
    %v156 = vmul.f32 %v147, %v153
    %v157 = vld [vmem:[%s3] sm:$0x1]
    %v159 = vlaneseq
    %v160 = vshrl.u32 %v159, 7
    %v161 = vsub.s32 0, %v160
    %v162 = vrot.slane %v157, %v161
    %v164 = vadd.f32 %v155, %v162
    %v165 = vadd.f32 %v156, %v162
    %166 = vst [vmem:[%s4] sm:$0xff] %v164
    %167 = vst [vmem:[%s4 + $0x8] sm:$0xff] %v165
  $region25: #{deeplabv3_forward.26} parent=0 // pred_fallthru
    _
  // Predicated region
  $region26: #{deeplabv3_forward.26} parent=0 // pred_check
    _
  $region27: #{deeplabv3_forward.26} parent=0 // pred_check_branch
    %169 = sbr.rel (0) target = $region29
  $region28: #{deeplabv3_forward.26} parent=0 // pred_region
    _
  $region29: #{deeplabv3_forward.26} parent=0 // pred_fallthru
    _
  // Predicated region
  $region30: #{deeplabv3_forward.26} parent=0 // pred_check
    _
  $region31: #{deeplabv3_forward.26} parent=0 // pred_check_branch
    %171 = sbr.rel (0) target = $region33
  $region32: #{deeplabv3_forward.26} parent=0 // pred_region
    _
  $region33: #{deeplabv3_forward.26} parent=0 // pred_fallthru
    _

// kernel: deeplabv3_forward.27
$region0: #{deeplabv3_forward.27}
  #allocation0 [shape = 'u32[]', space=smem, size = 0x4, offset = 0x4, fixed_abs, tag = 'smem constant byte address 0x4 - core index']
  #allocation1 [shape = 'u32[144,128]{1,0:T(1,128)}', space=vmem, size = 0x12000, scoped, tag = 'internal scratch']
  #allocation2 [shape = 's32[1]{0}', space=sflag, size = 0x4, scoped, tag = 'scoped memory for deeplabv3_forward.27']
  #allocation3 [shape = 'u8[512]{0}', space=smem, size = 0x200, scoped, tag = 'prefetched SMEM operand 0']
  #allocation4 [shape = 'u8[512]{0}', space=smem, size = 0x200, scoped, tag = 'prefetched SMEM operand 1']
  %s0 = inlined_call_operand.vmem [shape: s32[16], index: 0, kind: input, shape index: {}]
  %s1 = inlined_call_operand.vmem [shape: s32[16], index: 1, kind: input, shape index: {}]
  %s2 = inlined_call_operand.vmem [shape: f32[2,2,1,48], index: 2, kind: input, shape index: {}, may-alias: {2,3}]
  %s3 = inlined_call_operand.vmem [shape: f32[2,2,1,48], index: 3, kind: input, shape index: {}, may-alias: {2,3}]
  %s4 = inlined_call_operand.vmem [shape: f32[16], index: 4, kind: input, shape index: {}]
  %s5 = inlined_call_operand.vmem [shape: f32[2,16,1,48], index: 5, kind: output, shape index: {}]
  %s6 = sld [smem:[#allocation0]]
  $region49: #{deeplabv3_forward.27} parent=0
    _
  %s8 = ssub.s32 1, %s6
  %s9 = scalar_select 0, %s8, %s6
  %s10 = sshll.u32 %s0, 4
  %s11 = int_to_ptr.vmem [resolvable:$true] %s10
  %13 = dma.vmem_to_smem %s11, 16, [#allocation3], [#allocation2]
  %s14 = sshll.u32 %s1, 4
  %s15 = int_to_ptr.vmem [resolvable:$true] %s14
  %17 = dma.vmem_to_smem %s15, 16, [#allocation4], [#allocation2]
  %18 = dma.done [#allocation2], 32
  %19 = sfence
  $region1: #{deeplabv3_forward.27} parent=0
    #allocation5 [shape = 'u8[512]{0}', space=smem, size = 0x200, scoped, tag = 'input window, operand 4, single buffered']
    #allocation6 [shape = 's32[2]{0}', space=sflag, size = 0x8, scoped, tag = 'scoped memory for deeplabv3_forward.27']
    %20 = vsyncpa [#allocation6], 0
    loop: start=0, step=1, limit=34
    $region2: #{deeplabv3_forward.27} parent=1 // loop_pre_header
      _
    $region3: #{deeplabv3_forward.27} parent=1 // loop_header
      %s22 = sphi 0, %s26
      %p23 = scmp.ge.s32.totalorder %s22, 34
      %s29 = sphi 0, %s41
      %s30 = sphi 0, %s37
      %s31 = sphi 0, %s29
      %s32 = sphi 0, %s30
      %s33 = sphi 0, %s31
      %s34 = sphi 0, %s32
      %s48 = sphi 0, %s50
      %s51 = sphi 0, %s48
      %s52 = sphi 0, %s51
      %s68 = sphi 0, %s52
      %s78 = sphi 0, %s80
      %s81 = sphi 0, %s78
      %s82 = sphi 0, %s81
      %s98 = sphi 0, %s82
      %s102 = sphi 0, %s102
      %s104 = sphi 0, %s102
      %s105 = sphi 0, %s104
      %s119 = sphi 0, %s105
      %s127 = sphi 0, %s129
      %s130 = sphi 0, %s127
      %s131 = sphi 0, %s130
      %s147 = sphi 0, %s131
    $region4: #{deeplabv3_forward.27} parent=1 // loop_header_branch
      %25 = sbr.rel (%p23) target = $region8
    $region5: #{deeplabv3_forward.27} parent=1 // loop_body
      %s27 = ssub.s32 %s22, 1
      %s28 = ssub.s32 %s22, 2
      %s35 = sadd.s32 1, %s30
      %p36 = scmp.ge.s32.totalorder %s35, 16
      %s37 = scalar_select %p36, 0, %s35
      %s38 = sadd.s32 1, %s29
      %s39 = scalar_select %p36, %s38, %s29
      %p40 = scmp.ge.s32.totalorder %s39, 2
      %s41 = scalar_select %p40, 0, %s39
      %s42 = sld [smem:[#allocation3 + %s30]]
      %s43 = sld [smem:[#allocation3 + %s37]]
      %s44 = ssub.s32 %s29, %s41
      %s45 = ssub.s32 %s42, %s43
      %s46 = sor.u32 %s44, %s45
      %p47 = scmp.eq.s32.totalorder %s46, 0
      %s49 = sadd.s32 %s48, 1
      %s50 = scalar_select %p47, %s48, %s49
      %p53 = pneg %p47
      %p54 = scmp.eq.s32.totalorder %s22, 31
      %p55 = por %p53, %p54
      %p56 = scmp.ne.s32.totalorder %s48, %s51
      %p57 = scmp.eq.s32.totalorder %s22, 0
      %p58 = por %p56, %p57
      %p59 = scmp.ne.s32.totalorder %s48, %s51
      %p60 = scmp.eq.s32.totalorder %s27, 31
      %p61 = por %p59, %p60
      %p62 = scmp.ne.s32.totalorder %s51, %s52
      %p63 = scmp.eq.s32.totalorder %s27, 0
      %p64 = por %p62, %p63
      %p65 = scmp.ne.s32.totalorder %s51, %s52
      %p66 = scmp.eq.s32.totalorder %s28, 31
      %p67 = por %p65, %p66
      %p69 = scmp.ne.s32.totalorder %s52, %s68
      %p70 = scmp.eq.s32.totalorder %s28, 0
      %p71 = por %p69, %p70
      %s72 = sld [smem:[#allocation4 + %s30]]
      %s73 = sld [smem:[#allocation4 + %s37]]
      %s74 = ssub.s32 %s29, %s41
      %s75 = ssub.s32 %s72, %s73
      %s76 = sor.u32 %s74, %s75
      %p77 = scmp.eq.s32.totalorder %s76, 0
      %s79 = sadd.s32 %s78, 1
      %s80 = scalar_select %p77, %s78, %s79
      %p83 = pneg %p77
      %p84 = scmp.eq.s32.totalorder %s22, 31
      %p85 = por %p83, %p84
      %p86 = scmp.ne.s32.totalorder %s78, %s81
      %p87 = scmp.eq.s32.totalorder %s22, 0
      %p88 = por %p86, %p87
      %p89 = scmp.ne.s32.totalorder %s78, %s81
      %p90 = scmp.eq.s32.totalorder %s27, 31
      %p91 = por %p89, %p90
      %p92 = scmp.ne.s32.totalorder %s81, %s82
      %p93 = scmp.eq.s32.totalorder %s27, 0
      %p94 = por %p92, %p93
      %p95 = scmp.ne.s32.totalorder %s81, %s82
      %p96 = scmp.eq.s32.totalorder %s28, 31
      %p97 = por %p95, %p96
      %p99 = scmp.ne.s32.totalorder %s82, %s98
      %p100 = scmp.eq.s32.totalorder %s28, 0
      %p101 = por %p99, %p100
      %s103 = sadd.s32 %s102, 1
      %p106 = scmp.eq.s32.totalorder %s22, 31
      %p107 = scmp.ne.s32.totalorder %s102, %s104
      %p108 = scmp.eq.s32.totalorder %s22, 0
      %p109 = por %p107, %p108
      %p110 = scmp.ne.s32.totalorder %s102, %s104
      %p111 = scmp.eq.s32.totalorder %s27, 31
      %p112 = por %p110, %p111
      %p113 = scmp.ne.s32.totalorder %s104, %s105
      %p114 = scmp.eq.s32.totalorder %s27, 0
      %p115 = por %p113, %p114
      %p116 = scmp.ne.s32.totalorder %s104, %s105
      %p117 = scmp.eq.s32.totalorder %s28, 31
      %p118 = por %p116, %p117
      %p120 = scmp.ne.s32.totalorder %s105, %s119
      %p121 = scmp.eq.s32.totalorder %s28, 0
      %p122 = por %p120, %p121
      %s123 = ssub.s32 %s29, %s41
      %s124 = ssub.s32 %s30, %s37
      %s125 = sor.u32 %s123, %s124
      %p126 = scmp.eq.s32.totalorder %s125, 0
      %s128 = sadd.s32 %s127, 1
      %s129 = scalar_select %p126, %s127, %s128
      %p132 = pneg %p126
      %p133 = scmp.eq.s32.totalorder %s22, 31
      %p134 = por %p132, %p133
      %p135 = scmp.ne.s32.totalorder %s127, %s130
      %p136 = scmp.eq.s32.totalorder %s22, 0
      %p137 = por %p135, %p136
      %p138 = scmp.ne.s32.totalorder %s127, %s130
      %p139 = scmp.eq.s32.totalorder %s27, 31
      %p140 = por %p138, %p139
      %p141 = scmp.ne.s32.totalorder %s130, %s131
      %p142 = scmp.eq.s32.totalorder %s27, 0
      %p143 = por %p141, %p142
      %p144 = scmp.ne.s32.totalorder %s130, %s131
      %p145 = scmp.eq.s32.totalorder %s28, 31
      %p146 = por %p144, %p145
      %p148 = scmp.ne.s32.totalorder %s131, %s147
      %p149 = scmp.eq.s32.totalorder %s28, 0
      %p150 = por %p148, %p149
      %p151 = scmp.le.s32.totalorder 1, %s22
      %p152 = scmp.lt.s32.totalorder %s22, 33
      %p153 = pnand %p151, %p152
      %p154 = pneg %p153
      // Predicated region
      $region9: #{deeplabv3_forward.27} parent=5 // pred_check
        _
      $region10: #{deeplabv3_forward.27} parent=5 // pred_check_branch
        %156 = sbr.rel (%p153) target = $region12
      $region11: #{deeplabv3_forward.27} parent=5 // pred_region
        %s157 = ssub.s32 %s22, 1
        // Predicated region
        $region13: #{deeplabv3_forward.27} parent=11 // pred_check
          %p158 = pneg %p115
        $region14: #{deeplabv3_forward.27} parent=11 // pred_check_branch
          %160 = sbr.rel (%p158) target = $region16
        $region15: #{deeplabv3_forward.27} parent=11 // pred_region
          %s162 = ssub.s32 16, 16
          %163 = vsyncadd [#allocation6], %s162
          %s165 = sshll.u32 %s4, 4
          %s166 = int_to_ptr.vmem [resolvable:$true] %s165
          %168 = dma.vmem_to_smem %s166, 16, [#allocation5], [#allocation6]
        $region16: #{deeplabv3_forward.27} parent=11 // pred_fallthru
          _
      $region12: #{deeplabv3_forward.27} parent=5 // pred_fallthru
        _
      %p169 = scmp.lt.s32.totalorder %s22, 32
      // Predicated region
      $region17: #{deeplabv3_forward.27} parent=5 // pred_check
        %p170 = pneg %p169
      $region18: #{deeplabv3_forward.27} parent=5 // pred_check_branch
        %172 = sbr.rel (%p170) target = $region20
      $region19: #{deeplabv3_forward.27} parent=5 // pred_region
        // Predicated region
        $region21: #{deeplabv3_forward.27} parent=19 // pred_check
          %p173 = pneg %p58
        $region22: #{deeplabv3_forward.27} parent=19 // pred_check_branch
          %175 = sbr.rel (%p173) target = $region24
        $region23: #{deeplabv3_forward.27} parent=19 // pred_region
          %s176 = sld [smem:[#allocation3 + %s30]]
          %p177 = scmp.lt.s32.totalorder %s29, 1
          %s178 = scalar_select %p177, %s29, 1
          %p179 = scmp.lt.s32.totalorder %s176, 1
          %s180 = scalar_select %p179, %s176, 1
          %s181 = smul.addr %s178, 2
          %s182 = sadd.s32 %s180, %s181
          %s183 = scalar_lea.vmem %s2, %s182
          %s184 = sld [smem:[#allocation3 + %s30]]
        $region24: #{deeplabv3_forward.27} parent=19 // pred_fallthru
          _
        // Predicated region
        $region25: #{deeplabv3_forward.27} parent=19 // pred_check
          %p185 = pneg %p88
        $region26: #{deeplabv3_forward.27} parent=19 // pred_check_branch
          %187 = sbr.rel (%p185) target = $region28
        $region27: #{deeplabv3_forward.27} parent=19 // pred_region
          %s188 = sld [smem:[#allocation4 + %s30]]
          %p189 = scmp.lt.s32.totalorder %s29, 1
          %s190 = scalar_select %p189, %s29, 1
          %p191 = scmp.lt.s32.totalorder %s188, 1
          %s192 = scalar_select %p191, %s188, 1
          %s193 = smul.addr %s190, 2
          %s194 = sadd.s32 %s192, %s193
          %s195 = scalar_lea.vmem %s3, %s194
          %s196 = sld [smem:[#allocation4 + %s30]]
        $region28: #{deeplabv3_forward.27} parent=19 // pred_fallthru
          _
      $region20: #{deeplabv3_forward.27} parent=5 // pred_fallthru
        _
      %p197 = scmp.le.s32.totalorder 1, %s22
      %p198 = scmp.lt.s32.totalorder %s22, 33
      %p199 = pnand %p197, %p198
      %p200 = pneg %p199
      // Predicated region
      $region29: #{deeplabv3_forward.27} parent=5 // pred_check
        _
      $region30: #{deeplabv3_forward.27} parent=5 // pred_check_branch
        %202 = sbr.rel (%p199) target = $region32
      $region31: #{deeplabv3_forward.27} parent=5 // pred_region
        %s203 = ssub.s32 %s22, 1
        // Predicated region
        $region33: #{deeplabv3_forward.27} parent=31 // pred_check
          %p204 = pneg %p115
        $region34: #{deeplabv3_forward.27} parent=31 // pred_check_branch
          %206 = sbr.rel (%p204) target = $region36
        $region35: #{deeplabv3_forward.27} parent=31 // pred_region
          %207 = dma.done [#allocation6], 16
        $region36: #{deeplabv3_forward.27} parent=31 // pred_fallthru
          _
        %208 = sfence
        %s209 = sld [smem:[#allocation3 + %s32]]
        %p210 = scmp.lt.s32.totalorder %s31, 1
        %s211 = scalar_select %p210, %s31, 1
        %p212 = scmp.lt.s32.totalorder %s209, 1
        %s213 = scalar_select %p212, %s209, 1
        %s214 = smul.addr %s211, 2
        %s215 = sadd.s32 %s213, %s214
        %s216 = scalar_lea.vmem %s2, %s215
        %p217 = pneg %p64
        %p218 = pneg %p61
        %s219 = sld [smem:[#allocation4 + %s32]]
        %p220 = scmp.lt.s32.totalorder %s31, 1
        %s221 = scalar_select %p220, %s31, 1
        %p222 = scmp.lt.s32.totalorder %s219, 1
        %s223 = scalar_select %p222, %s219, 1
        %s224 = smul.addr %s221, 2
        %s225 = sadd.s32 %s223, %s224
        %s226 = scalar_lea.vmem %s3, %s225
        %p227 = pneg %p94
        %p228 = pneg %p91
        %p229 = pneg %p115
        %p230 = pneg %p112
        %p231 = pneg %p143
        %p232 = pneg %p140
        %p233 = scmp.lt.s32.totalorder %s31, 1
        %s234 = scalar_select %p233, %s31, 1
        %p235 = scmp.lt.s32.totalorder %s32, 15
        %s236 = scalar_select %p235, %s32, 15
        %s237 = smul.addr %s234, 16
        %s238 = sadd.s32 %s236, %s237
        %s239 = scalar_lea.vmem %s5, %s238
        %s240 = sld [smem:[#allocation3 + %s32]]
        %p241 = scmp.lt.s32.totalorder %s31, 1
        %s242 = scalar_select %p241, %s31, 1
        %p243 = scmp.lt.s32.totalorder %s240, 1
        %s244 = scalar_select %p243, %s240, 1
        %s245 = smul.addr %s242, 2
        %s246 = sadd.s32 %s244, %s245
        %s247 = scalar_lea.vmem %s2, %s246
        %s248 = sld [smem:[#allocation3 + %s32]]
        %s249 = sld [smem:[#allocation4 + %s32]]
        %p250 = scmp.lt.s32.totalorder %s31, 1
        %s251 = scalar_select %p250, %s31, 1
        %p252 = scmp.lt.s32.totalorder %s249, 1
        %s253 = scalar_select %p252, %s249, 1
        %s254 = smul.addr %s251, 2
        %s255 = sadd.s32 %s253, %s254
        %s256 = scalar_lea.vmem %s3, %s255
        %s257 = sld [smem:[#allocation4 + %s32]]
        %p258 = scmp.lt.s32.totalorder %s31, 1
        %s259 = scalar_select %p258, %s31, 1
        %p260 = scmp.lt.s32.totalorder %s32, 15
        %s261 = scalar_select %p260, %s32, 15
        %s262 = smul.addr %s259, 16
        %s263 = sadd.s32 %s261, %s262
        %s264 = scalar_lea.vmem %s5, %s263
        %s265 = sld [smem:[#allocation5 + %s32]]
        %v266 = vld [vmem:[%s247] sm:$0x1]
        %v267 = vld [vmem:[%s256] sm:$0x1]
        %v268 = vsub.f32 %v267, %v266
        %v269 = vstv %s265
        %v270 = vmul.f32 %v268, %v269
        %v271 = vadd.f32 %v266, %v270
        %vm272 = vcmask 385024
        %273 = vst.msk [vmem:[%s264] sm:$0x1] %vm272, %v271
        %p274 = scmp.lt.s32.totalorder %s31, 1
        %s275 = scalar_select %p274, %s31, 1
        %p276 = scmp.lt.s32.totalorder %s32, 15
        %s277 = scalar_select %p276, %s32, 15
        %s278 = smul.addr %s275, 16
        %s279 = sadd.s32 %s277, %s278
        %s280 = scalar_lea.vmem %s5, %s279
        // Predicated region
        $region37: #{deeplabv3_forward.27} parent=31 // pred_check
          %p281 = pneg %p140
        $region38: #{deeplabv3_forward.27} parent=31 // pred_check_branch
          %283 = sbr.rel (%p281) target = $region40
        $region39: #{deeplabv3_forward.27} parent=31 // pred_region
          _
        $region40: #{deeplabv3_forward.27} parent=31 // pred_fallthru
          _
      $region32: #{deeplabv3_forward.27} parent=5 // pred_fallthru
        _
      %p284 = scmp.le.s32.totalorder 2, %s22
      // Predicated region
      $region41: #{deeplabv3_forward.27} parent=5 // pred_check
        %p285 = pneg %p284
      $region42: #{deeplabv3_forward.27} parent=5 // pred_check_branch
        %287 = sbr.rel (%p285) target = $region44
      $region43: #{deeplabv3_forward.27} parent=5 // pred_region
        %s288 = ssub.s32 %s22, 2
        // Predicated region
        $region45: #{deeplabv3_forward.27} parent=43 // pred_check
          %p289 = pneg %p146
        $region46: #{deeplabv3_forward.27} parent=43 // pred_check_branch
          %291 = sbr.rel (%p289) target = $region48
        $region47: #{deeplabv3_forward.27} parent=43 // pred_region
          %p292 = scmp.lt.s32.totalorder %s33, 1
          %s293 = scalar_select %p292, %s33, 1
          %p294 = scmp.lt.s32.totalorder %s34, 15
          %s295 = scalar_select %p294, %s34, 15
          %s296 = smul.addr %s293, 16
          %s297 = sadd.s32 %s295, %s296
          %s298 = scalar_lea.vmem %s5, %s297
        $region48: #{deeplabv3_forward.27} parent=43 // pred_fallthru
          _
      $region44: #{deeplabv3_forward.27} parent=5 // pred_fallthru
        _
    $region6: #{deeplabv3_forward.27} parent=1 // loop_footer
      %s26 = sadd.s32 1, %s22
    $region7: #{deeplabv3_forward.27} parent=1 // loop_footer_branch
      %21 = sbr.rel target = $region3
    $region8: #{deeplabv3_forward.27} parent=1 // loop_exit
      _
    %299 = vsyncpa [#allocation6], 1
    %s300 = scalar_lea.sflag [#allocation6], 1
    %301 = vsyncpa %s300, 1

</llo_original>
